<compile_context>
chip_gen: v7x
topology: tpu7x:2x2x1
jax: 0.10.0
libtpu: 0.0.40
codegen_flags: <defaults>
</compile_context>

<pallas_src>
import functools

import jax
import jax.numpy as jnp
from jax.experimental import pallas as pl
from jax.experimental.pallas import tpu as pltpu

BN_EPS = 1e-5
# Safe on v5e / v6e / v7x. Raise toward 64-96 MiB on v5e/v6e to enable larger
# row tiles; keep <= ~48 MiB on v7x (64 MiB physical VMEM).
_VMEM_LIMIT = 32 * 1024 * 1024


def _pick_tile_rows(n, target):
    """Largest tile t <= target with n % t == 0 and (t % 8 == 0 or t == n)."""
    t = min(n, target)
    while t > 0:
        if n % t == 0 and (t % 8 == 0 or t == n):
            return t
        t -= 1
    return n


# ---------------------------------------------------------------------------
# Encoder kernel: tiled conv-as-matmul + bias, bf16 feature write-out, plus
# global BatchNorm statistics accumulated across the ("arbitrary") M grid axis.
#   patches (M, Kp) f32, w (Kp, C) f32, b (1, C) f32
#   -> y (M, C) bf16 ; sum (1, C) f32 ; sumsq (1, C) f32
# ---------------------------------------------------------------------------
def _enc_kernel(patch_ref, w_ref, b_ref, y_ref, sum_ref, sq_ref):
    @pl.when(pl.program_id(0) == 0)
    def _init():
        sum_ref[...] = jnp.zeros_like(sum_ref)
        sq_ref[...] = jnp.zeros_like(sq_ref)

    y = jnp.dot(patch_ref[...], w_ref[...], preferred_element_type=jnp.float32)
    y = y + b_ref[...]
    y_ref[...] = y.astype(y_ref.dtype)              # bf16 feature storage (HBM)
    # Global BatchNorm statistics (stats accumulated in f32 before the cast).
    sum_ref[...] += jnp.sum(y, axis=0, keepdims=True)
    sq_ref[...] += jnp.sum(y * y, axis=0, keepdims=True)


def _encoder(x_nchw, w, b, *, tile_rows=256):
    """Conv3x3(pad=1)+bias via a tiled Pallas matmul.

    Returns the bf16 conv output (M, Cout) and per-channel BatchNorm
    (mean, rstd) packed as a (Cout, 2) f32 array.
    """
    B, Cin, H, W = x_nchw.shape
    Cout = w.shape[-1]
    x = jnp.transpose(x_nchw, (0, 2, 3, 1))                       # NHWC
    xp = jnp.pad(x, ((0, 0), (1, 1), (1, 1), (0, 0)))
    # im2col: patch order (ki, kj, cin) matches w.reshape(9*Cin, Cout).
    # TODO(synk): build the 9 taps in-kernel from a padded row band to avoid
    # the 9x im2col HBM materialization.
    patches = jnp.concatenate(
        [xp[:, i:i + H, j:j + W, :] for i in range(3) for j in range(3)],
        axis=-1)
    M, K = B * H * W, 9 * Cin
    Kp = ((K + 7) // 8) * 8                                       # align K
    patches = patches.reshape(M, K).astype(jnp.float32)
    w2 = w.reshape(K, Cout).astype(jnp.float32)
    if Kp != K:
        patches = jnp.pad(patches, ((0, 0), (0, Kp - K)))
        w2 = jnp.pad(w2, ((0, Kp - K), (0, 0)))
    b2 = b.reshape(1, Cout).astype(jnp.float32)

    TM = _pick_tile_rows(M, tile_rows)
    y, s, sq = pl.pallas_call(
        _enc_kernel,
        out_shape=(
            jax.ShapeDtypeStruct((M, Cout), jnp.bfloat16),
            jax.ShapeDtypeStruct((1, Cout), jnp.float32),
            jax.ShapeDtypeStruct((1, Cout), jnp.float32),
        ),
        grid_spec=pltpu.PrefetchScalarGridSpec(
            num_scalar_prefetch=0,
            grid=(M // TM,),
            in_specs=[
                pl.BlockSpec((TM, Kp), lambda i: (i, 0)),
                pl.BlockSpec((Kp, Cout), lambda i: (0, 0)),
                pl.BlockSpec((1, Cout), lambda i: (0, 0)),
            ],
            out_specs=(
                pl.BlockSpec((TM, Cout), lambda i: (i, 0)),
                pl.BlockSpec((1, Cout), lambda i: (0, 0)),   # resident accums
                pl.BlockSpec((1, Cout), lambda i: (0, 0)),
            ),
        ),
        compiler_params=pltpu.CompilerParams(
            dimension_semantics=("arbitrary",),     # stats accumulate over M
            vmem_limit_bytes=_VMEM_LIMIT),
    )(patches, w2, b2)

    mean = s / M
    var = jnp.maximum(sq / M - mean * mean, 0.0)    # clamp f32 cancellation
    rstd = jax.lax.rsqrt(var + BN_EPS)
    norm = jnp.concatenate([mean, rstd], axis=0).T  # (Cout, 2): [:,0]=mean
    return y, norm


# ---------------------------------------------------------------------------
# Decoder kernel: fused BatchNorm+ReLU, per-disparity correlation via static
# lane slices of a zero-padded right tile, online softmax over disparity, and
# the disparity regression  out = ref * sum_d p_d * d  with a lane-dense store.
#   fl (TR, C, W) bf16, fr (TR, C, W+D-1) bf16, nl/nr (C, 2) f32,
#   ref (TR, 1) f32  ->  out (TR, W) f32
# ---------------------------------------------------------------------------
def _decoder_kernel(fl_ref, fr_ref, nl_ref, nr_ref, ref_ref, out_ref, *,
                    disp_vals, w_img, pad_left):
    f32 = jnp.float32
    fl = fl_ref[...].astype(f32)                    # (TR, C, W)
    fr = fr_ref[...].astype(f32)                    # (TR, C, Wp)
    nl = nl_ref[...]                                # (C, 2) = [mean, rstd]
    nr = nr_ref[...]
    # Fused BatchNorm (batch statistics, gamma=1, beta=0) + ReLU, in f32.
    fl = jnp.maximum((fl - nl[:, 0:1]) * nl[:, 1:2], 0.0)
    fr = jnp.maximum((fr - nr[:, 0:1]) * nr[:, 1:2], 0.0)
    # Re-zero the padded border columns so out-of-image disparity candidates
    # correlate against zero features (matches the reference zero-pad shift).
    tr, c, wp = fr.shape
    col = jax.lax.broadcasted_iota(jnp.int32, (tr, c, wp), 2)
    fr = jnp.where((col >= pad_left) & (col < pad_left + w_img), fr, 0.0)

    # Online softmax over disparity — no (TR, D, W) volume is materialized.
    m = jnp.full((tr, w_img), -jnp.inf, f32)
    l = jnp.zeros((tr, w_img), f32)
    acc = jnp.zeros((tr, w_img), f32)
    for d in disp_vals:                             # static, unrolled
        s = d + pad_left
        fr_d = fr[:, :, s:s + w_img]                # static lane slice == shift
        cost = jnp.sum(fl * fr_d, axis=1)           # (TR, W) correlate over C
        m_new = jnp.maximum(m, cost)
        alpha = jnp.exp(m - m_new)
        p = jnp.exp(cost - m_new)
        l = l * alpha + p
        acc = acc * alpha + p * f32(d)
        m = m_new
    out = acc * pl.reciprocal(l, approx=True)       # softmax-weighted disparity
    out_ref[...] = out * ref_ref[...]               # (TR,1) broadcasts over W


def bnn_forward(left, right, ref, conv_w, conv_b, max_disp, *,
                enc_tile_rows=256, dec_tile_rows=8):
    """Full BNN forward. left/right: (B,3,H,W) f32 NCHW, ref: (B,). Out: (B,H,W)."""
    B, _, H, W = left.shape
    D = max_disp
    Cout = conv_w.shape[-1]

    y_l, norm_l = _encoder(left, conv_w, conv_b, tile_rows=enc_tile_rows)
    y_r, norm_r = _encoder(right, conv_w, conv_b, tile_rows=enc_tile_rows)

    BH = B * H
    # Channels-major (rows, C, W) so W is the lane dim: lane-dense output and
    # disparity shifts become cheap lane slices.
    # TODO(synk): fuse this layout transpose into the encoder kernel epilogue.
    fl = jnp.transpose(y_l.reshape(BH, W, Cout), (0, 2, 1))       # (BH,C,W) bf16
    fr = jnp.transpose(y_r.reshape(BH, W, Cout), (0, 2, 1))

    disp_vals = tuple(range(-D // 2, D // 2))       # matches disp_indices buffer
    pad_left, pad_right = -min(disp_vals), max(disp_vals)
    fr = jnp.pad(fr, ((0, 0), (0, 0), (pad_left, pad_right)))     # (BH,C,W+D-1)
    Wp = W + pad_left + pad_right
    ref_rows = jnp.repeat(ref.astype(jnp.float32), H).reshape(BH, 1)

    TR = _pick_tile_rows(BH, dec_tile_rows)
    kernel = functools.partial(_decoder_kernel, disp_vals=disp_vals,
                               w_img=W, pad_left=pad_left)
    out = pl.pallas_call(
        kernel,
        out_shape=jax.ShapeDtypeStruct((BH, W), jnp.float32),
        grid_spec=pltpu.PrefetchScalarGridSpec(
            num_scalar_prefetch=0,
            grid=(BH // TR,),
            in_specs=[
                pl.BlockSpec((TR, Cout, W), lambda i: (i, 0, 0)),
                pl.BlockSpec((TR, Cout, Wp), lambda i: (i, 0, 0)),
                pl.BlockSpec((Cout, 2), lambda i: (0, 0)),
                pl.BlockSpec((Cout, 2), lambda i: (0, 0)),
                pl.BlockSpec((TR, 1), lambda i: (i, 0)),
            ],
            out_specs=pl.BlockSpec((TR, W), lambda i: (i, 0)),
        ),
        compiler_params=pltpu.CompilerParams(
            dimension_semantics=("parallel",),      # independent rows -> 2 TCs
            vmem_limit_bytes=_VMEM_LIMIT),
    )(fl, fr, norm_l, norm_r, ref_rows)
    return out.reshape(B, H, W)


if __name__ == "__main__":
    # TODO(synk): build_feat_extractor / build_decoder configs are unspecified
    # in the reference module; synthetic stand-ins are used (see header).
    key = jax.random.PRNGKey(0)
    k_left, k_right, k_ref, k_w = jax.random.split(key, 4)

    B, Cin, H, W = 2, 3, 16, 16
    Cout, max_disp = 32, 8

    left = jax.random.normal(k_left, (B, Cin, H, W), jnp.float32)
    right = jax.random.normal(k_right, (B, Cin, H, W), jnp.float32)
    ref = jax.random.uniform(k_ref, (B,), jnp.float32)

    # kaiming_normal_(mode='fan_out', nonlinearity='relu'): std = sqrt(2/fan_out)
    fan_out = Cout * 3 * 3
    conv_w = jax.random.normal(k_w, (3, 3, Cin, Cout), jnp.float32) * (2.0 / fan_out) ** 0.5
    conv_b = jnp.zeros((Cout,), jnp.float32)        # nn.init.zeros_

    fwd = jax.jit(bnn_forward, static_argnums=(5,))
    out = fwd(left, right, ref, conv_w, conv_b, max_disp)
    jax.block_until_ready(out)
    assert out.shape == (B, H, W) and out.dtype == jnp.float32
    print("KERNEL_OK")
</pallas_src>

<mosaic_0001>
module attributes {stable_mosaic.version = 11 : i64} {
  func.func @_enc_kernel(%arg0: i32, %arg1: memref<256x32xf32, #tpu.memory_space<vmem>>, %arg2: memref<32x32xf32, #tpu.memory_space<vmem>>, %arg3: memref<1x32xf32, #tpu.memory_space<vmem>>, %arg4: memref<256x32xbf16, #tpu.memory_space<vmem>>, %arg5: memref<1x32xf32, #tpu.memory_space<vmem>>, %arg6: memref<1x32xf32, #tpu.memory_space<vmem>>) attributes {dimension_semantics = [#tpu.dimension_semantics<arbitrary>], iteration_bounds = array<i64: 2>, scalar_prefetch = 0 : i64, scratch_operands = 0 : i64, tpu.core_type = #tpu.core_type<tc>, window_params = [{transform_indices = @transform_0, window_bounds = array<i64: 256, 32>}, {pipeline_mode = #tpu.pipeline_mode<synchronous>, transform_indices = @transform_1, window_bounds = array<i64: 32, 32>}, {pipeline_mode = #tpu.pipeline_mode<synchronous>, transform_indices = @transform_2, window_bounds = array<i64: 1, 32>}, {transform_indices = @transform_3, window_bounds = array<i64: 256, 32>}, {pipeline_mode = #tpu.pipeline_mode<synchronous>, transform_indices = @transform_4, window_bounds = array<i64: 1, 32>}, {pipeline_mode = #tpu.pipeline_mode<synchronous>, transform_indices = @transform_5, window_bounds = array<i64: 1, 32>}]} {
    %c0_i32 = arith.constant 0 : i32
    %0 = arith.cmpi eq, %arg0, %c0_i32 : i32
    %1 = arith.extui %0 : i1 to i32
    %c0_i32_0 = arith.constant 0 : i32
    %2 = arith.cmpi ne, %1, %c0_i32_0 : i32
    scf.if %2 {
      %cst_18 = arith.constant 0.000000e+00 : f32
      %22 = vector.broadcast %cst_18 : f32 to vector<1x32xf32>
      %c0_19 = arith.constant 0 : index
      %c0_20 = arith.constant 0 : index
      %23 = vector.load %arg5[%c0_19, %c0_20] : memref<1x32xf32, #tpu.memory_space<vmem>>, vector<1x32xf32>
      tpu.vector_store %arg5[%c0_19, %c0_20], %22 {strides = array<i32>} : memref<1x32xf32, #tpu.memory_space<vmem>>, vector<1x32xf32>,
      %cst_21 = arith.constant 0.000000e+00 : f32
      %24 = vector.broadcast %cst_21 : f32 to vector<1x32xf32>
      %c0_22 = arith.constant 0 : index
      %c0_23 = arith.constant 0 : index
      %25 = vector.load %arg6[%c0_22, %c0_23] : memref<1x32xf32, #tpu.memory_space<vmem>>, vector<1x32xf32>
      tpu.vector_store %arg6[%c0_22, %c0_23], %24 {strides = array<i32>} : memref<1x32xf32, #tpu.memory_space<vmem>>, vector<1x32xf32>,
    } else {
    }
    %c0 = arith.constant 0 : index
    %c0_1 = arith.constant 0 : index
    %3 = vector.load %arg1[%c0, %c0_1] : memref<256x32xf32, #tpu.memory_space<vmem>>, vector<256x32xf32>
    %c0_2 = arith.constant 0 : index
    %c0_3 = arith.constant 0 : index
    %4 = vector.load %arg2[%c0_2, %c0_3] : memref<32x32xf32, #tpu.memory_space<vmem>>, vector<32x32xf32>
    %cst = arith.constant dense<0.000000e+00> : vector<256x32xf32>
    %5 = tpu.matmul %3, %4, %cst {dimension_numbers = #tpu.dot_dimension_numbers<[1], [0], [0], [1], [0, 0, 1, 1], [], []>} : vector<256x32xf32>, vector<32x32xf32>, vector<256x32xf32> -> vector<256x32xf32>
    %c0_4 = arith.constant 0 : index
    %c0_5 = arith.constant 0 : index
    %6 = vector.load %arg3[%c0_4, %c0_5] : memref<1x32xf32, #tpu.memory_space<vmem>>, vector<1x32xf32>
    %7 = vector.broadcast %6 : vector<1x32xf32> to vector<256x32xf32>
    %8 = arith.addf %5, %7 : vector<256x32xf32>
    %9 = arith.truncf %8 : vector<256x32xf32> to vector<256x32xbf16>
    %c0_6 = arith.constant 0 : index
    %c0_7 = arith.constant 0 : index
    %10 = vector.load %arg4[%c0_6, %c0_7] : memref<256x32xbf16, #tpu.memory_space<vmem>>, vector<256x32xbf16>
    tpu.vector_store %arg4[%c0_6, %c0_7], %9 {strides = array<i32>} : memref<256x32xbf16, #tpu.memory_space<vmem>>, vector<256x32xbf16>,
    %c0_8 = arith.constant 0 : index
    %c0_9 = arith.constant 0 : index
    %11 = vector.load %arg5[%c0_8, %c0_9] : memref<1x32xf32, #tpu.memory_space<vmem>>, vector<1x32xf32>
    %cst_10 = arith.constant dense<0.000000e+00> : vector<32xf32>
    %12 = vector.multi_reduction <add>, %8, %cst_10 [0] : vector<256x32xf32> to vector<32xf32>
    %13 = vector.shape_cast %12 : vector<32xf32> to vector<1x32xf32>
    %14 = arith.addf %11, %13 : vector<1x32xf32>
    %c0_11 = arith.constant 0 : index
    %c0_12 = arith.constant 0 : index
    %15 = vector.load %arg5[%c0_11, %c0_12] : memref<1x32xf32, #tpu.memory_space<vmem>>, vector<1x32xf32>
    tpu.vector_store %arg5[%c0_11, %c0_12], %14 {strides = array<i32>} : memref<1x32xf32, #tpu.memory_space<vmem>>, vector<1x32xf32>,
    %c0_13 = arith.constant 0 : index
    %c0_14 = arith.constant 0 : index
    %16 = vector.load %arg6[%c0_13, %c0_14] : memref<1x32xf32, #tpu.memory_space<vmem>>, vector<1x32xf32>
    %17 = arith.mulf %8, %8 : vector<256x32xf32>
    %cst_15 = arith.constant dense<0.000000e+00> : vector<32xf32>
    %18 = vector.multi_reduction <add>, %17, %cst_15 [0] : vector<256x32xf32> to vector<32xf32>
    %19 = vector.shape_cast %18 : vector<32xf32> to vector<1x32xf32>
    %20 = arith.addf %16, %19 : vector<1x32xf32>
    %c0_16 = arith.constant 0 : index
    %c0_17 = arith.constant 0 : index
    %21 = vector.load %arg6[%c0_16, %c0_17] : memref<1x32xf32, #tpu.memory_space<vmem>>, vector<1x32xf32>
    tpu.vector_store %arg6[%c0_16, %c0_17], %20 {strides = array<i32>} : memref<1x32xf32, #tpu.memory_space<vmem>>, vector<1x32xf32>,
    return
  }
  func.func @transform_0(%arg0: i32) -> (i32, i32) {
    %c0_i32 = arith.constant 0 : i32
    %c0_i32_0 = arith.constant 0 : i32
    return %arg0, %c0_i32 : i32, i32
  }
  func.func @transform_1(%arg0: i32) -> (i32, i32) {
    %c0_i32 = arith.constant 0 : i32
    %c0_i32_0 = arith.constant 0 : i32
    %c0_i32_1 = arith.constant 0 : i32
    return %c0_i32, %c0_i32_0 : i32, i32
  }
  func.func @transform_2(%arg0: i32) -> (i32, i32) {
    %c0_i32 = arith.constant 0 : i32
    %c0_i32_0 = arith.constant 0 : i32
    %c0_i32_1 = arith.constant 0 : i32
    return %c0_i32, %c0_i32_0 : i32, i32
  }
  func.func @transform_3(%arg0: i32) -> (i32, i32) {
    %c0_i32 = arith.constant 0 : i32
    %c0_i32_0 = arith.constant 0 : i32
    return %arg0, %c0_i32 : i32, i32
  }
  func.func @transform_4(%arg0: i32) -> (i32, i32) {
    %c0_i32 = arith.constant 0 : i32
    %c0_i32_0 = arith.constant 0 : i32
    %c0_i32_1 = arith.constant 0 : i32
    return %c0_i32, %c0_i32_0 : i32, i32
  }
  func.func @transform_5(%arg0: i32) -> (i32, i32) {
    %c0_i32 = arith.constant 0 : i32
    %c0_i32_0 = arith.constant 0 : i32
    %c0_i32_1 = arith.constant 0 : i32
    return %c0_i32, %c0_i32_0 : i32, i32
  }
}

module attributes {stable_mosaic.version = 11 : i64} {
  func.func @_decoder_kernel(%arg0: i32, %arg1: memref<8x32x16xbf16, #tpu.memory_space<vmem>>, %arg2: memref<8x32x23xbf16, #tpu.memory_space<vmem>>, %arg3: memref<32x2xf32, #tpu.memory_space<vmem>>, %arg4: memref<32x2xf32, #tpu.memory_space<vmem>>, %arg5: memref<8x1xf32, #tpu.memory_space<vmem>>, %arg6: memref<8x16xf32, #tpu.memory_space<vmem>>) attributes {dimension_semantics = [#tpu.dimension_semantics<parallel>], iteration_bounds = array<i64: 4>, scalar_prefetch = 0 : i64, scratch_operands = 0 : i64, tpu.core_type = #tpu.core_type<tc>, window_params = [{transform_indices = @transform_0, window_bounds = array<i64: 8, 32, 16>}, {transform_indices = @transform_1, window_bounds = array<i64: 8, 32, 23>}, {pipeline_mode = #tpu.pipeline_mode<synchronous>, transform_indices = @transform_2, window_bounds = array<i64: 32, 2>}, {pipeline_mode = #tpu.pipeline_mode<synchronous>, transform_indices = @transform_3, window_bounds = array<i64: 32, 2>}, {transform_indices = @transform_4, window_bounds = array<i64: 8, 1>}, {transform_indices = @transform_5, window_bounds = array<i64: 8, 16>}]} {
    %c0 = arith.constant 0 : index
    %c0_0 = arith.constant 0 : index
    %c0_1 = arith.constant 0 : index
    %0 = vector.load %arg1[%c0, %c0_0, %c0_1] : memref<8x32x16xbf16, #tpu.memory_space<vmem>>, vector<8x32x16xbf16>
    %1 = arith.extf %0 : vector<8x32x16xbf16> to vector<8x32x16xf32>
    %c0_2 = arith.constant 0 : index
    %c0_3 = arith.constant 0 : index
    %c0_4 = arith.constant 0 : index
    %2 = vector.load %arg2[%c0_2, %c0_3, %c0_4] : memref<8x32x23xbf16, #tpu.memory_space<vmem>>, vector<8x32x23xbf16>
    %3 = arith.extf %2 : vector<8x32x23xbf16> to vector<8x32x23xf32>
    %c0_5 = arith.constant 0 : index
    %c0_6 = arith.constant 0 : index
    %4 = vector.load %arg3[%c0_5, %c0_6] : memref<32x2xf32, #tpu.memory_space<vmem>>, vector<32x2xf32>
    %c0_7 = arith.constant 0 : index
    %c0_8 = arith.constant 0 : index
    %5 = vector.load %arg4[%c0_7, %c0_8] : memref<32x2xf32, #tpu.memory_space<vmem>>, vector<32x2xf32>
    %6 = vector.extract_strided_slice %4 {offsets = [0, 0], sizes = [32, 1], strides = [1, 1]} : vector<32x2xf32> to vector<32x1xf32>
    %7 = vector.shape_cast %6 : vector<32x1xf32> to vector<1x32x1xf32>
    %8 = vector.broadcast %7 : vector<1x32x1xf32> to vector<8x32x16xf32>
    %9 = arith.subf %1, %8 : vector<8x32x16xf32>
    %10 = vector.extract_strided_slice %4 {offsets = [0, 1], sizes = [32, 1], strides = [1, 1]} : vector<32x2xf32> to vector<32x1xf32>
    %11 = vector.shape_cast %10 : vector<32x1xf32> to vector<1x32x1xf32>
    %12 = vector.broadcast %11 : vector<1x32x1xf32> to vector<8x32x16xf32>
    %13 = arith.mulf %9, %12 : vector<8x32x16xf32>
    %cst = arith.constant 0.000000e+00 : f32
    %14 = vector.broadcast %cst : f32 to vector<8x32x16xf32>
    %15 = arith.maximumf %13, %14 : vector<8x32x16xf32>
    %16 = vector.extract_strided_slice %5 {offsets = [0, 0], sizes = [32, 1], strides = [1, 1]} : vector<32x2xf32> to vector<32x1xf32>
    %17 = vector.shape_cast %16 : vector<32x1xf32> to vector<1x32x1xf32>
    %18 = vector.broadcast %17 : vector<1x32x1xf32> to vector<8x32x23xf32>
    %19 = arith.subf %3, %18 : vector<8x32x23xf32>
    %20 = vector.extract_strided_slice %5 {offsets = [0, 1], sizes = [32, 1], strides = [1, 1]} : vector<32x2xf32> to vector<32x1xf32>
    %21 = vector.shape_cast %20 : vector<32x1xf32> to vector<1x32x1xf32>
    %22 = vector.broadcast %21 : vector<1x32x1xf32> to vector<8x32x23xf32>
    %23 = arith.mulf %19, %22 : vector<8x32x23xf32>
    %cst_9 = arith.constant 0.000000e+00 : f32
    %24 = vector.broadcast %cst_9 : f32 to vector<8x32x23xf32>
    %25 = arith.maximumf %23, %24 : vector<8x32x23xf32>
    %26 = tpu.iota {dimensions = array<i32: 2>} : vector<8x32x23xi32>
    %c4_i32 = arith.constant 4 : i32
    %27 = vector.broadcast %c4_i32 : i32 to vector<8x32x23xi32>
    %28 = arith.cmpi sge, %26, %27 : vector<8x32x23xi32>
    %c20_i32 = arith.constant 20 : i32
    %29 = vector.broadcast %c20_i32 : i32 to vector<8x32x23xi32>
    %30 = arith.cmpi slt, %26, %29 : vector<8x32x23xi32>
    %31 = arith.andi %28, %30 : vector<8x32x23xi1>
    %cst_10 = arith.constant 0.000000e+00 : f32
    %32 = vector.broadcast %cst_10 : f32 to vector<8x32x23xf32>
    %33 = arith.select %31, %25, %32 : vector<8x32x23xi1>, vector<8x32x23xf32>
    %cst_11 = arith.constant 0xFF800000 : f32
    %34 = vector.broadcast %cst_11 : f32 to vector<8x16xf32>
    %cst_12 = arith.constant 0.000000e+00 : f32
    %35 = vector.broadcast %cst_12 : f32 to vector<8x16xf32>
    %cst_13 = arith.constant 0.000000e+00 : f32
    %36 = vector.broadcast %cst_13 : f32 to vector<8x16xf32>
    %37 = vector.extract_strided_slice %33 {offsets = [0, 0, 0], sizes = [8, 32, 16], strides = [1, 1, 1]} : vector<8x32x23xf32> to vector<8x32x16xf32>
    %38 = arith.mulf %15, %37 : vector<8x32x16xf32>
    %cst_14 = arith.constant dense<0.000000e+00> : vector<8x16xf32>
    %39 = vector.multi_reduction <add>, %38, %cst_14 [1] : vector<8x32x16xf32> to vector<8x16xf32>
    %40 = arith.maximumf %34, %39 : vector<8x16xf32>
    %41 = arith.subf %34, %40 : vector<8x16xf32>
    %42 = math.exp %41 : vector<8x16xf32>
    %43 = arith.subf %39, %40 : vector<8x16xf32>
    %44 = math.exp %43 : vector<8x16xf32>
    %45 = arith.mulf %35, %42 : vector<8x16xf32>
    %46 = arith.addf %45, %44 : vector<8x16xf32>
    %47 = arith.mulf %36, %42 : vector<8x16xf32>
    %cst_15 = arith.constant -4.000000e+00 : f32
    %48 = vector.broadcast %cst_15 : f32 to vector<8x16xf32>
    %49 = arith.mulf %44, %48 : vector<8x16xf32>
    %50 = arith.addf %47, %49 : vector<8x16xf32>
    %51 = vector.extract_strided_slice %33 {offsets = [0, 0, 1], sizes = [8, 32, 16], strides = [1, 1, 1]} : vector<8x32x23xf32> to vector<8x32x16xf32>
    %52 = arith.mulf %15, %51 : vector<8x32x16xf32>
    %cst_16 = arith.constant dense<0.000000e+00> : vector<8x16xf32>
    %53 = vector.multi_reduction <add>, %52, %cst_16 [1] : vector<8x32x16xf32> to vector<8x16xf32>
    %54 = arith.maximumf %40, %53 : vector<8x16xf32>
    %55 = arith.subf %40, %54 : vector<8x16xf32>
    %56 = math.exp %55 : vector<8x16xf32>
    %57 = arith.subf %53, %54 : vector<8x16xf32>
    %58 = math.exp %57 : vector<8x16xf32>
    %59 = arith.mulf %46, %56 : vector<8x16xf32>
    %60 = arith.addf %59, %58 : vector<8x16xf32>
    %61 = arith.mulf %50, %56 : vector<8x16xf32>
    %cst_17 = arith.constant -3.000000e+00 : f32
    %62 = vector.broadcast %cst_17 : f32 to vector<8x16xf32>
    %63 = arith.mulf %58, %62 : vector<8x16xf32>
    %64 = arith.addf %61, %63 : vector<8x16xf32>
    %65 = vector.extract_strided_slice %33 {offsets = [0, 0, 2], sizes = [8, 32, 16], strides = [1, 1, 1]} : vector<8x32x23xf32> to vector<8x32x16xf32>
    %66 = arith.mulf %15, %65 : vector<8x32x16xf32>
    %cst_18 = arith.constant dense<0.000000e+00> : vector<8x16xf32>
    %67 = vector.multi_reduction <add>, %66, %cst_18 [1] : vector<8x32x16xf32> to vector<8x16xf32>
    %68 = arith.maximumf %54, %67 : vector<8x16xf32>
    %69 = arith.subf %54, %68 : vector<8x16xf32>
    %70 = math.exp %69 : vector<8x16xf32>
    %71 = arith.subf %67, %68 : vector<8x16xf32>
    %72 = math.exp %71 : vector<8x16xf32>
    %73 = arith.mulf %60, %70 : vector<8x16xf32>
    %74 = arith.addf %73, %72 : vector<8x16xf32>
    %75 = arith.mulf %64, %70 : vector<8x16xf32>
    %cst_19 = arith.constant -2.000000e+00 : f32
    %76 = vector.broadcast %cst_19 : f32 to vector<8x16xf32>
    %77 = arith.mulf %72, %76 : vector<8x16xf32>
    %78 = arith.addf %75, %77 : vector<8x16xf32>
    %79 = vector.extract_strided_slice %33 {offsets = [0, 0, 3], sizes = [8, 32, 16], strides = [1, 1, 1]} : vector<8x32x23xf32> to vector<8x32x16xf32>
    %80 = arith.mulf %15, %79 : vector<8x32x16xf32>
    %cst_20 = arith.constant dense<0.000000e+00> : vector<8x16xf32>
    %81 = vector.multi_reduction <add>, %80, %cst_20 [1] : vector<8x32x16xf32> to vector<8x16xf32>
    %82 = arith.maximumf %68, %81 : vector<8x16xf32>
    %83 = arith.subf %68, %82 : vector<8x16xf32>
    %84 = math.exp %83 : vector<8x16xf32>
    %85 = arith.subf %81, %82 : vector<8x16xf32>
    %86 = math.exp %85 : vector<8x16xf32>
    %87 = arith.mulf %74, %84 : vector<8x16xf32>
    %88 = arith.addf %87, %86 : vector<8x16xf32>
    %89 = arith.mulf %78, %84 : vector<8x16xf32>
    %cst_21 = arith.constant -1.000000e+00 : f32
    %90 = vector.broadcast %cst_21 : f32 to vector<8x16xf32>
    %91 = arith.mulf %86, %90 : vector<8x16xf32>
    %92 = arith.addf %89, %91 : vector<8x16xf32>
    %93 = vector.extract_strided_slice %33 {offsets = [0, 0, 4], sizes = [8, 32, 16], strides = [1, 1, 1]} : vector<8x32x23xf32> to vector<8x32x16xf32>
    %94 = arith.mulf %15, %93 : vector<8x32x16xf32>
    %cst_22 = arith.constant dense<0.000000e+00> : vector<8x16xf32>
    %95 = vector.multi_reduction <add>, %94, %cst_22 [1] : vector<8x32x16xf32> to vector<8x16xf32>
    %96 = arith.maximumf %82, %95 : vector<8x16xf32>
    %97 = arith.subf %82, %96 : vector<8x16xf32>
    %98 = math.exp %97 : vector<8x16xf32>
    %99 = arith.subf %95, %96 : vector<8x16xf32>
    %100 = math.exp %99 : vector<8x16xf32>
    %101 = arith.mulf %88, %98 : vector<8x16xf32>
    %102 = arith.addf %101, %100 : vector<8x16xf32>
    %103 = arith.mulf %92, %98 : vector<8x16xf32>
    %cst_23 = arith.constant 0.000000e+00 : f32
    %104 = vector.broadcast %cst_23 : f32 to vector<8x16xf32>
    %105 = arith.mulf %100, %104 : vector<8x16xf32>
    %106 = arith.addf %103, %105 : vector<8x16xf32>
    %107 = vector.extract_strided_slice %33 {offsets = [0, 0, 5], sizes = [8, 32, 16], strides = [1, 1, 1]} : vector<8x32x23xf32> to vector<8x32x16xf32>
    %108 = arith.mulf %15, %107 : vector<8x32x16xf32>
    %cst_24 = arith.constant dense<0.000000e+00> : vector<8x16xf32>
    %109 = vector.multi_reduction <add>, %108, %cst_24 [1] : vector<8x32x16xf32> to vector<8x16xf32>
    %110 = arith.maximumf %96, %109 : vector<8x16xf32>
    %111 = arith.subf %96, %110 : vector<8x16xf32>
    %112 = math.exp %111 : vector<8x16xf32>
    %113 = arith.subf %109, %110 : vector<8x16xf32>
    %114 = math.exp %113 : vector<8x16xf32>
    %115 = arith.mulf %102, %112 : vector<8x16xf32>
    %116 = arith.addf %115, %114 : vector<8x16xf32>
    %117 = arith.mulf %106, %112 : vector<8x16xf32>
    %cst_25 = arith.constant 1.000000e+00 : f32
    %118 = vector.broadcast %cst_25 : f32 to vector<8x16xf32>
    %119 = arith.mulf %114, %118 : vector<8x16xf32>
    %120 = arith.addf %117, %119 : vector<8x16xf32>
    %121 = vector.extract_strided_slice %33 {offsets = [0, 0, 6], sizes = [8, 32, 16], strides = [1, 1, 1]} : vector<8x32x23xf32> to vector<8x32x16xf32>
    %122 = arith.mulf %15, %121 : vector<8x32x16xf32>
    %cst_26 = arith.constant dense<0.000000e+00> : vector<8x16xf32>
    %123 = vector.multi_reduction <add>, %122, %cst_26 [1] : vector<8x32x16xf32> to vector<8x16xf32>
    %124 = arith.maximumf %110, %123 : vector<8x16xf32>
    %125 = arith.subf %110, %124 : vector<8x16xf32>
    %126 = math.exp %125 : vector<8x16xf32>
    %127 = arith.subf %123, %124 : vector<8x16xf32>
    %128 = math.exp %127 : vector<8x16xf32>
    %129 = arith.mulf %116, %126 : vector<8x16xf32>
    %130 = arith.addf %129, %128 : vector<8x16xf32>
    %131 = arith.mulf %120, %126 : vector<8x16xf32>
    %cst_27 = arith.constant 2.000000e+00 : f32
    %132 = vector.broadcast %cst_27 : f32 to vector<8x16xf32>
    %133 = arith.mulf %128, %132 : vector<8x16xf32>
    %134 = arith.addf %131, %133 : vector<8x16xf32>
    %135 = vector.extract_strided_slice %33 {offsets = [0, 0, 7], sizes = [8, 32, 16], strides = [1, 1, 1]} : vector<8x32x23xf32> to vector<8x32x16xf32>
    %136 = arith.mulf %15, %135 : vector<8x32x16xf32>
    %cst_28 = arith.constant dense<0.000000e+00> : vector<8x16xf32>
    %137 = vector.multi_reduction <add>, %136, %cst_28 [1] : vector<8x32x16xf32> to vector<8x16xf32>
    %138 = arith.maximumf %124, %137 : vector<8x16xf32>
    %139 = arith.subf %124, %138 : vector<8x16xf32>
    %140 = math.exp %139 : vector<8x16xf32>
    %141 = arith.subf %137, %138 : vector<8x16xf32>
    %142 = math.exp %141 : vector<8x16xf32>
    %143 = arith.mulf %130, %140 : vector<8x16xf32>
    %144 = arith.addf %143, %142 : vector<8x16xf32>
    %145 = arith.mulf %134, %140 : vector<8x16xf32>
    %cst_29 = arith.constant 3.000000e+00 : f32
    %146 = vector.broadcast %cst_29 : f32 to vector<8x16xf32>
    %147 = arith.mulf %142, %146 : vector<8x16xf32>
    %148 = arith.addf %145, %147 : vector<8x16xf32>
    %149 = tpu.reciprocal %144 {approx = true} : vector<8x16xf32> -> vector<8x16xf32>
    %150 = arith.mulf %148, %149 : vector<8x16xf32>
    %c0_30 = arith.constant 0 : index
    %c0_31 = arith.constant 0 : index
    %151 = vector.load %arg5[%c0_30, %c0_31] : memref<8x1xf32, #tpu.memory_space<vmem>>, vector<8x1xf32>
    %152 = vector.broadcast %151 : vector<8x1xf32> to vector<8x16xf32>
    %153 = arith.mulf %150, %152 : vector<8x16xf32>
    %c0_32 = arith.constant 0 : index
    %c0_33 = arith.constant 0 : index
    %154 = vector.load %arg6[%c0_32, %c0_33] : memref<8x16xf32, #tpu.memory_space<vmem>>, vector<8x16xf32>
    tpu.vector_store %arg6[%c0_32, %c0_33], %153 {strides = array<i32>} : memref<8x16xf32, #tpu.memory_space<vmem>>, vector<8x16xf32>,
    return
  }
  func.func @transform_0(%arg0: i32) -> (i32, i32, i32) {
    %c0_i32 = arith.constant 0 : i32
    %c0_i32_0 = arith.constant 0 : i32
    %c0_i32_1 = arith.constant 0 : i32
    return %arg0, %c0_i32, %c0_i32_0 : i32, i32, i32
  }
  func.func @transform_1(%arg0: i32) -> (i32, i32, i32) {
    %c0_i32 = arith.constant 0 : i32
    %c0_i32_0 = arith.constant 0 : i32
    %c0_i32_1 = arith.constant 0 : i32
    return %arg0, %c0_i32, %c0_i32_0 : i32, i32, i32
  }
  func.func @transform_2(%arg0: i32) -> (i32, i32) {
    %c0_i32 = arith.constant 0 : i32
    %c0_i32_0 = arith.constant 0 : i32
    %c0_i32_1 = arith.constant 0 : i32
    return %c0_i32, %c0_i32_0 : i32, i32
  }
  func.func @transform_3(%arg0: i32) -> (i32, i32) {
    %c0_i32 = arith.constant 0 : i32
    %c0_i32_0 = arith.constant 0 : i32
    %c0_i32_1 = arith.constant 0 : i32
    return %c0_i32, %c0_i32_0 : i32, i32
  }
  func.func @transform_4(%arg0: i32) -> (i32, i32) {
    %c0_i32 = arith.constant 0 : i32
    %c0_i32_0 = arith.constant 0 : i32
    return %arg0, %c0_i32 : i32, i32
  }
  func.func @transform_5(%arg0: i32) -> (i32, i32) {
    %c0_i32 = arith.constant 0 : i32
    %c0_i32_0 = arith.constant 0 : i32
    return %arg0, %c0_i32 : i32, i32
  }
}

</mosaic_0001>

<llo_original>
// kernel: bnn_forward.4
$region0: #{bnn_forward.4}
  #allocation0 [shape = 'u32[]', space=smem, size = 0x4, offset = 0x4, fixed_abs, tag = 'smem constant byte address 0x4 - core index']
  #allocation1 [shape = 'u32[144,128]{1,0:T(1,128)}', space=vmem, size = 0x12000, scoped, tag = 'internal scratch']
  %s0 = inlined_call_operand.vmem [shape: f32[512,32], index: 0, kind: input, shape index: {}]
  %s1 = inlined_call_operand.vmem [shape: f32[32,32], index: 1, kind: input, shape index: {}]
  %s2 = inlined_call_operand.vmem [shape: f32[1,32], index: 2, kind: input, shape index: {}]
  %s3 = inlined_call_operand.vmem [shape: bf16[512,32], index: 3, kind: output, shape index: {0}]
  %s4 = inlined_call_operand.vmem [shape: f32[1,32], index: 4, kind: output, shape index: {1}]
  %s5 = inlined_call_operand.vmem [shape: f32[1,32], index: 5, kind: output, shape index: {2}]
  %6 = xla_tuple %s3, %s4, %s5
  %s7 = sld [smem:[#allocation0]]
  $region65: #{bnn_forward.4} parent=0
    _
  %s9 = ssub.s32 1, %s7
  %s10 = scalar_select 0, %s9, %s7
  loop: start=0, step=1, limit=4
  $region2: #{bnn_forward.4} parent=0 // loop_pre_header
    _
  $region3: #{bnn_forward.4} parent=0 // loop_header
    %s12 = sphi 0, %s16
    %p13 = scmp.ge.s32.totalorder %s12, 4
    %s22 = sphi 0, %s24
    %s25 = sphi 0, %s22
    %s26 = sphi 0, %s25
    %s42 = sphi 0, %s26
    %s46 = sphi 0, %s46
    %s48 = sphi 0, %s46
    %s49 = sphi 0, %s48
    %s63 = sphi 0, %s49
    %s67 = sphi 0, %s67
    %s69 = sphi 0, %s67
    %s70 = sphi 0, %s69
    %s84 = sphi 0, %s70
    %s90 = sphi 0, %s92
    %s93 = sphi 0, %s90
    %s94 = sphi 0, %s93
    %s110 = sphi 0, %s94
    %s114 = sphi 0, %s114
    %s116 = sphi 0, %s114
    %s117 = sphi 0, %s116
    %s131 = sphi 0, %s117
    %s135 = sphi 0, %s135
    %s137 = sphi 0, %s135
    %s138 = sphi 0, %s137
    %s152 = sphi 0, %s138
  $region4: #{bnn_forward.4} parent=0 // loop_header_branch
    %15 = sbr.rel (%p13) target = $region8
  $region5: #{bnn_forward.4} parent=0 // loop_body
    %s17 = ssub.s32 %s12, 1
    %s18 = ssub.s32 %s12, 2
    %s19 = sadd.s32 %s12, 1
    %s20 = ssub.s32 %s12, %s19
    %p21 = scmp.eq.s32.totalorder %s20, 0
    %s23 = sadd.s32 %s22, 1
    %s24 = scalar_select %p21, %s22, %s23
    %p27 = pneg %p21
    %p28 = scmp.eq.s32.totalorder %s12, 1
    %p29 = por %p27, %p28
    %p30 = scmp.ne.s32.totalorder %s22, %s25
    %p31 = scmp.eq.s32.totalorder %s12, 0
    %p32 = por %p30, %p31
    %p33 = scmp.ne.s32.totalorder %s22, %s25
    %p34 = scmp.eq.s32.totalorder %s17, 1
    %p35 = por %p33, %p34
    %p36 = scmp.ne.s32.totalorder %s25, %s26
    %p37 = scmp.eq.s32.totalorder %s17, 0
    %p38 = por %p36, %p37
    %p39 = scmp.ne.s32.totalorder %s25, %s26
    %p40 = scmp.eq.s32.totalorder %s18, 1
    %p41 = por %p39, %p40
    %p43 = scmp.ne.s32.totalorder %s26, %s42
    %p44 = scmp.eq.s32.totalorder %s18, 0
    %p45 = por %p43, %p44
    %s47 = sadd.s32 %s46, 1
    %p50 = scmp.eq.s32.totalorder %s12, 1
    %p51 = scmp.ne.s32.totalorder %s46, %s48
    %p52 = scmp.eq.s32.totalorder %s12, 0
    %p53 = por %p51, %p52
    %p54 = scmp.ne.s32.totalorder %s46, %s48
    %p55 = scmp.eq.s32.totalorder %s17, 1
    %p56 = por %p54, %p55
    %p57 = scmp.ne.s32.totalorder %s48, %s49
    %p58 = scmp.eq.s32.totalorder %s17, 0
    %p59 = por %p57, %p58
    %p60 = scmp.ne.s32.totalorder %s48, %s49
    %p61 = scmp.eq.s32.totalorder %s18, 1
    %p62 = por %p60, %p61
    %p64 = scmp.ne.s32.totalorder %s49, %s63
    %p65 = scmp.eq.s32.totalorder %s18, 0
    %p66 = por %p64, %p65
    %s68 = sadd.s32 %s67, 1
    %p71 = scmp.eq.s32.totalorder %s12, 1
    %p72 = scmp.ne.s32.totalorder %s67, %s69
    %p73 = scmp.eq.s32.totalorder %s12, 0
    %p74 = por %p72, %p73
    %p75 = scmp.ne.s32.totalorder %s67, %s69
    %p76 = scmp.eq.s32.totalorder %s17, 1
    %p77 = por %p75, %p76
    %p78 = scmp.ne.s32.totalorder %s69, %s70
    %p79 = scmp.eq.s32.totalorder %s17, 0
    %p80 = por %p78, %p79
    %p81 = scmp.ne.s32.totalorder %s69, %s70
    %p82 = scmp.eq.s32.totalorder %s18, 1
    %p83 = por %p81, %p82
    %p85 = scmp.ne.s32.totalorder %s70, %s84
    %p86 = scmp.eq.s32.totalorder %s18, 0
    %p87 = por %p85, %p86
    %s88 = ssub.s32 %s12, %s19
    %p89 = scmp.eq.s32.totalorder %s88, 0
    %s91 = sadd.s32 %s90, 1
    %s92 = scalar_select %p89, %s90, %s91
    %p95 = pneg %p89
    %p96 = scmp.eq.s32.totalorder %s12, 1
    %p97 = por %p95, %p96
    %p98 = scmp.ne.s32.totalorder %s90, %s93
    %p99 = scmp.eq.s32.totalorder %s12, 0
    %p100 = por %p98, %p99
    %p101 = scmp.ne.s32.totalorder %s90, %s93
    %p102 = scmp.eq.s32.totalorder %s17, 1
    %p103 = por %p101, %p102
    %p104 = scmp.ne.s32.totalorder %s93, %s94
    %p105 = scmp.eq.s32.totalorder %s17, 0
    %p106 = por %p104, %p105
    %p107 = scmp.ne.s32.totalorder %s93, %s94
    %p108 = scmp.eq.s32.totalorder %s18, 1
    %p109 = por %p107, %p108
    %p111 = scmp.ne.s32.totalorder %s94, %s110
    %p112 = scmp.eq.s32.totalorder %s18, 0
    %p113 = por %p111, %p112
    %s115 = sadd.s32 %s114, 1
    %p118 = scmp.eq.s32.totalorder %s12, 1
    %p119 = scmp.ne.s32.totalorder %s114, %s116
    %p120 = scmp.eq.s32.totalorder %s12, 0
    %p121 = por %p119, %p120
    %p122 = scmp.ne.s32.totalorder %s114, %s116
    %p123 = scmp.eq.s32.totalorder %s17, 1
    %p124 = por %p122, %p123
    %p125 = scmp.ne.s32.totalorder %s116, %s117
    %p126 = scmp.eq.s32.totalorder %s17, 0
    %p127 = por %p125, %p126
    %p128 = scmp.ne.s32.totalorder %s116, %s117
    %p129 = scmp.eq.s32.totalorder %s18, 1
    %p130 = por %p128, %p129
    %p132 = scmp.ne.s32.totalorder %s117, %s131
    %p133 = scmp.eq.s32.totalorder %s18, 0
    %p134 = por %p132, %p133
    %s136 = sadd.s32 %s135, 1
    %p139 = scmp.eq.s32.totalorder %s12, 1
    %p140 = scmp.ne.s32.totalorder %s135, %s137
    %p141 = scmp.eq.s32.totalorder %s12, 0
    %p142 = por %p140, %p141
    %p143 = scmp.ne.s32.totalorder %s135, %s137
    %p144 = scmp.eq.s32.totalorder %s17, 1
    %p145 = por %p143, %p144
    %p146 = scmp.ne.s32.totalorder %s137, %s138
    %p147 = scmp.eq.s32.totalorder %s17, 0
    %p148 = por %p146, %p147
    %p149 = scmp.ne.s32.totalorder %s137, %s138
    %p150 = scmp.eq.s32.totalorder %s18, 1
    %p151 = por %p149, %p150
    %p153 = scmp.ne.s32.totalorder %s138, %s152
    %p154 = scmp.eq.s32.totalorder %s18, 0
    %p155 = por %p153, %p154
    %p156 = scmp.le.s32.totalorder 1, %s12
    %p157 = scmp.lt.s32.totalorder %s12, 3
    %p158 = pnand %p156, %p157
    %p159 = pneg %p158
    // Predicated region
    $region9: #{bnn_forward.4} parent=5 // pred_check
      _
    $region10: #{bnn_forward.4} parent=5 // pred_check_branch
      %161 = sbr.rel (%p158) target = $region12
    $region11: #{bnn_forward.4} parent=5 // pred_region
      %s162 = ssub.s32 %s12, 1
      // Predicated region
      $region13: #{bnn_forward.4} parent=11 // pred_check
        %p163 = pneg %p59
      $region14: #{bnn_forward.4} parent=11 // pred_check_branch
        %165 = sbr.rel (%p163) target = $region16
      $region15: #{bnn_forward.4} parent=11 // pred_region
        _
      $region16: #{bnn_forward.4} parent=11 // pred_fallthru
        _
      // Predicated region
      $region17: #{bnn_forward.4} parent=11 // pred_check
        %p166 = pneg %p80
      $region18: #{bnn_forward.4} parent=11 // pred_check_branch
        %168 = sbr.rel (%p166) target = $region20
      $region19: #{bnn_forward.4} parent=11 // pred_region
        _
      $region20: #{bnn_forward.4} parent=11 // pred_fallthru
        _
    $region12: #{bnn_forward.4} parent=5 // pred_fallthru
      _
    %p169 = scmp.lt.s32.totalorder %s12, 2
    // Predicated region
    $region21: #{bnn_forward.4} parent=5 // pred_check
      %p170 = pneg %p169
    $region22: #{bnn_forward.4} parent=5 // pred_check_branch
      %172 = sbr.rel (%p170) target = $region24
    $region23: #{bnn_forward.4} parent=5 // pred_region
      // Predicated region
      $region25: #{bnn_forward.4} parent=23 // pred_check
        %p173 = pneg %p32
      $region26: #{bnn_forward.4} parent=23 // pred_check_branch
        %175 = sbr.rel (%p173) target = $region28
      $region27: #{bnn_forward.4} parent=23 // pred_region
        %s176 = smul.u32 32, %s12
        %p177 = scmp.lt.s32.totalorder %s176, 63
        %s178 = scalar_select %p177, %s176, 63
        %s179 = smul.addr %s178, 8
        %s180 = scalar_lea.vmem %s0, %s179
        %s181 = smul.u32 32, %s12
      $region28: #{bnn_forward.4} parent=23 // pred_fallthru
        _
    $region24: #{bnn_forward.4} parent=5 // pred_fallthru
      _
    %p182 = scmp.le.s32.totalorder 1, %s12
    %p183 = scmp.lt.s32.totalorder %s12, 3
    %p184 = pnand %p182, %p183
    %p185 = pneg %p184
    // Predicated region
    $region29: #{bnn_forward.4} parent=5 // pred_check
      _
    $region30: #{bnn_forward.4} parent=5 // pred_check_branch
      %187 = sbr.rel (%p184) target = $region32
    $region31: #{bnn_forward.4} parent=5 // pred_region
      %s188 = ssub.s32 %s12, 1
      %s189 = smul.u32 32, %s17
      %p190 = scmp.lt.s32.totalorder %s189, 63
      %s191 = scalar_select %p190, %s189, 63
      %s192 = smul.addr %s191, 8
      %s193 = scalar_lea.vmem %s0, %s192
      %p194 = pneg %p38
      %p195 = pneg %p35
      %p196 = pneg %p59
      %p197 = pneg %p56
      %p198 = pneg %p80
      %p199 = pneg %p77
      %p200 = pneg %p106
      %p201 = pneg %p103
      %s202 = smul.u32 32, %s17
      %p203 = scmp.lt.s32.totalorder %s202, 63
      %s204 = scalar_select %p203, %s202, 63
      %s205 = smul.addr %s204, 4
      %s206 = scalar_lea.vmem %s3, %s205
      %p207 = pneg %p127
      %p208 = pneg %p124
      %p209 = pneg %p148
      %p210 = pneg %p145
      %s211 = smul.u32 32, %s17
      %p212 = scmp.lt.s32.totalorder %s211, 63
      %s213 = scalar_select %p212, %s211, 63
      %s214 = smul.addr %s213, 8
      %s215 = scalar_lea.vmem %s0, %s214
      %s216 = smul.u32 32, %s17
      %s217 = smul.u32 32, %s17
      %p218 = scmp.lt.s32.totalorder %s217, 63
      %s219 = scalar_select %p218, %s217, 63
      %s220 = smul.addr %s219, 4
      %s221 = scalar_lea.vmem %s3, %s220
      %s222 = smul.u32 32, %s17
      %p223 = scmp.eq.s32.totalorder %s17, 0
      // Predicated region
      $region33: #{bnn_forward.4} parent=31 // pred_check
        %p224 = pneg %p223
      $region34: #{bnn_forward.4} parent=31 // pred_check_branch
        %226 = sbr.rel (%p224) target = $region36
      $region35: #{bnn_forward.4} parent=31 // pred_region
        %vm227 = vcmask 253952
        %228 = vst.msk [vmem:[%s4] sm:$0x1] %vm227, 0.0
        %229 = vst.msk [vmem:[%s5] sm:$0x1] %vm227, 0.0
      $region36: #{bnn_forward.4} parent=31 // pred_fallthru
        _
      %v230 = vld [vmem:[%s215] sm:$0xff]
      %v231 = vld [vmem:[%s215 + $0x8] sm:$0xff]
      %v232 = vld [vmem:[%s215 + $0x10] sm:$0xff]
      %v233 = vld [vmem:[%s215 + $0x18] sm:$0xff]
      %v234 = vld [vmem:[%s215 + $0x20] sm:$0xff]
      %v235 = vld [vmem:[%s215 + $0x28] sm:$0xff]
      %v236 = vld [vmem:[%s215 + $0x30] sm:$0xff]
      %v237 = vld [vmem:[%s215 + $0x38] sm:$0xff]
      %v238 = vld [vmem:[%s215 + $0x40] sm:$0xff]
      %v239 = vld [vmem:[%s215 + $0x48] sm:$0xff]
      %v240 = vld [vmem:[%s215 + $0x50] sm:$0xff]
      %v241 = vld [vmem:[%s215 + $0x58] sm:$0xff]
      %v242 = vld [vmem:[%s215 + $0x60] sm:$0xff]
      %v243 = vld [vmem:[%s215 + $0x68] sm:$0xff]
      %v244 = vld [vmem:[%s215 + $0x70] sm:$0xff]
      %v245 = vld [vmem:[%s215 + $0x78] sm:$0xff]
      %v246 = vld [vmem:[%s215 + $0x80] sm:$0xff]
      %v247 = vld [vmem:[%s215 + $0x88] sm:$0xff]
      %v248 = vld [vmem:[%s215 + $0x90] sm:$0xff]
      %v249 = vld [vmem:[%s215 + $0x98] sm:$0xff]
      %v250 = vld [vmem:[%s215 + $0xa0] sm:$0xff]
      %v251 = vld [vmem:[%s215 + $0xa8] sm:$0xff]
      %v252 = vld [vmem:[%s215 + $0xb0] sm:$0xff]
      %v253 = vld [vmem:[%s215 + $0xb8] sm:$0xff]
      %v254 = vld [vmem:[%s215 + $0xc0] sm:$0xff]
      %v255 = vld [vmem:[%s215 + $0xc8] sm:$0xff]
      %v256 = vld [vmem:[%s215 + $0xd0] sm:$0xff]
      %v257 = vld [vmem:[%s215 + $0xd8] sm:$0xff]
      %v258 = vld [vmem:[%s215 + $0xe0] sm:$0xff]
      %v259 = vld [vmem:[%s215 + $0xe8] sm:$0xff]
      %v260 = vld [vmem:[%s215 + $0xf0] sm:$0xff]
      %v261 = vld [vmem:[%s215 + $0xf8] sm:$0xff]
      %v262 = vld [vmem:[%s1] sm:$0xff]
      %v263 = vld [vmem:[%s1 + $0x8] sm:$0xff]
      %v264 = vld [vmem:[%s1 + $0x10] sm:$0xff]
      %v265 = vld [vmem:[%s1 + $0x18] sm:$0xff]
      %v266 = vld [vmem:[%s2] sm:$0x1]
      %v268 = vlaneseq
      %v269 = vshrl.u32 %v268, 7
      %v270 = vsub.s32 0, %v269
      %v271 = vrot.slane %v266, %v270
      %vm273 = vcmask 261120
      %v275 = vsel %vm273, %v230, 0
      %v278 = vsel %vm273, %v231, 0
      %v281 = vsel %vm273, %v232, 0
      %v284 = vsel %vm273, %v233, 0
      %v287 = vsel %vm273, %v234, 0
      %v290 = vsel %vm273, %v235, 0
      %v293 = vsel %vm273, %v236, 0
      %v296 = vsel %vm273, %v237, 0
      %v299 = vsel %vm273, %v238, 0
      %v302 = vsel %vm273, %v239, 0
      %v305 = vsel %vm273, %v240, 0
      %v308 = vsel %vm273, %v241, 0
      %v311 = vsel %vm273, %v242, 0
      %v314 = vsel %vm273, %v243, 0
      %v317 = vsel %vm273, %v244, 0
      %v320 = vsel %vm273, %v245, 0
      %v323 = vsel %vm273, %v246, 0
      %v326 = vsel %vm273, %v247, 0
      %v329 = vsel %vm273, %v248, 0
      %v332 = vsel %vm273, %v249, 0
      %v335 = vsel %vm273, %v250, 0
      %v338 = vsel %vm273, %v251, 0
      %v341 = vsel %vm273, %v252, 0
      %v344 = vsel %vm273, %v253, 0
      %v347 = vsel %vm273, %v254, 0
      %v350 = vsel %vm273, %v255, 0
      %v353 = vsel %vm273, %v256, 0
      %v356 = vsel %vm273, %v257, 0
      %v359 = vsel %vm273, %v258, 0
      %v362 = vsel %vm273, %v259, 0
      %v365 = vsel %vm273, %v260, 0
      %v368 = vsel %vm273, %v261, 0
      %370 = vmatprep.subr.mxu0 0.0
      %371 = vmatpush1.msra.mxu0 %v262
      %372 = vmatprep.subr.mxu0 0.0
      %373 = vmatpush1.msra.mxu0 %v263
      %374 = vmatprep.subr.mxu0 0.0
      %375 = vmatpush1.msra.mxu0 %v264
      %376 = vmatprep.subr.mxu0 0.0
      %377 = vmatpush1.msra.mxu0 %v265
      %378 = vmatprep.subr.mxu0 0.0
      %379 = vmatpush1.msra.mxu0 0.0
      %380 = vmatprep.subr.mxu0 0.0
      %381 = vmatpush1.msra.mxu0 0.0
      %382 = vmatprep.subr.mxu0 0.0
      %383 = vmatpush1.msra.mxu0 0.0
      %384 = vmatprep.subr.mxu0 0.0
      %385 = vmatpush1.msra.mxu0 0.0
      %386 = vmatprep.subr.mxu0 0.0
      %387 = vmatpush1.msra.mxu0 0.0
      %388 = vmatprep.subr.mxu0 0.0
      %389 = vmatpush1.msra.mxu0 0.0
      %390 = vmatprep.subr.mxu0 0.0
      %391 = vmatpush1.msra.mxu0 0.0
      %392 = vmatprep.subr.mxu0 0.0
      %393 = vmatpush1.msra.mxu0 0.0
      %394 = vmatprep.subr.mxu0 0.0
      %395 = vmatpush1.msra.mxu0 0.0
      %396 = vmatprep.subr.mxu0 0.0
      %397 = vmatpush1.msra.mxu0 0.0
      %398 = vmatprep.subr.mxu0 0.0
      %399 = vmatpush1.msra.mxu0 0.0
      %400 = vmatprep.subr.mxu0 0.0
      %401 = vmatpush1.msra.mxu0 0.0
      %402 = vmatprep.subr.mxu0 0.0
      %403 = vmatpush1.msra.mxu0 0.0
      %404 = vmatprep.subr.mxu0 0.0
      %405 = vmatpush1.msra.mxu0 0.0
      %406 = vmatprep.subr.mxu0 0.0
      %407 = vmatpush1.msra.mxu0 0.0
      %408 = vmatprep.subr.mxu0 0.0
      %409 = vmatpush1.msra.mxu0 0.0
      %410 = vmatprep.subr.mxu0 0.0
      %411 = vmatpush1.msra.mxu0 0.0
      %412 = vmatprep.subr.mxu0 0.0
      %413 = vmatpush1.msra.mxu0 0.0
      %414 = vmatprep.subr.mxu0 0.0
      %415 = vmatpush1.msra.mxu0 0.0
      %416 = vmatprep.subr.mxu0 0.0
      %417 = vmatpush1.msra.mxu0 0.0
      %418 = vmatprep.subr.mxu0 0.0
      %419 = vmatpush1.msra.mxu0 0.0
      %420 = vmatprep.subr.mxu0 0.0
      %421 = vmatpush1.msra.mxu0 0.0
      %422 = vmatprep.subr.mxu0 0.0
      %423 = vmatpush1.msra.mxu0 0.0
      %424 = vmatprep.subr.mxu0 0.0
      %425 = vmatpush1.msra.mxu0 0.0
      %426 = vmatprep.subr.mxu0 0.0
      %427 = vmatpush1.msra.mxu0 0.0
      %428 = vmatprep.subr.mxu0 0.0
      %429 = vmatpush1.msra.mxu0 0.0
      %430 = vmatprep.subr.mxu0 0.0
      %431 = vmatpush1.msra.mxu0 0.0
      %432 = vmatprep.subr.mxu0 0.0
      %433 = vmatpush1.msra.mxu0 0.0
      %434 = vmatprep.mubr.f32.mxu0 0.0
      %435 = vmatmul.mubr.f32.gmra.mrb[0].mxu0 %v275
      %v436 = vpop.f32.mrb[0].mxu0
      %v437 = vadd.f32 %v271, %v436
      %v438 = vpop.f32.mrb[0].mxu0
      %439 = vmatprep.mubr.f32.mxu0 0.0
      %440 = vmatmul.mubr.f32.gmra.mrb[0].mxu0 %v278
      %v441 = vpop.f32.mrb[0].mxu0
      %v442 = vadd.f32 %v271, %v441
      %v443 = vpop.f32.mrb[0].mxu0
      %444 = vmatprep.mubr.f32.mxu0 0.0
      %445 = vmatmul.mubr.f32.gmra.mrb[0].mxu0 %v281
      %v446 = vpop.f32.mrb[0].mxu0
      %v447 = vadd.f32 %v271, %v446
      %v448 = vpop.f32.mrb[0].mxu0
      %449 = vmatprep.mubr.f32.mxu0 0.0
      %450 = vmatmul.mubr.f32.gmra.mrb[0].mxu0 %v284
      %v451 = vpop.f32.mrb[0].mxu0
      %v452 = vadd.f32 %v271, %v451
      %v453 = vpop.f32.mrb[0].mxu0
      %454 = vmatprep.mubr.f32.mxu0 0.0
      %455 = vmatmul.mubr.f32.gmra.mrb[0].mxu0 %v287
      %v456 = vpop.f32.mrb[0].mxu0
      %v457 = vadd.f32 %v271, %v456
      %v458 = vpop.f32.mrb[0].mxu0
      %459 = vmatprep.mubr.f32.mxu0 0.0
      %460 = vmatmul.mubr.f32.gmra.mrb[0].mxu0 %v290
      %v461 = vpop.f32.mrb[0].mxu0
      %v462 = vadd.f32 %v271, %v461
      %v463 = vpop.f32.mrb[0].mxu0
      %464 = vmatprep.mubr.f32.mxu0 0.0
      %465 = vmatmul.mubr.f32.gmra.mrb[0].mxu0 %v293
      %v466 = vpop.f32.mrb[0].mxu0
      %v467 = vadd.f32 %v271, %v466
      %v468 = vpop.f32.mrb[0].mxu0
      %469 = vmatprep.mubr.f32.mxu0 0.0
      %470 = vmatmul.mubr.f32.gmra.mrb[0].mxu0 %v296
      %v471 = vpop.f32.mrb[0].mxu0
      %v472 = vadd.f32 %v271, %v471
      %v473 = vpop.f32.mrb[0].mxu0
      %474 = vmatprep.mubr.f32.mxu0 0.0
      %475 = vmatmul.mubr.f32.gmra.mrb[0].mxu0 %v299
      %v476 = vpop.f32.mrb[0].mxu0
      %v477 = vadd.f32 %v271, %v476
      %v478 = vpop.f32.mrb[0].mxu0
      %479 = vmatprep.mubr.f32.mxu0 0.0
      %480 = vmatmul.mubr.f32.gmra.mrb[0].mxu0 %v302
      %v481 = vpop.f32.mrb[0].mxu0
      %v482 = vadd.f32 %v271, %v481
      %v483 = vpop.f32.mrb[0].mxu0
      %484 = vmatprep.mubr.f32.mxu0 0.0
      %485 = vmatmul.mubr.f32.gmra.mrb[0].mxu0 %v305
      %v486 = vpop.f32.mrb[0].mxu0
      %v487 = vadd.f32 %v271, %v486
      %v488 = vpop.f32.mrb[0].mxu0
      %489 = vmatprep.mubr.f32.mxu0 0.0
      %490 = vmatmul.mubr.f32.gmra.mrb[0].mxu0 %v308
      %v491 = vpop.f32.mrb[0].mxu0
      %v492 = vadd.f32 %v271, %v491
      %v493 = vpop.f32.mrb[0].mxu0
      %494 = vmatprep.mubr.f32.mxu0 0.0
      %495 = vmatmul.mubr.f32.gmra.mrb[0].mxu0 %v311
      %v496 = vpop.f32.mrb[0].mxu0
      %v497 = vadd.f32 %v271, %v496
      %v498 = vpop.f32.mrb[0].mxu0
      %499 = vmatprep.mubr.f32.mxu0 0.0
      %500 = vmatmul.mubr.f32.gmra.mrb[0].mxu0 %v314
      %v501 = vpop.f32.mrb[0].mxu0
      %v502 = vadd.f32 %v271, %v501
      %v503 = vpop.f32.mrb[0].mxu0
      %504 = vmatprep.mubr.f32.mxu0 0.0
      %505 = vmatmul.mubr.f32.gmra.mrb[0].mxu0 %v317
      %v506 = vpop.f32.mrb[0].mxu0
      %v507 = vadd.f32 %v271, %v506
      %v508 = vpop.f32.mrb[0].mxu0
      %509 = vmatprep.mubr.f32.mxu0 0.0
      %510 = vmatmul.mubr.f32.gmra.mrb[0].mxu0 %v320
      %v511 = vpop.f32.mrb[0].mxu0
      %v512 = vadd.f32 %v271, %v511
      %v513 = vpop.f32.mrb[0].mxu0
      %514 = vmatprep.mubr.f32.mxu0 0.0
      %515 = vmatmul.mubr.f32.gmra.mrb[0].mxu0 %v323
      %v516 = vpop.f32.mrb[0].mxu0
      %v517 = vadd.f32 %v271, %v516
      %v518 = vpop.f32.mrb[0].mxu0
      %519 = vmatprep.mubr.f32.mxu0 0.0
      %520 = vmatmul.mubr.f32.gmra.mrb[0].mxu0 %v326
      %v521 = vpop.f32.mrb[0].mxu0
      %v522 = vadd.f32 %v271, %v521
      %v523 = vpop.f32.mrb[0].mxu0
      %524 = vmatprep.mubr.f32.mxu0 0.0
      %525 = vmatmul.mubr.f32.gmra.mrb[0].mxu0 %v329
      %v526 = vpop.f32.mrb[0].mxu0
      %v527 = vadd.f32 %v271, %v526
      %v528 = vpop.f32.mrb[0].mxu0
      %529 = vmatprep.mubr.f32.mxu0 0.0
      %530 = vmatmul.mubr.f32.gmra.mrb[0].mxu0 %v332
      %v531 = vpop.f32.mrb[0].mxu0
      %v532 = vadd.f32 %v271, %v531
      %v533 = vpop.f32.mrb[0].mxu0
      %534 = vmatprep.mubr.f32.mxu0 0.0
      %535 = vmatmul.mubr.f32.gmra.mrb[0].mxu0 %v335
      %v536 = vpop.f32.mrb[0].mxu0
      %v537 = vadd.f32 %v271, %v536
      %v538 = vpop.f32.mrb[0].mxu0
      %539 = vmatprep.mubr.f32.mxu0 0.0
      %540 = vmatmul.mubr.f32.gmra.mrb[0].mxu0 %v338
      %v541 = vpop.f32.mrb[0].mxu0
      %v542 = vadd.f32 %v271, %v541
      %v543 = vpop.f32.mrb[0].mxu0
      %544 = vmatprep.mubr.f32.mxu0 0.0
      %545 = vmatmul.mubr.f32.gmra.mrb[0].mxu0 %v341
      %v546 = vpop.f32.mrb[0].mxu0
      %v547 = vadd.f32 %v271, %v546
      %v548 = vpop.f32.mrb[0].mxu0
      %549 = vmatprep.mubr.f32.mxu0 0.0
      %550 = vmatmul.mubr.f32.gmra.mrb[0].mxu0 %v344
      %v551 = vpop.f32.mrb[0].mxu0
      %v552 = vadd.f32 %v271, %v551
      %v553 = vpop.f32.mrb[0].mxu0
      %554 = vmatprep.mubr.f32.mxu0 0.0
      %555 = vmatmul.mubr.f32.gmra.mrb[0].mxu0 %v347
      %v556 = vpop.f32.mrb[0].mxu0
      %v557 = vadd.f32 %v271, %v556
      %v558 = vpop.f32.mrb[0].mxu0
      %559 = vmatprep.mubr.f32.mxu0 0.0
      %560 = vmatmul.mubr.f32.gmra.mrb[0].mxu0 %v350
      %v561 = vpop.f32.mrb[0].mxu0
      %v562 = vadd.f32 %v271, %v561
      %v563 = vpop.f32.mrb[0].mxu0
      %564 = vmatprep.mubr.f32.mxu0 0.0
      %565 = vmatmul.mubr.f32.gmra.mrb[0].mxu0 %v353
      %v566 = vpop.f32.mrb[0].mxu0
      %v567 = vadd.f32 %v271, %v566
      %v568 = vpop.f32.mrb[0].mxu0
      %569 = vmatprep.mubr.f32.mxu0 0.0
      %570 = vmatmul.mubr.f32.gmra.mrb[0].mxu0 %v356
      %v571 = vpop.f32.mrb[0].mxu0
      %v572 = vadd.f32 %v271, %v571
      %v573 = vpop.f32.mrb[0].mxu0
      %574 = vmatprep.mubr.f32.mxu0 0.0
      %575 = vmatmul.mubr.f32.gmra.mrb[0].mxu0 %v359
      %v576 = vpop.f32.mrb[0].mxu0
      %v577 = vadd.f32 %v271, %v576
      %v578 = vpop.f32.mrb[0].mxu0
      %579 = vmatprep.mubr.f32.mxu0 0.0
      %580 = vmatmul.mubr.f32.gmra.mrb[0].mxu0 %v362
      %v581 = vpop.f32.mrb[0].mxu0
      %v582 = vadd.f32 %v271, %v581
      %v583 = vpop.f32.mrb[0].mxu0
      %584 = vmatprep.mubr.f32.mxu0 0.0
      %585 = vmatmul.mubr.f32.gmra.mrb[0].mxu0 %v365
      %v586 = vpop.f32.mrb[0].mxu0
      %v587 = vadd.f32 %v271, %v586
      %v588 = vpop.f32.mrb[0].mxu0
      %589 = vmatprep.mubr.f32.mxu0 0.0
      %590 = vmatmul.mubr.f32.gmra.mrb[0].mxu0 %v368
      %v591 = vpop.f32.mrb[0].mxu0
      %v592 = vadd.f32 %v271, %v591
      %v593 = vpop.f32.mrb[0].mxu0
      %594 = vdwg.mxu0
      %v595 = vpack.c.bf16 %v442, %v437
      %v596 = vpack.c.bf16 %v452, %v447
      %v597 = vpack.c.bf16 %v462, %v457
      %v598 = vpack.c.bf16 %v472, %v467
      %v599 = vpack.c.bf16 %v482, %v477
      %v600 = vpack.c.bf16 %v492, %v487
      %v601 = vpack.c.bf16 %v502, %v497
      %v602 = vpack.c.bf16 %v512, %v507
      %v603 = vpack.c.bf16 %v522, %v517
      %v604 = vpack.c.bf16 %v532, %v527
      %v605 = vpack.c.bf16 %v542, %v537
      %v606 = vpack.c.bf16 %v552, %v547
      %v607 = vpack.c.bf16 %v562, %v557
      %v608 = vpack.c.bf16 %v572, %v567
      %v609 = vpack.c.bf16 %v582, %v577
      %v610 = vpack.c.bf16 %v592, %v587
      %v627 = vunpack.c.l.b16 %v595
      %v628 = vunpack.c.h.b16 %v595
      %v629 = vunpack.c.l.b16 %v596
      %v630 = vunpack.c.h.b16 %v596
      %v631 = vunpack.c.l.b16 %v597
      %v632 = vunpack.c.h.b16 %v597
      %v633 = vunpack.c.l.b16 %v598
      %v634 = vunpack.c.h.b16 %v598
      %v635 = vunpack.c.l.b16 %v599
      %v636 = vunpack.c.h.b16 %v599
      %v637 = vunpack.c.l.b16 %v600
      %v638 = vunpack.c.h.b16 %v600
      %v639 = vunpack.c.l.b16 %v601
      %v640 = vunpack.c.h.b16 %v601
      %v641 = vunpack.c.l.b16 %v602
      %v642 = vunpack.c.h.b16 %v602
      %v643 = vunpack.c.l.b16 %v603
      %v644 = vunpack.c.h.b16 %v603
      %v645 = vunpack.c.l.b16 %v604
      %v646 = vunpack.c.h.b16 %v604
      %v647 = vunpack.c.l.b16 %v605
      %v648 = vunpack.c.h.b16 %v605
      %v649 = vunpack.c.l.b16 %v606
      %v650 = vunpack.c.h.b16 %v606
      %v651 = vunpack.c.l.b16 %v607
      %v652 = vunpack.c.h.b16 %v607
      %v653 = vunpack.c.l.b16 %v608
      %v654 = vunpack.c.h.b16 %v608
      %v655 = vunpack.c.l.b16 %v609
      %v656 = vunpack.c.h.b16 %v609
      %v657 = vunpack.c.l.b16 %v610
      %v658 = vunpack.c.h.b16 %v610
      %v659 = vpack.c.b16 %v627, %v627
      %v660 = vpack.c.b16 %v628, %v628
      %v661 = vpack.c.b16 %v629, %v629
      %v662 = vpack.c.b16 %v630, %v630
      %v663 = vpack.c.b16 %v631, %v631
      %v664 = vpack.c.b16 %v632, %v632
      %v665 = vpack.c.b16 %v633, %v633
      %v666 = vpack.c.b16 %v634, %v634
      %v667 = vpack.c.b16 %v635, %v635
      %v668 = vpack.c.b16 %v636, %v636
      %v669 = vpack.c.b16 %v637, %v637
      %v670 = vpack.c.b16 %v638, %v638
      %v671 = vpack.c.b16 %v639, %v639
      %v672 = vpack.c.b16 %v640, %v640
      %v673 = vpack.c.b16 %v641, %v641
      %v674 = vpack.c.b16 %v642, %v642
      %v675 = vpack.c.b16 %v643, %v643
      %v676 = vpack.c.b16 %v644, %v644
      %v677 = vpack.c.b16 %v645, %v645
      %v678 = vpack.c.b16 %v646, %v646
      %v679 = vpack.c.b16 %v647, %v647
      %v680 = vpack.c.b16 %v648, %v648
      %v681 = vpack.c.b16 %v649, %v649
      %v682 = vpack.c.b16 %v650, %v650
      %v683 = vpack.c.b16 %v651, %v651
      %v684 = vpack.c.b16 %v652, %v652
      %v685 = vpack.c.b16 %v653, %v653
      %v686 = vpack.c.b16 %v654, %v654
      %v687 = vpack.c.b16 %v655, %v655
      %v688 = vpack.c.b16 %v656, %v656
      %v689 = vpack.c.b16 %v657, %v657
      %v690 = vpack.c.b16 %v658, %v658
      %vm723 = vcmask 257024
      %724 = vst.msk [vmem:[%s221] sm:$0xf] %vm723, %v659
      %725 = vst.msk [vmem:[%s221 + $0x4] sm:$0xf] %vm723, %v660
      %726 = vst.msk [vmem:[%s221 + $0x8] sm:$0xf] %vm723, %v661
      %727 = vst.msk [vmem:[%s221 + $0xc] sm:$0xf] %vm723, %v662
      %728 = vst.msk [vmem:[%s221 + $0x10] sm:$0xf] %vm723, %v663
      %729 = vst.msk [vmem:[%s221 + $0x14] sm:$0xf] %vm723, %v664
      %730 = vst.msk [vmem:[%s221 + $0x18] sm:$0xf] %vm723, %v665
      %731 = vst.msk [vmem:[%s221 + $0x1c] sm:$0xf] %vm723, %v666
      %732 = vst.msk [vmem:[%s221 + $0x20] sm:$0xf] %vm723, %v667
      %733 = vst.msk [vmem:[%s221 + $0x24] sm:$0xf] %vm723, %v668
      %734 = vst.msk [vmem:[%s221 + $0x28] sm:$0xf] %vm723, %v669
      %735 = vst.msk [vmem:[%s221 + $0x2c] sm:$0xf] %vm723, %v670
      %736 = vst.msk [vmem:[%s221 + $0x30] sm:$0xf] %vm723, %v671
      %737 = vst.msk [vmem:[%s221 + $0x34] sm:$0xf] %vm723, %v672
      %738 = vst.msk [vmem:[%s221 + $0x38] sm:$0xf] %vm723, %v673
      %739 = vst.msk [vmem:[%s221 + $0x3c] sm:$0xf] %vm723, %v674
      %740 = vst.msk [vmem:[%s221 + $0x40] sm:$0xf] %vm723, %v675
      %741 = vst.msk [vmem:[%s221 + $0x44] sm:$0xf] %vm723, %v676
      %742 = vst.msk [vmem:[%s221 + $0x48] sm:$0xf] %vm723, %v677
      %743 = vst.msk [vmem:[%s221 + $0x4c] sm:$0xf] %vm723, %v678
      %744 = vst.msk [vmem:[%s221 + $0x50] sm:$0xf] %vm723, %v679
      %745 = vst.msk [vmem:[%s221 + $0x54] sm:$0xf] %vm723, %v680
      %746 = vst.msk [vmem:[%s221 + $0x58] sm:$0xf] %vm723, %v681
      %747 = vst.msk [vmem:[%s221 + $0x5c] sm:$0xf] %vm723, %v682
      %748 = vst.msk [vmem:[%s221 + $0x60] sm:$0xf] %vm723, %v683
      %749 = vst.msk [vmem:[%s221 + $0x64] sm:$0xf] %vm723, %v684
      %750 = vst.msk [vmem:[%s221 + $0x68] sm:$0xf] %vm723, %v685
      %751 = vst.msk [vmem:[%s221 + $0x6c] sm:$0xf] %vm723, %v686
      %752 = vst.msk [vmem:[%s221 + $0x70] sm:$0xf] %vm723, %v687
      %753 = vst.msk [vmem:[%s221 + $0x74] sm:$0xf] %vm723, %v688
      %754 = vst.msk [vmem:[%s221 + $0x78] sm:$0xf] %vm723, %v689
      %755 = vst.msk [vmem:[%s221 + $0x7c] sm:$0xf] %vm723, %v690
      %v756 = vld [vmem:[%s4] sm:$0x1]
      %v757 = vsel %vm273, %v437, 0.0
      %v758 = vsel %vm273, %v442, 0.0
      %v759 = vadd.f32 %v757, %v758
      %v760 = vsel %vm273, %v447, 0.0
      %v761 = vadd.f32 %v759, %v760
      %v762 = vsel %vm273, %v452, 0.0
      %v763 = vadd.f32 %v761, %v762
      %v764 = vsel %vm273, %v457, 0.0
      %v765 = vadd.f32 %v763, %v764
      %v766 = vsel %vm273, %v462, 0.0
      %v767 = vadd.f32 %v765, %v766
      %v768 = vsel %vm273, %v467, 0.0
      %v769 = vadd.f32 %v767, %v768
      %v770 = vsel %vm273, %v472, 0.0
      %v771 = vadd.f32 %v769, %v770
      %v772 = vsel %vm273, %v477, 0.0
      %v773 = vadd.f32 %v771, %v772
      %v774 = vsel %vm273, %v482, 0.0
      %v775 = vadd.f32 %v773, %v774
      %v776 = vsel %vm273, %v487, 0.0
      %v777 = vadd.f32 %v775, %v776
      %v778 = vsel %vm273, %v492, 0.0
      %v779 = vadd.f32 %v777, %v778
      %v780 = vsel %vm273, %v497, 0.0
      %v781 = vadd.f32 %v779, %v780
      %v782 = vsel %vm273, %v502, 0.0
      %v783 = vadd.f32 %v781, %v782
      %v784 = vsel %vm273, %v507, 0.0
      %v785 = vadd.f32 %v783, %v784
      %v786 = vsel %vm273, %v512, 0.0
      %v787 = vadd.f32 %v785, %v786
      %v788 = vsel %vm273, %v517, 0.0
      %v789 = vadd.f32 %v787, %v788
      %v790 = vsel %vm273, %v522, 0.0
      %v791 = vadd.f32 %v789, %v790
      %v792 = vsel %vm273, %v527, 0.0
      %v793 = vadd.f32 %v791, %v792
      %v794 = vsel %vm273, %v532, 0.0
      %v795 = vadd.f32 %v793, %v794
      %v796 = vsel %vm273, %v537, 0.0
      %v797 = vadd.f32 %v795, %v796
      %v798 = vsel %vm273, %v542, 0.0
      %v799 = vadd.f32 %v797, %v798
      %v800 = vsel %vm273, %v547, 0.0
      %v801 = vadd.f32 %v799, %v800
      %v802 = vsel %vm273, %v552, 0.0
      %v803 = vadd.f32 %v801, %v802
      %v804 = vsel %vm273, %v557, 0.0
      %v805 = vadd.f32 %v803, %v804
      %v806 = vsel %vm273, %v562, 0.0
      %v807 = vadd.f32 %v805, %v806
      %v808 = vsel %vm273, %v567, 0.0
      %v809 = vadd.f32 %v807, %v808
      %v810 = vsel %vm273, %v572, 0.0
      %v811 = vadd.f32 %v809, %v810
      %v812 = vsel %vm273, %v577, 0.0
      %v813 = vadd.f32 %v811, %v812
      %v814 = vsel %vm273, %v582, 0.0
      %v815 = vadd.f32 %v813, %v814
      %v816 = vsel %vm273, %v587, 0.0
      %v817 = vadd.f32 %v815, %v816
      %v818 = vsel %vm273, %v592, 0.0
      %v819 = vadd.f32 %v817, %v818
      %v820 = vrot.slane %v819, 4
      %v821 = vadd.f32 %v819, %v820
      %v822 = vrot.slane %v821, 2
      %v823 = vadd.f32 %v821, %v822
      %v824 = vrot.slane %v823, 1
      %v825 = vadd.f32 %v823, %v824
      %v826 = vadd.f32 %v756, %v825
      %vm827 = vcmask 253952
      %828 = vst.msk [vmem:[%s4] sm:$0x1] %vm827, %v826
      %v829 = vld [vmem:[%s5] sm:$0x1]
      %v830 = vmul.f32 %v437, %v437
      %v831 = vmul.f32 %v442, %v442
      %v832 = vmul.f32 %v447, %v447
      %v833 = vmul.f32 %v452, %v452
      %v834 = vmul.f32 %v457, %v457
      %v835 = vmul.f32 %v462, %v462
      %v836 = vmul.f32 %v467, %v467
      %v837 = vmul.f32 %v472, %v472
      %v838 = vmul.f32 %v477, %v477
      %v839 = vmul.f32 %v482, %v482
      %v840 = vmul.f32 %v487, %v487
      %v841 = vmul.f32 %v492, %v492
      %v842 = vmul.f32 %v497, %v497
      %v843 = vmul.f32 %v502, %v502
      %v844 = vmul.f32 %v507, %v507
      %v845 = vmul.f32 %v512, %v512
      %v846 = vmul.f32 %v517, %v517
      %v847 = vmul.f32 %v522, %v522
      %v848 = vmul.f32 %v527, %v527
      %v849 = vmul.f32 %v532, %v532
      %v850 = vmul.f32 %v537, %v537
      %v851 = vmul.f32 %v542, %v542
      %v852 = vmul.f32 %v547, %v547
      %v853 = vmul.f32 %v552, %v552
      %v854 = vmul.f32 %v557, %v557
      %v855 = vmul.f32 %v562, %v562
      %v856 = vmul.f32 %v567, %v567
      %v857 = vmul.f32 %v572, %v572
      %v858 = vmul.f32 %v577, %v577
      %v859 = vmul.f32 %v582, %v582
      %v860 = vmul.f32 %v587, %v587
      %v861 = vmul.f32 %v592, %v592
      %v862 = vsel %vm273, %v830, 0.0
      %v863 = vsel %vm273, %v831, 0.0
      %v864 = vadd.f32 %v862, %v863
      %v865 = vsel %vm273, %v832, 0.0
      %v866 = vadd.f32 %v864, %v865
      %v867 = vsel %vm273, %v833, 0.0
      %v868 = vadd.f32 %v866, %v867
      %v869 = vsel %vm273, %v834, 0.0
      %v870 = vadd.f32 %v868, %v869
      %v871 = vsel %vm273, %v835, 0.0
      %v872 = vadd.f32 %v870, %v871
      %v873 = vsel %vm273, %v836, 0.0
      %v874 = vadd.f32 %v872, %v873
      %v875 = vsel %vm273, %v837, 0.0
      %v876 = vadd.f32 %v874, %v875
      %v877 = vsel %vm273, %v838, 0.0
      %v878 = vadd.f32 %v876, %v877
      %v879 = vsel %vm273, %v839, 0.0
      %v880 = vadd.f32 %v878, %v879
      %v881 = vsel %vm273, %v840, 0.0
      %v882 = vadd.f32 %v880, %v881
      %v883 = vsel %vm273, %v841, 0.0
      %v884 = vadd.f32 %v882, %v883
      %v885 = vsel %vm273, %v842, 0.0
      %v886 = vadd.f32 %v884, %v885
      %v887 = vsel %vm273, %v843, 0.0
      %v888 = vadd.f32 %v886, %v887
      %v889 = vsel %vm273, %v844, 0.0
      %v890 = vadd.f32 %v888, %v889
      %v891 = vsel %vm273, %v845, 0.0
      %v892 = vadd.f32 %v890, %v891
      %v893 = vsel %vm273, %v846, 0.0
      %v894 = vadd.f32 %v892, %v893
      %v895 = vsel %vm273, %v847, 0.0
      %v896 = vadd.f32 %v894, %v895
      %v897 = vsel %vm273, %v848, 0.0
      %v898 = vadd.f32 %v896, %v897
      %v899 = vsel %vm273, %v849, 0.0
      %v900 = vadd.f32 %v898, %v899
      %v901 = vsel %vm273, %v850, 0.0
      %v902 = vadd.f32 %v900, %v901
      %v903 = vsel %vm273, %v851, 0.0
      %v904 = vadd.f32 %v902, %v903
      %v905 = vsel %vm273, %v852, 0.0
      %v906 = vadd.f32 %v904, %v905
      %v907 = vsel %vm273, %v853, 0.0
      %v908 = vadd.f32 %v906, %v907
      %v909 = vsel %vm273, %v854, 0.0
      %v910 = vadd.f32 %v908, %v909
      %v911 = vsel %vm273, %v855, 0.0
      %v912 = vadd.f32 %v910, %v911
      %v913 = vsel %vm273, %v856, 0.0
      %v914 = vadd.f32 %v912, %v913
      %v915 = vsel %vm273, %v857, 0.0
      %v916 = vadd.f32 %v914, %v915
      %v917 = vsel %vm273, %v858, 0.0
      %v918 = vadd.f32 %v916, %v917
      %v919 = vsel %vm273, %v859, 0.0
      %v920 = vadd.f32 %v918, %v919
      %v921 = vsel %vm273, %v860, 0.0
      %v922 = vadd.f32 %v920, %v921
      %v923 = vsel %vm273, %v861, 0.0
      %v924 = vadd.f32 %v922, %v923
      %v925 = vrot.slane %v924, 4
      %v926 = vadd.f32 %v924, %v925
      %v927 = vrot.slane %v926, 2
      %v928 = vadd.f32 %v926, %v927
      %v929 = vrot.slane %v928, 1
      %v930 = vadd.f32 %v928, %v929
      %v931 = vadd.f32 %v829, %v930
      %932 = vst.msk [vmem:[%s5] sm:$0x1] %vm827, %v931
      %s933 = smul.u32 32, %s17
      %p934 = scmp.lt.s32.totalorder %s933, 63
      %s935 = scalar_select %p934, %s933, 63
      %s936 = smul.addr %s935, 4
      %s937 = scalar_lea.vmem %s3, %s936
      // Predicated region
      $region37: #{bnn_forward.4} parent=31 // pred_check
        %p938 = pneg %p103
      $region38: #{bnn_forward.4} parent=31 // pred_check_branch
        %940 = sbr.rel (%p938) target = $region40
      $region39: #{bnn_forward.4} parent=31 // pred_region
        %s941 = smul.u32 32, %s17
      $region40: #{bnn_forward.4} parent=31 // pred_fallthru
        _
      // Predicated region
      $region41: #{bnn_forward.4} parent=31 // pred_check
        %p942 = pneg %p124
      $region42: #{bnn_forward.4} parent=31 // pred_check_branch
        %944 = sbr.rel (%p942) target = $region44
      $region43: #{bnn_forward.4} parent=31 // pred_region
        _
      $region44: #{bnn_forward.4} parent=31 // pred_fallthru
        _
      // Predicated region
      $region45: #{bnn_forward.4} parent=31 // pred_check
        %p945 = pneg %p145
      $region46: #{bnn_forward.4} parent=31 // pred_check_branch
        %947 = sbr.rel (%p945) target = $region48
      $region47: #{bnn_forward.4} parent=31 // pred_region
        _
      $region48: #{bnn_forward.4} parent=31 // pred_fallthru
        _
      // Predicated region
      $region49: #{bnn_forward.4} parent=31 // pred_check
        %p948 = pneg %p124
      $region50: #{bnn_forward.4} parent=31 // pred_check_branch
        %950 = sbr.rel (%p948) target = $region52
      $region51: #{bnn_forward.4} parent=31 // pred_region
        _
      $region52: #{bnn_forward.4} parent=31 // pred_fallthru
        _
      // Predicated region
      $region53: #{bnn_forward.4} parent=31 // pred_check
        %p951 = pneg %p145
      $region54: #{bnn_forward.4} parent=31 // pred_check_branch
        %953 = sbr.rel (%p951) target = $region56
      $region55: #{bnn_forward.4} parent=31 // pred_region
        _
      $region56: #{bnn_forward.4} parent=31 // pred_fallthru
        _
    $region32: #{bnn_forward.4} parent=5 // pred_fallthru
      _
    %p954 = scmp.le.s32.totalorder 2, %s12
    // Predicated region
    $region57: #{bnn_forward.4} parent=5 // pred_check
      %p955 = pneg %p954
    $region58: #{bnn_forward.4} parent=5 // pred_check_branch
      %957 = sbr.rel (%p955) target = $region60
    $region59: #{bnn_forward.4} parent=5 // pred_region
      %s958 = ssub.s32 %s12, 2
      // Predicated region
      $region61: #{bnn_forward.4} parent=59 // pred_check
        %p959 = pneg %p109
      $region62: #{bnn_forward.4} parent=59 // pred_check_branch
        %961 = sbr.rel (%p959) target = $region64
      $region63: #{bnn_forward.4} parent=59 // pred_region
        %s962 = smul.u32 32, %s18
        %p963 = scmp.lt.s32.totalorder %s962, 63
        %s964 = scalar_select %p963, %s962, 63
        %s965 = smul.addr %s964, 4
        %s966 = scalar_lea.vmem %s3, %s965
      $region64: #{bnn_forward.4} parent=59 // pred_fallthru
        _
    $region60: #{bnn_forward.4} parent=5 // pred_fallthru
      _
  $region6: #{bnn_forward.4} parent=0 // loop_footer
    %s16 = sadd.s32 1, %s12
  $region7: #{bnn_forward.4} parent=0 // loop_footer_branch
    %11 = sbr.rel target = $region3
  $region8: #{bnn_forward.4} parent=0 // loop_exit
    _

// kernel: bnn_forward.5
$region0: #{bnn_forward.5}
  #allocation0 [shape = 'u32[]', space=smem, size = 0x4, offset = 0x4, fixed_abs, tag = 'smem constant byte address 0x4 - core index']
  #allocation1 [shape = 'u32[144,128]{1,0:T(1,128)}', space=vmem, size = 0x12000, scoped, tag = 'internal scratch']
  %s0 = inlined_call_operand.vmem [shape: bf16[32,32,16], index: 0, kind: input, shape index: {}]
  %s1 = inlined_call_operand.vmem [shape: bf16[32,32,23], index: 1, kind: input, shape index: {}]
  %s2 = inlined_call_operand.vmem [shape: f32[32,2], index: 2, kind: input, shape index: {}]
  %s3 = inlined_call_operand.vmem [shape: f32[32,2], index: 3, kind: input, shape index: {}]
  %s4 = inlined_call_operand.vmem [shape: f32[32,1], index: 4, kind: input, shape index: {}]
  %s5 = inlined_call_operand.hbm [shape: f32[32,16], index: 5, kind: output, shape index: {}]
  %s6 = sld [smem:[#allocation0]]
  $region53: #{bnn_forward.5} parent=0
    _
  %s8 = ssub.s32 1, %s6
  %s9 = scalar_select 0, %s8, %s6
  $region1: #{bnn_forward.5} parent=0
    #allocation2 [shape = 'u8[8192]{0}', space=vmem, size = 0x2000, scoped, tag = 'output window, operand 0']
    #allocation3 [shape = 's32[2]{0}', space=sflag, size = 0x8, scoped, tag = 'scoped memory for bnn_forward.5']
    %10 = vsyncpa [#allocation3], 0
    %s11 = scalar_lea.sflag [#allocation3], 1
    %12 = vsyncpa %s11, 0
    loop: start=0, step=1, limit=6
    $region2: #{bnn_forward.5} parent=1 // loop_pre_header
      _
    $region3: #{bnn_forward.5} parent=1 // loop_header
      %s14 = sphi 0, %s18
      %p15 = scmp.ge.s32.totalorder %s14, 6
      %s24 = sphi 0, %s26
      %s27 = sphi 0, %s24
      %s28 = sphi 0, %s27
      %s44 = sphi 0, %s28
      %s50 = sphi 0, %s52
      %s53 = sphi 0, %s50
      %s54 = sphi 0, %s53
      %s70 = sphi 0, %s54
      %s74 = sphi 0, %s74
      %s76 = sphi 0, %s74
      %s77 = sphi 0, %s76
      %s91 = sphi 0, %s77
      %s95 = sphi 0, %s95
      %s97 = sphi 0, %s95
      %s98 = sphi 0, %s97
      %s112 = sphi 0, %s98
      %s118 = sphi 0, %s120
      %s121 = sphi 0, %s118
      %s122 = sphi 0, %s121
      %s138 = sphi 0, %s122
      %s144 = sphi 0, %s146
      %s147 = sphi 0, %s144
      %s148 = sphi 0, %s147
      %s164 = sphi 0, %s148
    $region4: #{bnn_forward.5} parent=1 // loop_header_branch
      %17 = sbr.rel (%p15) target = $region8
    $region5: #{bnn_forward.5} parent=1 // loop_body
      %s19 = ssub.s32 %s14, 1
      %s20 = ssub.s32 %s14, 2
      %s21 = sadd.s32 %s14, 1
      %s22 = ssub.s32 %s14, %s21
      %p23 = scmp.eq.s32.totalorder %s22, 0
      %s25 = sadd.s32 %s24, 1
      %s26 = scalar_select %p23, %s24, %s25
      %p29 = pneg %p23
      %p30 = scmp.eq.s32.totalorder %s14, 3
      %p31 = por %p29, %p30
      %p32 = scmp.ne.s32.totalorder %s24, %s27
      %p33 = scmp.eq.s32.totalorder %s14, 0
      %p34 = por %p32, %p33
      %p35 = scmp.ne.s32.totalorder %s24, %s27
      %p36 = scmp.eq.s32.totalorder %s19, 3
      %p37 = por %p35, %p36
      %p38 = scmp.ne.s32.totalorder %s27, %s28
      %p39 = scmp.eq.s32.totalorder %s19, 0
      %p40 = por %p38, %p39
      %p41 = scmp.ne.s32.totalorder %s27, %s28
      %p42 = scmp.eq.s32.totalorder %s20, 3
      %p43 = por %p41, %p42
      %p45 = scmp.ne.s32.totalorder %s28, %s44
      %p46 = scmp.eq.s32.totalorder %s20, 0
      %p47 = por %p45, %p46
      %s48 = ssub.s32 %s14, %s21
      %p49 = scmp.eq.s32.totalorder %s48, 0
      %s51 = sadd.s32 %s50, 1
      %s52 = scalar_select %p49, %s50, %s51
      %p55 = pneg %p49
      %p56 = scmp.eq.s32.totalorder %s14, 3
      %p57 = por %p55, %p56
      %p58 = scmp.ne.s32.totalorder %s50, %s53
      %p59 = scmp.eq.s32.totalorder %s14, 0
      %p60 = por %p58, %p59
      %p61 = scmp.ne.s32.totalorder %s50, %s53
      %p62 = scmp.eq.s32.totalorder %s19, 3
      %p63 = por %p61, %p62
      %p64 = scmp.ne.s32.totalorder %s53, %s54
      %p65 = scmp.eq.s32.totalorder %s19, 0
      %p66 = por %p64, %p65
      %p67 = scmp.ne.s32.totalorder %s53, %s54
      %p68 = scmp.eq.s32.totalorder %s20, 3
      %p69 = por %p67, %p68
      %p71 = scmp.ne.s32.totalorder %s54, %s70
      %p72 = scmp.eq.s32.totalorder %s20, 0
      %p73 = por %p71, %p72
      %s75 = sadd.s32 %s74, 1
      %p78 = scmp.eq.s32.totalorder %s14, 3
      %p79 = scmp.ne.s32.totalorder %s74, %s76
      %p80 = scmp.eq.s32.totalorder %s14, 0
      %p81 = por %p79, %p80
      %p82 = scmp.ne.s32.totalorder %s74, %s76
      %p83 = scmp.eq.s32.totalorder %s19, 3
      %p84 = por %p82, %p83
      %p85 = scmp.ne.s32.totalorder %s76, %s77
      %p86 = scmp.eq.s32.totalorder %s19, 0
      %p87 = por %p85, %p86
      %p88 = scmp.ne.s32.totalorder %s76, %s77
      %p89 = scmp.eq.s32.totalorder %s20, 3
      %p90 = por %p88, %p89
      %p92 = scmp.ne.s32.totalorder %s77, %s91
      %p93 = scmp.eq.s32.totalorder %s20, 0
      %p94 = por %p92, %p93
      %s96 = sadd.s32 %s95, 1
      %p99 = scmp.eq.s32.totalorder %s14, 3
      %p100 = scmp.ne.s32.totalorder %s95, %s97
      %p101 = scmp.eq.s32.totalorder %s14, 0
      %p102 = por %p100, %p101
      %p103 = scmp.ne.s32.totalorder %s95, %s97
      %p104 = scmp.eq.s32.totalorder %s19, 3
      %p105 = por %p103, %p104
      %p106 = scmp.ne.s32.totalorder %s97, %s98
      %p107 = scmp.eq.s32.totalorder %s19, 0
      %p108 = por %p106, %p107
      %p109 = scmp.ne.s32.totalorder %s97, %s98
      %p110 = scmp.eq.s32.totalorder %s20, 3
      %p111 = por %p109, %p110
      %p113 = scmp.ne.s32.totalorder %s98, %s112
      %p114 = scmp.eq.s32.totalorder %s20, 0
      %p115 = por %p113, %p114
      %s116 = ssub.s32 %s14, %s21
      %p117 = scmp.eq.s32.totalorder %s116, 0
      %s119 = sadd.s32 %s118, 1
      %s120 = scalar_select %p117, %s118, %s119
      %p123 = pneg %p117
      %p124 = scmp.eq.s32.totalorder %s14, 3
      %p125 = por %p123, %p124
      %p126 = scmp.ne.s32.totalorder %s118, %s121
      %p127 = scmp.eq.s32.totalorder %s14, 0
      %p128 = por %p126, %p127
      %p129 = scmp.ne.s32.totalorder %s118, %s121
      %p130 = scmp.eq.s32.totalorder %s19, 3
      %p131 = por %p129, %p130
      %p132 = scmp.ne.s32.totalorder %s121, %s122
      %p133 = scmp.eq.s32.totalorder %s19, 0
      %p134 = por %p132, %p133
      %p135 = scmp.ne.s32.totalorder %s121, %s122
      %p136 = scmp.eq.s32.totalorder %s20, 3
      %p137 = por %p135, %p136
      %p139 = scmp.ne.s32.totalorder %s122, %s138
      %p140 = scmp.eq.s32.totalorder %s20, 0
      %p141 = por %p139, %p140
      %s142 = ssub.s32 %s14, %s21
      %p143 = scmp.eq.s32.totalorder %s142, 0
      %s145 = sadd.s32 %s144, 1
      %s146 = scalar_select %p143, %s144, %s145
      %p149 = pneg %p143
      %p150 = scmp.eq.s32.totalorder %s14, 3
      %p151 = por %p149, %p150
      %p152 = scmp.ne.s32.totalorder %s144, %s147
      %p153 = scmp.eq.s32.totalorder %s14, 0
      %p154 = por %p152, %p153
      %p155 = scmp.ne.s32.totalorder %s144, %s147
      %p156 = scmp.eq.s32.totalorder %s19, 3
      %p157 = por %p155, %p156
      %p158 = scmp.ne.s32.totalorder %s147, %s148
      %p159 = scmp.eq.s32.totalorder %s19, 0
      %p160 = por %p158, %p159
      %p161 = scmp.ne.s32.totalorder %s147, %s148
      %p162 = scmp.eq.s32.totalorder %s20, 3
      %p163 = por %p161, %p162
      %p165 = scmp.ne.s32.totalorder %s148, %s164
      %p166 = scmp.eq.s32.totalorder %s20, 0
      %p167 = por %p165, %p166
      %p168 = scmp.le.s32.totalorder 1, %s14
      %p169 = scmp.lt.s32.totalorder %s14, 5
      %p170 = pnand %p168, %p169
      %p171 = pneg %p170
      // Predicated region
      $region9: #{bnn_forward.5} parent=5 // pred_check
        _
      $region10: #{bnn_forward.5} parent=5 // pred_check_branch
        %173 = sbr.rel (%p170) target = $region12
      $region11: #{bnn_forward.5} parent=5 // pred_region
        %s174 = ssub.s32 %s14, 1
        // Predicated region
        $region13: #{bnn_forward.5} parent=11 // pred_check
          %p175 = pneg %p87
        $region14: #{bnn_forward.5} parent=11 // pred_check_branch
          %177 = sbr.rel (%p175) target = $region16
        $region15: #{bnn_forward.5} parent=11 // pred_region
          _
        $region16: #{bnn_forward.5} parent=11 // pred_fallthru
          _
        // Predicated region
        $region17: #{bnn_forward.5} parent=11 // pred_check
          %p178 = pneg %p108
        $region18: #{bnn_forward.5} parent=11 // pred_check_branch
          %180 = sbr.rel (%p178) target = $region20
        $region19: #{bnn_forward.5} parent=11 // pred_region
          _
        $region20: #{bnn_forward.5} parent=11 // pred_fallthru
          _
      $region12: #{bnn_forward.5} parent=5 // pred_fallthru
        _
      %p181 = scmp.lt.s32.totalorder %s14, 4
      // Predicated region
      $region21: #{bnn_forward.5} parent=5 // pred_check
        %p182 = pneg %p181
      $region22: #{bnn_forward.5} parent=5 // pred_check_branch
        %184 = sbr.rel (%p182) target = $region24
      $region23: #{bnn_forward.5} parent=5 // pred_region
        // Predicated region
        $region25: #{bnn_forward.5} parent=23 // pred_check
          %p185 = pneg %p34
        $region26: #{bnn_forward.5} parent=23 // pred_check_branch
          %187 = sbr.rel (%p185) target = $region28
        $region27: #{bnn_forward.5} parent=23 // pred_region
          %s188 = smul.u32 8, %s14
          %p189 = scmp.lt.s32.totalorder %s188, 31
          %s190 = scalar_select %p189, %s188, 31
          %s191 = smul.addr %s190, 4
          %s192 = smul.addr %s191, 4
          %s193 = scalar_lea.vmem %s0, %s192
          %s194 = smul.u32 8, %s14
        $region28: #{bnn_forward.5} parent=23 // pred_fallthru
          _
        // Predicated region
        $region29: #{bnn_forward.5} parent=23 // pred_check
          %p195 = pneg %p60
        $region30: #{bnn_forward.5} parent=23 // pred_check_branch
          %197 = sbr.rel (%p195) target = $region32
        $region31: #{bnn_forward.5} parent=23 // pred_region
          %s198 = smul.u32 8, %s14
          %p199 = scmp.lt.s32.totalorder %s198, 31
          %s200 = scalar_select %p199, %s198, 31
          %s201 = smul.addr %s200, 4
          %s202 = smul.addr %s201, 4
          %s203 = scalar_lea.vmem %s1, %s202
          %s204 = smul.u32 8, %s14
        $region32: #{bnn_forward.5} parent=23 // pred_fallthru
          _
        // Predicated region
        $region33: #{bnn_forward.5} parent=23 // pred_check
          %p205 = pneg %p128
        $region34: #{bnn_forward.5} parent=23 // pred_check_branch
          %207 = sbr.rel (%p205) target = $region36
        $region35: #{bnn_forward.5} parent=23 // pred_region
          %p208 = scmp.lt.s32.totalorder %s14, 3
          %s209 = scalar_select %p208, %s14, 3
          %s210 = smul.addr %s209, 8
          %s211 = scalar_lea.vmem %s4, %s210
        $region36: #{bnn_forward.5} parent=23 // pred_fallthru
          _
      $region24: #{bnn_forward.5} parent=5 // pred_fallthru
        _
      %p212 = scmp.le.s32.totalorder 1, %s14
      %p213 = scmp.lt.s32.totalorder %s14, 5
      %p214 = pnand %p212, %p213
      %p215 = pneg %p214
      // Predicated region
      $region37: #{bnn_forward.5} parent=5 // pred_check
        _
      $region38: #{bnn_forward.5} parent=5 // pred_check_branch
        %217 = sbr.rel (%p214) target = $region40
      $region39: #{bnn_forward.5} parent=5 // pred_region
        %s218 = ssub.s32 %s14, 1
        %s219 = smul.u32 8, %s19
        %p220 = scmp.lt.s32.totalorder %s219, 31
        %s221 = scalar_select %p220, %s219, 31
        %s222 = smul.addr %s221, 4
        %s223 = smul.addr %s222, 4
        %s224 = scalar_lea.vmem %s0, %s223
        %p225 = pneg %p40
        %p226 = pneg %p37
        %s227 = smul.u32 8, %s19
        %p228 = scmp.lt.s32.totalorder %s227, 31
        %s229 = scalar_select %p228, %s227, 31
        %s230 = smul.addr %s229, 4
        %s231 = smul.addr %s230, 4
        %s232 = scalar_lea.vmem %s1, %s231
        %p233 = pneg %p66
        %p234 = pneg %p63
        %p235 = pneg %p87
        %p236 = pneg %p84
        %p237 = pneg %p108
        %p238 = pneg %p105
        %p239 = scmp.lt.s32.totalorder %s19, 3
        %s240 = scalar_select %p239, %s19, 3
        %s241 = smul.addr %s240, 8
        %s242 = scalar_lea.vmem %s4, %s241
        %p243 = pneg %p134
        %p244 = pneg %p131
        %p245 = pneg %p160
        %p246 = pneg %p157
        %s247 = sand.u32 %s147, 1
        %s248 = scalar_lea.sflag [#allocation3], %s247
        %s249 = sand.u32 %s147, 1
        %s250 = smul.addr %s249, 8
        %s251 = scalar_lea.vmem [#allocation2], %s250
        %s252 = smul.u32 8, %s19
        %p253 = scmp.lt.s32.totalorder %s252, 31
        %s254 = scalar_select %p253, %s252, 31
        %s255 = smul.addr %s254, 4
        %s256 = smul.addr %s255, 4
        %s257 = scalar_lea.vmem %s0, %s256
        %s258 = smul.u32 8, %s19
        %s259 = smul.u32 8, %s19
        %p260 = scmp.lt.s32.totalorder %s259, 31
        %s261 = scalar_select %p260, %s259, 31
        %s262 = smul.addr %s261, 4
        %s263 = smul.addr %s262, 4
        %s264 = scalar_lea.vmem %s1, %s263
        %s265 = smul.u32 8, %s19
        %p266 = scmp.lt.s32.totalorder %s19, 3
        %s267 = scalar_select %p266, %s19, 3
        %s268 = smul.addr %s267, 8
        %s269 = scalar_lea.vmem %s4, %s268
        %v270 = vld [vmem:[%s257] sm:$0xf]
        %v271 = vld [vmem:[%s257 + $0x4] sm:$0xf]
        %v272 = vld [vmem:[%s257 + $0x8] sm:$0xf]
        %v273 = vld [vmem:[%s257 + $0xc] sm:$0xf]
        %v274 = vld [vmem:[%s257 + $0x10] sm:$0xf]
        %v275 = vld [vmem:[%s257 + $0x14] sm:$0xf]
        %v276 = vld [vmem:[%s257 + $0x18] sm:$0xf]
        %v277 = vld [vmem:[%s257 + $0x1c] sm:$0xf]
        %v278 = vld [vmem:[%s257 + $0x20] sm:$0xf]
        %v279 = vld [vmem:[%s257 + $0x24] sm:$0xf]
        %v280 = vld [vmem:[%s257 + $0x28] sm:$0xf]
        %v281 = vld [vmem:[%s257 + $0x2c] sm:$0xf]
        %v282 = vld [vmem:[%s257 + $0x30] sm:$0xf]
        %v283 = vld [vmem:[%s257 + $0x34] sm:$0xf]
        %v284 = vld [vmem:[%s257 + $0x38] sm:$0xf]
        %v285 = vld [vmem:[%s257 + $0x3c] sm:$0xf]
        %v286 = vld [vmem:[%s257 + $0x40] sm:$0xf]
        %v287 = vld [vmem:[%s257 + $0x44] sm:$0xf]
        %v288 = vld [vmem:[%s257 + $0x48] sm:$0xf]
        %v289 = vld [vmem:[%s257 + $0x4c] sm:$0xf]
        %v290 = vld [vmem:[%s257 + $0x50] sm:$0xf]
        %v291 = vld [vmem:[%s257 + $0x54] sm:$0xf]
        %v292 = vld [vmem:[%s257 + $0x58] sm:$0xf]
        %v293 = vld [vmem:[%s257 + $0x5c] sm:$0xf]
        %v294 = vld [vmem:[%s257 + $0x60] sm:$0xf]
        %v295 = vld [vmem:[%s257 + $0x64] sm:$0xf]
        %v296 = vld [vmem:[%s257 + $0x68] sm:$0xf]
        %v297 = vld [vmem:[%s257 + $0x6c] sm:$0xf]
        %v298 = vld [vmem:[%s257 + $0x70] sm:$0xf]
        %v299 = vld [vmem:[%s257 + $0x74] sm:$0xf]
        %v300 = vld [vmem:[%s257 + $0x78] sm:$0xf]
        %v301 = vld [vmem:[%s257 + $0x7c] sm:$0xf]
        %v302 = vunpack.c.l.bf16 %v270
        %v303 = vunpack.c.l.bf16 %v271
        %v304 = vunpack.c.l.bf16 %v272
        %v305 = vunpack.c.l.bf16 %v273
        %v306 = vunpack.c.l.bf16 %v274
        %v307 = vunpack.c.l.bf16 %v275
        %v308 = vunpack.c.l.bf16 %v276
        %v309 = vunpack.c.l.bf16 %v277
        %v310 = vunpack.c.l.bf16 %v278
        %v311 = vunpack.c.l.bf16 %v279
        %v312 = vunpack.c.l.bf16 %v280
        %v313 = vunpack.c.l.bf16 %v281
        %v314 = vunpack.c.l.bf16 %v282
        %v315 = vunpack.c.l.bf16 %v283
        %v316 = vunpack.c.l.bf16 %v284
        %v317 = vunpack.c.l.bf16 %v285
        %v318 = vunpack.c.l.bf16 %v286
        %v319 = vunpack.c.l.bf16 %v287
        %v320 = vunpack.c.l.bf16 %v288
        %v321 = vunpack.c.l.bf16 %v289
        %v322 = vunpack.c.l.bf16 %v290
        %v323 = vunpack.c.l.bf16 %v291
        %v324 = vunpack.c.l.bf16 %v292
        %v325 = vunpack.c.l.bf16 %v293
        %v326 = vunpack.c.l.bf16 %v294
        %v327 = vunpack.c.l.bf16 %v295
        %v328 = vunpack.c.l.bf16 %v296
        %v329 = vunpack.c.l.bf16 %v297
        %v330 = vunpack.c.l.bf16 %v298
        %v331 = vunpack.c.l.bf16 %v299
        %v332 = vunpack.c.l.bf16 %v300
        %v333 = vunpack.c.l.bf16 %v301
        %v334 = vld [vmem:[%s264] sm:$0xf]
        %v335 = vld [vmem:[%s264 + $0x4] sm:$0xf]
        %v336 = vld [vmem:[%s264 + $0x8] sm:$0xf]
        %v337 = vld [vmem:[%s264 + $0xc] sm:$0xf]
        %v338 = vld [vmem:[%s264 + $0x10] sm:$0xf]
        %v339 = vld [vmem:[%s264 + $0x14] sm:$0xf]
        %v340 = vld [vmem:[%s264 + $0x18] sm:$0xf]
        %v341 = vld [vmem:[%s264 + $0x1c] sm:$0xf]
        %v342 = vld [vmem:[%s264 + $0x20] sm:$0xf]
        %v343 = vld [vmem:[%s264 + $0x24] sm:$0xf]
        %v344 = vld [vmem:[%s264 + $0x28] sm:$0xf]
        %v345 = vld [vmem:[%s264 + $0x2c] sm:$0xf]
        %v346 = vld [vmem:[%s264 + $0x30] sm:$0xf]
        %v347 = vld [vmem:[%s264 + $0x34] sm:$0xf]
        %v348 = vld [vmem:[%s264 + $0x38] sm:$0xf]
        %v349 = vld [vmem:[%s264 + $0x3c] sm:$0xf]
        %v350 = vld [vmem:[%s264 + $0x40] sm:$0xf]
        %v351 = vld [vmem:[%s264 + $0x44] sm:$0xf]
        %v352 = vld [vmem:[%s264 + $0x48] sm:$0xf]
        %v353 = vld [vmem:[%s264 + $0x4c] sm:$0xf]
        %v354 = vld [vmem:[%s264 + $0x50] sm:$0xf]
        %v355 = vld [vmem:[%s264 + $0x54] sm:$0xf]
        %v356 = vld [vmem:[%s264 + $0x58] sm:$0xf]
        %v357 = vld [vmem:[%s264 + $0x5c] sm:$0xf]
        %v358 = vld [vmem:[%s264 + $0x60] sm:$0xf]
        %v359 = vld [vmem:[%s264 + $0x64] sm:$0xf]
        %v360 = vld [vmem:[%s264 + $0x68] sm:$0xf]
        %v361 = vld [vmem:[%s264 + $0x6c] sm:$0xf]
        %v362 = vld [vmem:[%s264 + $0x70] sm:$0xf]
        %v363 = vld [vmem:[%s264 + $0x74] sm:$0xf]
        %v364 = vld [vmem:[%s264 + $0x78] sm:$0xf]
        %v365 = vld [vmem:[%s264 + $0x7c] sm:$0xf]
        %v366 = vunpack.c.l.bf16 %v334
        %v367 = vunpack.c.l.bf16 %v335
        %v368 = vunpack.c.l.bf16 %v336
        %v369 = vunpack.c.l.bf16 %v337
        %v370 = vunpack.c.l.bf16 %v338
        %v371 = vunpack.c.l.bf16 %v339
        %v372 = vunpack.c.l.bf16 %v340
        %v373 = vunpack.c.l.bf16 %v341
        %v374 = vunpack.c.l.bf16 %v342
        %v375 = vunpack.c.l.bf16 %v343
        %v376 = vunpack.c.l.bf16 %v344
        %v377 = vunpack.c.l.bf16 %v345
        %v378 = vunpack.c.l.bf16 %v346
        %v379 = vunpack.c.l.bf16 %v347
        %v380 = vunpack.c.l.bf16 %v348
        %v381 = vunpack.c.l.bf16 %v349
        %v382 = vunpack.c.l.bf16 %v350
        %v383 = vunpack.c.l.bf16 %v351
        %v384 = vunpack.c.l.bf16 %v352
        %v385 = vunpack.c.l.bf16 %v353
        %v386 = vunpack.c.l.bf16 %v354
        %v387 = vunpack.c.l.bf16 %v355
        %v388 = vunpack.c.l.bf16 %v356
        %v389 = vunpack.c.l.bf16 %v357
        %v390 = vunpack.c.l.bf16 %v358
        %v391 = vunpack.c.l.bf16 %v359
        %v392 = vunpack.c.l.bf16 %v360
        %v393 = vunpack.c.l.bf16 %v361
        %v394 = vunpack.c.l.bf16 %v362
        %v395 = vunpack.c.l.bf16 %v363
        %v396 = vunpack.c.l.bf16 %v364
        %v397 = vunpack.c.l.bf16 %v365
        %v398 = vld [vmem:[%s2] sm:$0xff]
        %v399 = vld [vmem:[%s2 + $0x8] sm:$0xff]
        %v400 = vld [vmem:[%s2 + $0x10] sm:$0xff]
        %v401 = vld [vmem:[%s2 + $0x18] sm:$0xff]
        %v402 = vld [vmem:[%s3] sm:$0xff]
        %v403 = vld [vmem:[%s3 + $0x8] sm:$0xff]
        %v404 = vld [vmem:[%s3 + $0x10] sm:$0xff]
        %v405 = vld [vmem:[%s3 + $0x18] sm:$0xff]
        %407 = vset.pattern.permute.xlu0 0
        %408 = vperm.xlu0 %407, %v398
        %v409 = vpop.permute.xlu0 %408
        %412 = vset.pattern.permute.xlu0 0
        %413 = vperm.xlu0 %412, %v399
        %v414 = vpop.permute.xlu0 %413
        %417 = vset.pattern.permute.xlu0 0
        %418 = vperm.xlu0 %417, %v400
        %v419 = vpop.permute.xlu0 %418
        %422 = vset.pattern.permute.xlu0 0
        %423 = vperm.xlu0 %422, %v401
        %v424 = vpop.permute.xlu0 %423
        %v426 = vsub.f32 %v302, %v409
        %v427 = vsub.f32 %v303, %v414
        %v428 = vsub.f32 %v304, %v419
        %v429 = vsub.f32 %v305, %v424
        %v430 = vsub.f32 %v306, %v409
        %v431 = vsub.f32 %v307, %v414
        %v432 = vsub.f32 %v308, %v419
        %v433 = vsub.f32 %v309, %v424
        %v434 = vsub.f32 %v310, %v409
        %v435 = vsub.f32 %v311, %v414
        %v436 = vsub.f32 %v312, %v419
        %v437 = vsub.f32 %v313, %v424
        %v438 = vsub.f32 %v314, %v409
        %v439 = vsub.f32 %v315, %v414
        %v440 = vsub.f32 %v316, %v419
        %v441 = vsub.f32 %v317, %v424
        %v442 = vsub.f32 %v318, %v409
        %v443 = vsub.f32 %v319, %v414
        %v444 = vsub.f32 %v320, %v419
        %v445 = vsub.f32 %v321, %v424
        %v446 = vsub.f32 %v322, %v409
        %v447 = vsub.f32 %v323, %v414
        %v448 = vsub.f32 %v324, %v419
        %v449 = vsub.f32 %v325, %v424
        %v450 = vsub.f32 %v326, %v409
        %v451 = vsub.f32 %v327, %v414
        %v452 = vsub.f32 %v328, %v419
        %v453 = vsub.f32 %v329, %v424
        %v454 = vsub.f32 %v330, %v409
        %v455 = vsub.f32 %v331, %v414
        %v456 = vsub.f32 %v332, %v419
        %v457 = vsub.f32 %v333, %v424
        %458 = vset.pattern.permute.xlu0 1
        %459 = vperm.xlu0 %458, %v398
        %v460 = vpop.permute.xlu0 %459
        %462 = vset.pattern.permute.xlu0 1
        %463 = vperm.xlu0 %462, %v399
        %v464 = vpop.permute.xlu0 %463
        %466 = vset.pattern.permute.xlu0 1
        %467 = vperm.xlu0 %466, %v400
        %v468 = vpop.permute.xlu0 %467
        %470 = vset.pattern.permute.xlu0 1
        %471 = vperm.xlu0 %470, %v401
        %v472 = vpop.permute.xlu0 %471
        %v474 = vmul.f32 %v426, %v460
        %v475 = vmul.f32 %v427, %v464
        %v476 = vmul.f32 %v428, %v468
        %v477 = vmul.f32 %v429, %v472
        %v478 = vmul.f32 %v430, %v460
        %v479 = vmul.f32 %v431, %v464
        %v480 = vmul.f32 %v432, %v468
        %v481 = vmul.f32 %v433, %v472
        %v482 = vmul.f32 %v434, %v460
        %v483 = vmul.f32 %v435, %v464
        %v484 = vmul.f32 %v436, %v468
        %v485 = vmul.f32 %v437, %v472
        %v486 = vmul.f32 %v438, %v460
        %v487 = vmul.f32 %v439, %v464
        %v488 = vmul.f32 %v440, %v468
        %v489 = vmul.f32 %v441, %v472
        %v490 = vmul.f32 %v442, %v460
        %v491 = vmul.f32 %v443, %v464
        %v492 = vmul.f32 %v444, %v468
        %v493 = vmul.f32 %v445, %v472
        %v494 = vmul.f32 %v446, %v460
        %v495 = vmul.f32 %v447, %v464
        %v496 = vmul.f32 %v448, %v468
        %v497 = vmul.f32 %v449, %v472
        %v498 = vmul.f32 %v450, %v460
        %v499 = vmul.f32 %v451, %v464
        %v500 = vmul.f32 %v452, %v468
        %v501 = vmul.f32 %v453, %v472
        %v502 = vmul.f32 %v454, %v460
        %v503 = vmul.f32 %v455, %v464
        %v504 = vmul.f32 %v456, %v468
        %v505 = vmul.f32 %v457, %v472
        %v506 = vmax.f32 %v474, 0.0
        %v507 = vmax.f32 %v475, 0.0
        %v508 = vmax.f32 %v476, 0.0
        %v509 = vmax.f32 %v477, 0.0
        %v510 = vmax.f32 %v478, 0.0
        %v511 = vmax.f32 %v479, 0.0
        %v512 = vmax.f32 %v480, 0.0
        %v513 = vmax.f32 %v481, 0.0
        %v514 = vmax.f32 %v482, 0.0
        %v515 = vmax.f32 %v483, 0.0
        %v516 = vmax.f32 %v484, 0.0
        %v517 = vmax.f32 %v485, 0.0
        %v518 = vmax.f32 %v486, 0.0
        %v519 = vmax.f32 %v487, 0.0
        %v520 = vmax.f32 %v488, 0.0
        %v521 = vmax.f32 %v489, 0.0
        %v522 = vmax.f32 %v490, 0.0
        %v523 = vmax.f32 %v491, 0.0
        %v524 = vmax.f32 %v492, 0.0
        %v525 = vmax.f32 %v493, 0.0
        %v526 = vmax.f32 %v494, 0.0
        %v527 = vmax.f32 %v495, 0.0
        %v528 = vmax.f32 %v496, 0.0
        %v529 = vmax.f32 %v497, 0.0
        %v530 = vmax.f32 %v498, 0.0
        %v531 = vmax.f32 %v499, 0.0
        %v532 = vmax.f32 %v500, 0.0
        %v533 = vmax.f32 %v501, 0.0
        %v534 = vmax.f32 %v502, 0.0
        %v535 = vmax.f32 %v503, 0.0
        %v536 = vmax.f32 %v504, 0.0
        %v537 = vmax.f32 %v505, 0.0
        %539 = vset.pattern.permute.xlu0 0
        %540 = vperm.xlu0 %539, %v402
        %v541 = vpop.permute.xlu0 %540
        %544 = vset.pattern.permute.xlu0 0
        %545 = vperm.xlu0 %544, %v403
        %v546 = vpop.permute.xlu0 %545
        %549 = vset.pattern.permute.xlu0 0
        %550 = vperm.xlu0 %549, %v404
        %v551 = vpop.permute.xlu0 %550
        %554 = vset.pattern.permute.xlu0 0
        %555 = vperm.xlu0 %554, %v405
        %v556 = vpop.permute.xlu0 %555
        %v558 = vsub.f32 %v366, %v541
        %v559 = vsub.f32 %v367, %v546
        %v560 = vsub.f32 %v368, %v551
        %v561 = vsub.f32 %v369, %v556
        %v562 = vsub.f32 %v370, %v541
        %v563 = vsub.f32 %v371, %v546
        %v564 = vsub.f32 %v372, %v551
        %v565 = vsub.f32 %v373, %v556
        %v566 = vsub.f32 %v374, %v541
        %v567 = vsub.f32 %v375, %v546
        %v568 = vsub.f32 %v376, %v551
        %v569 = vsub.f32 %v377, %v556
        %v570 = vsub.f32 %v378, %v541
        %v571 = vsub.f32 %v379, %v546
        %v572 = vsub.f32 %v380, %v551
        %v573 = vsub.f32 %v381, %v556
        %v574 = vsub.f32 %v382, %v541
        %v575 = vsub.f32 %v383, %v546
        %v576 = vsub.f32 %v384, %v551
        %v577 = vsub.f32 %v385, %v556
        %v578 = vsub.f32 %v386, %v541
        %v579 = vsub.f32 %v387, %v546
        %v580 = vsub.f32 %v388, %v551
        %v581 = vsub.f32 %v389, %v556
        %v582 = vsub.f32 %v390, %v541
        %v583 = vsub.f32 %v391, %v546
        %v584 = vsub.f32 %v392, %v551
        %v585 = vsub.f32 %v393, %v556
        %v586 = vsub.f32 %v394, %v541
        %v587 = vsub.f32 %v395, %v546
        %v588 = vsub.f32 %v396, %v551
        %v589 = vsub.f32 %v397, %v556
        %590 = vset.pattern.permute.xlu0 1
        %591 = vperm.xlu0 %590, %v402
        %v592 = vpop.permute.xlu0 %591
        %594 = vset.pattern.permute.xlu0 1
        %595 = vperm.xlu0 %594, %v403
        %v596 = vpop.permute.xlu0 %595
        %598 = vset.pattern.permute.xlu0 1
        %599 = vperm.xlu0 %598, %v404
        %v600 = vpop.permute.xlu0 %599
        %602 = vset.pattern.permute.xlu0 1
        %603 = vperm.xlu0 %602, %v405
        %v604 = vpop.permute.xlu0 %603
        %v606 = vmul.f32 %v558, %v592
        %v607 = vmul.f32 %v559, %v596
        %v608 = vmul.f32 %v560, %v600
        %v609 = vmul.f32 %v561, %v604
        %v610 = vmul.f32 %v562, %v592
        %v611 = vmul.f32 %v563, %v596
        %v612 = vmul.f32 %v564, %v600
        %v613 = vmul.f32 %v565, %v604
        %v614 = vmul.f32 %v566, %v592
        %v615 = vmul.f32 %v567, %v596
        %v616 = vmul.f32 %v568, %v600
        %v617 = vmul.f32 %v569, %v604
        %v618 = vmul.f32 %v570, %v592
        %v619 = vmul.f32 %v571, %v596
        %v620 = vmul.f32 %v572, %v600
        %v621 = vmul.f32 %v573, %v604
        %v622 = vmul.f32 %v574, %v592
        %v623 = vmul.f32 %v575, %v596
        %v624 = vmul.f32 %v576, %v600
        %v625 = vmul.f32 %v577, %v604
        %v626 = vmul.f32 %v578, %v592
        %v627 = vmul.f32 %v579, %v596
        %v628 = vmul.f32 %v580, %v600
        %v629 = vmul.f32 %v581, %v604
        %v630 = vmul.f32 %v582, %v592
        %v631 = vmul.f32 %v583, %v596
        %v632 = vmul.f32 %v584, %v600
        %v633 = vmul.f32 %v585, %v604
        %v634 = vmul.f32 %v586, %v592
        %v635 = vmul.f32 %v587, %v596
        %v636 = vmul.f32 %v588, %v600
        %v637 = vmul.f32 %v589, %v604
        %v638 = vmax.f32 %v606, 0.0
        %v639 = vmax.f32 %v607, 0.0
        %v640 = vmax.f32 %v608, 0.0
        %v641 = vmax.f32 %v609, 0.0
        %v642 = vmax.f32 %v610, 0.0
        %v643 = vmax.f32 %v611, 0.0
        %v644 = vmax.f32 %v612, 0.0
        %v645 = vmax.f32 %v613, 0.0
        %v646 = vmax.f32 %v614, 0.0
        %v647 = vmax.f32 %v615, 0.0
        %v648 = vmax.f32 %v616, 0.0
        %v649 = vmax.f32 %v617, 0.0
        %v650 = vmax.f32 %v618, 0.0
        %v651 = vmax.f32 %v619, 0.0
        %v652 = vmax.f32 %v620, 0.0
        %v653 = vmax.f32 %v621, 0.0
        %v654 = vmax.f32 %v622, 0.0
        %v655 = vmax.f32 %v623, 0.0
        %v656 = vmax.f32 %v624, 0.0
        %v657 = vmax.f32 %v625, 0.0
        %v658 = vmax.f32 %v626, 0.0
        %v659 = vmax.f32 %v627, 0.0
        %v660 = vmax.f32 %v628, 0.0
        %v661 = vmax.f32 %v629, 0.0
        %v662 = vmax.f32 %v630, 0.0
        %v663 = vmax.f32 %v631, 0.0
        %v664 = vmax.f32 %v632, 0.0
        %v665 = vmax.f32 %v633, 0.0
        %v666 = vmax.f32 %v634, 0.0
        %v667 = vmax.f32 %v635, 0.0
        %v668 = vmax.f32 %v636, 0.0
        %v669 = vmax.f32 %v637, 0.0
        %v670 = vlaneseq
        %v671 = vand.u32 %v670, 127
        %vm672 = vcmp.ge.s32.totalorder %v671, 4
        %vm673 = vcmp.lt.s32.totalorder %v671, 20
        %vm674 = vmand %vm672, %vm673
        %v675 = vsel %vm674, %v638, 0.0
        %v676 = vsel %vm674, %v639, 0.0
        %v677 = vsel %vm674, %v640, 0.0
        %v678 = vsel %vm674, %v641, 0.0
        %v679 = vsel %vm674, %v642, 0.0
        %v680 = vsel %vm674, %v643, 0.0
        %v681 = vsel %vm674, %v644, 0.0
        %v682 = vsel %vm674, %v645, 0.0
        %v683 = vsel %vm674, %v646, 0.0
        %v684 = vsel %vm674, %v647, 0.0
        %v685 = vsel %vm674, %v648, 0.0
        %v686 = vsel %vm674, %v649, 0.0
        %v687 = vsel %vm674, %v650, 0.0
        %v688 = vsel %vm674, %v651, 0.0
        %v689 = vsel %vm674, %v652, 0.0
        %v690 = vsel %vm674, %v653, 0.0
        %v691 = vsel %vm674, %v654, 0.0
        %v692 = vsel %vm674, %v655, 0.0
        %v693 = vsel %vm674, %v656, 0.0
        %v694 = vsel %vm674, %v657, 0.0
        %v695 = vsel %vm674, %v658, 0.0
        %v696 = vsel %vm674, %v659, 0.0
        %v697 = vsel %vm674, %v660, 0.0
        %v698 = vsel %vm674, %v661, 0.0
        %v699 = vsel %vm674, %v662, 0.0
        %v700 = vsel %vm674, %v663, 0.0
        %v701 = vsel %vm674, %v664, 0.0
        %v702 = vsel %vm674, %v665, 0.0
        %v703 = vsel %vm674, %v666, 0.0
        %v704 = vsel %vm674, %v667, 0.0
        %v705 = vsel %vm674, %v668, 0.0
        %v706 = vsel %vm674, %v669, 0.0
        %v707 = vmul.f32 %v506, %v675
        %v708 = vmul.f32 %v507, %v676
        %v709 = vmul.f32 %v508, %v677
        %v710 = vmul.f32 %v509, %v678
        %v711 = vmul.f32 %v510, %v679
        %v712 = vmul.f32 %v511, %v680
        %v713 = vmul.f32 %v512, %v681
        %v714 = vmul.f32 %v513, %v682
        %v715 = vmul.f32 %v514, %v683
        %v716 = vmul.f32 %v515, %v684
        %v717 = vmul.f32 %v516, %v685
        %v718 = vmul.f32 %v517, %v686
        %v719 = vmul.f32 %v518, %v687
        %v720 = vmul.f32 %v519, %v688
        %v721 = vmul.f32 %v520, %v689
        %v722 = vmul.f32 %v521, %v690
        %v723 = vmul.f32 %v522, %v691
        %v724 = vmul.f32 %v523, %v692
        %v725 = vmul.f32 %v524, %v693
        %v726 = vmul.f32 %v525, %v694
        %v727 = vmul.f32 %v526, %v695
        %v728 = vmul.f32 %v527, %v696
        %v729 = vmul.f32 %v528, %v697
        %v730 = vmul.f32 %v529, %v698
        %v731 = vmul.f32 %v530, %v699
        %v732 = vmul.f32 %v531, %v700
        %v733 = vmul.f32 %v532, %v701
        %v734 = vmul.f32 %v533, %v702
        %v735 = vmul.f32 %v534, %v703
        %v736 = vmul.f32 %v535, %v704
        %v737 = vmul.f32 %v536, %v705
        %v738 = vmul.f32 %v537, %v706
        %vm739 = vcmask 130048
        %v740 = vsel %vm739, %v707, 0.0
        %v741 = vsel %vm739, %v708, 0.0
        %v742 = vadd.f32 %v740, %v741
        %v743 = vsel %vm739, %v709, 0.0
        %v744 = vadd.f32 %v742, %v743
        %v745 = vsel %vm739, %v710, 0.0
        %v746 = vadd.f32 %v744, %v745
        %v747 = vrot.slane %v746, 4
        %v748 = vadd.f32 %v746, %v747
        %v749 = vrot.slane %v748, 2
        %v750 = vadd.f32 %v748, %v749
        %v751 = vrot.slane %v750, 1
        %v752 = vadd.f32 %v750, %v751
        %v753 = vsel %vm739, %v711, 0.0
        %v754 = vsel %vm739, %v712, 0.0
        %v755 = vadd.f32 %v753, %v754
        %v756 = vsel %vm739, %v713, 0.0
        %v757 = vadd.f32 %v755, %v756
        %v758 = vsel %vm739, %v714, 0.0
        %v759 = vadd.f32 %v757, %v758
        %v760 = vrot.slane %v759, 4
        %v761 = vadd.f32 %v759, %v760
        %v762 = vrot.slane %v761, 2
        %v763 = vadd.f32 %v761, %v762
        %v764 = vrot.slane %v763, 1
        %v765 = vadd.f32 %v763, %v764
        %v766 = vsel %vm739, %v715, 0.0
        %v767 = vsel %vm739, %v716, 0.0
        %v768 = vadd.f32 %v766, %v767
        %v769 = vsel %vm739, %v717, 0.0
        %v770 = vadd.f32 %v768, %v769
        %v771 = vsel %vm739, %v718, 0.0
        %v772 = vadd.f32 %v770, %v771
        %v773 = vrot.slane %v772, 4
        %v774 = vadd.f32 %v772, %v773
        %v775 = vrot.slane %v774, 2
        %v776 = vadd.f32 %v774, %v775
        %v777 = vrot.slane %v776, 1
        %v778 = vadd.f32 %v776, %v777
        %v779 = vsel %vm739, %v719, 0.0
        %v780 = vsel %vm739, %v720, 0.0
        %v781 = vadd.f32 %v779, %v780
        %v782 = vsel %vm739, %v721, 0.0
        %v783 = vadd.f32 %v781, %v782
        %v784 = vsel %vm739, %v722, 0.0
        %v785 = vadd.f32 %v783, %v784
        %v786 = vrot.slane %v785, 4
        %v787 = vadd.f32 %v785, %v786
        %v788 = vrot.slane %v787, 2
        %v789 = vadd.f32 %v787, %v788
        %v790 = vrot.slane %v789, 1
        %v791 = vadd.f32 %v789, %v790
        %v792 = vsel %vm739, %v723, 0.0
        %v793 = vsel %vm739, %v724, 0.0
        %v794 = vadd.f32 %v792, %v793
        %v795 = vsel %vm739, %v725, 0.0
        %v796 = vadd.f32 %v794, %v795
        %v797 = vsel %vm739, %v726, 0.0
        %v798 = vadd.f32 %v796, %v797
        %v799 = vrot.slane %v798, 4
        %v800 = vadd.f32 %v798, %v799
        %v801 = vrot.slane %v800, 2
        %v802 = vadd.f32 %v800, %v801
        %v803 = vrot.slane %v802, 1
        %v804 = vadd.f32 %v802, %v803
        %v805 = vsel %vm739, %v727, 0.0
        %v806 = vsel %vm739, %v728, 0.0
        %v807 = vadd.f32 %v805, %v806
        %v808 = vsel %vm739, %v729, 0.0
        %v809 = vadd.f32 %v807, %v808
        %v810 = vsel %vm739, %v730, 0.0
        %v811 = vadd.f32 %v809, %v810
        %v812 = vrot.slane %v811, 4
        %v813 = vadd.f32 %v811, %v812
        %v814 = vrot.slane %v813, 2
        %v815 = vadd.f32 %v813, %v814
        %v816 = vrot.slane %v815, 1
        %v817 = vadd.f32 %v815, %v816
        %v818 = vsel %vm739, %v731, 0.0
        %v819 = vsel %vm739, %v732, 0.0
        %v820 = vadd.f32 %v818, %v819
        %v821 = vsel %vm739, %v733, 0.0
        %v822 = vadd.f32 %v820, %v821
        %v823 = vsel %vm739, %v734, 0.0
        %v824 = vadd.f32 %v822, %v823
        %v825 = vrot.slane %v824, 4
        %v826 = vadd.f32 %v824, %v825
        %v827 = vrot.slane %v826, 2
        %v828 = vadd.f32 %v826, %v827
        %v829 = vrot.slane %v828, 1
        %v830 = vadd.f32 %v828, %v829
        %v831 = vsel %vm739, %v735, 0.0
        %v832 = vsel %vm739, %v736, 0.0
        %v833 = vadd.f32 %v831, %v832
        %v834 = vsel %vm739, %v737, 0.0
        %v835 = vadd.f32 %v833, %v834
        %v836 = vsel %vm739, %v738, 0.0
        %v837 = vadd.f32 %v835, %v836
        %v838 = vrot.slane %v837, 4
        %v839 = vadd.f32 %v837, %v838
        %v840 = vrot.slane %v839, 2
        %v841 = vadd.f32 %v839, %v840
        %v842 = vrot.slane %v841, 1
        %v843 = vadd.f32 %v841, %v842
        %v844 = vsub.f32 -inf, %v752
        %v845 = vsub.f32 -inf, %v765
        %v846 = vsub.f32 -inf, %v778
        %v847 = vsub.f32 -inf, %v791
        %v848 = vsub.f32 -inf, %v804
        %v849 = vsub.f32 -inf, %v817
        %v850 = vsub.f32 -inf, %v830
        %v851 = vsub.f32 -inf, %v843
        %v852 = vmul.f32 %v844, 1.442695
        %v853 = vpow.pop %v852
        %v854 = vmul.f32 %v845, 1.442695
        %v855 = vpow.pop %v854
        %v856 = vmul.f32 %v846, 1.442695
        %v857 = vpow.pop %v856
        %v858 = vmul.f32 %v847, 1.442695
        %v859 = vpow.pop %v858
        %v860 = vmul.f32 %v848, 1.442695
        %v861 = vpow.pop %v860
        %v862 = vmul.f32 %v849, 1.442695
        %v863 = vpow.pop %v862
        %v864 = vmul.f32 %v850, 1.442695
        %v865 = vpow.pop %v864
        %v866 = vmul.f32 %v851, 1.442695
        %v867 = vpow.pop %v866
        %v868 = vsub.f32 %v752, %v752
        %v869 = vsub.f32 %v765, %v765
        %v870 = vsub.f32 %v778, %v778
        %v871 = vsub.f32 %v791, %v791
        %v872 = vsub.f32 %v804, %v804
        %v873 = vsub.f32 %v817, %v817
        %v874 = vsub.f32 %v830, %v830
        %v875 = vsub.f32 %v843, %v843
        %v876 = vmul.f32 %v868, 1.442695
        %v877 = vpow.pop %v876
        %v878 = vmul.f32 %v869, 1.442695
        %v879 = vpow.pop %v878
        %v880 = vmul.f32 %v870, 1.442695
        %v881 = vpow.pop %v880
        %v882 = vmul.f32 %v871, 1.442695
        %v883 = vpow.pop %v882
        %v884 = vmul.f32 %v872, 1.442695
        %v885 = vpow.pop %v884
        %v886 = vmul.f32 %v873, 1.442695
        %v887 = vpow.pop %v886
        %v888 = vmul.f32 %v874, 1.442695
        %v889 = vpow.pop %v888
        %v890 = vmul.f32 %v875, 1.442695
        %v891 = vpow.pop %v890
        %v892 = vmul.f32 %v853, 0.0
        %v893 = vmul.f32 %v855, 0.0
        %v894 = vmul.f32 %v857, 0.0
        %v895 = vmul.f32 %v859, 0.0
        %v896 = vmul.f32 %v861, 0.0
        %v897 = vmul.f32 %v863, 0.0
        %v898 = vmul.f32 %v865, 0.0
        %v899 = vmul.f32 %v867, 0.0
        %v900 = vadd.f32 %v892, %v877
        %v901 = vadd.f32 %v893, %v879
        %v902 = vadd.f32 %v894, %v881
        %v903 = vadd.f32 %v895, %v883
        %v904 = vadd.f32 %v896, %v885
        %v905 = vadd.f32 %v897, %v887
        %v906 = vadd.f32 %v898, %v889
        %v907 = vadd.f32 %v899, %v891
        %v908 = vmul.f32 %v877, -4.0
        %v909 = vmul.f32 %v879, -4.0
        %v910 = vmul.f32 %v881, -4.0
        %v911 = vmul.f32 %v883, -4.0
        %v912 = vmul.f32 %v885, -4.0
        %v913 = vmul.f32 %v887, -4.0
        %v914 = vmul.f32 %v889, -4.0
        %v915 = vmul.f32 %v891, -4.0
        %v916 = vadd.f32 %v892, %v908
        %v917 = vadd.f32 %v893, %v909
        %v918 = vadd.f32 %v894, %v910
        %v919 = vadd.f32 %v895, %v911
        %v920 = vadd.f32 %v896, %v912
        %v921 = vadd.f32 %v897, %v913
        %v922 = vadd.f32 %v898, %v914
        %v923 = vadd.f32 %v899, %v915
        %956 = vrot.lane.b32.xlu0 %v675, 127
        %v957 = vpop.permute.xlu0 %956
        %958 = vrot.lane.b32.xlu0 %v676, 127
        %v959 = vpop.permute.xlu0 %958
        %960 = vrot.lane.b32.xlu0 %v677, 127
        %v961 = vpop.permute.xlu0 %960
        %962 = vrot.lane.b32.xlu0 %v678, 127
        %v963 = vpop.permute.xlu0 %962
        %964 = vrot.lane.b32.xlu0 %v679, 127
        %v965 = vpop.permute.xlu0 %964
        %966 = vrot.lane.b32.xlu0 %v680, 127
        %v967 = vpop.permute.xlu0 %966
        %968 = vrot.lane.b32.xlu0 %v681, 127
        %v969 = vpop.permute.xlu0 %968
        %970 = vrot.lane.b32.xlu0 %v682, 127
        %v971 = vpop.permute.xlu0 %970
        %972 = vrot.lane.b32.xlu0 %v683, 127
        %v973 = vpop.permute.xlu0 %972
        %974 = vrot.lane.b32.xlu0 %v684, 127
        %v975 = vpop.permute.xlu0 %974
        %976 = vrot.lane.b32.xlu0 %v685, 127
        %v977 = vpop.permute.xlu0 %976
        %978 = vrot.lane.b32.xlu0 %v686, 127
        %v979 = vpop.permute.xlu0 %978
        %980 = vrot.lane.b32.xlu0 %v687, 127
        %v981 = vpop.permute.xlu0 %980
        %982 = vrot.lane.b32.xlu0 %v688, 127
        %v983 = vpop.permute.xlu0 %982
        %984 = vrot.lane.b32.xlu0 %v689, 127
        %v985 = vpop.permute.xlu0 %984
        %986 = vrot.lane.b32.xlu0 %v690, 127
        %v987 = vpop.permute.xlu0 %986
        %988 = vrot.lane.b32.xlu0 %v691, 127
        %v989 = vpop.permute.xlu0 %988
        %990 = vrot.lane.b32.xlu0 %v692, 127
        %v991 = vpop.permute.xlu0 %990
        %992 = vrot.lane.b32.xlu0 %v693, 127
        %v993 = vpop.permute.xlu0 %992
        %994 = vrot.lane.b32.xlu0 %v694, 127
        %v995 = vpop.permute.xlu0 %994
        %996 = vrot.lane.b32.xlu0 %v695, 127
        %v997 = vpop.permute.xlu0 %996
        %998 = vrot.lane.b32.xlu0 %v696, 127
        %v999 = vpop.permute.xlu0 %998
        %1000 = vrot.lane.b32.xlu0 %v697, 127
        %v1001 = vpop.permute.xlu0 %1000
        %1002 = vrot.lane.b32.xlu0 %v698, 127
        %v1003 = vpop.permute.xlu0 %1002
        %1004 = vrot.lane.b32.xlu0 %v699, 127
        %v1005 = vpop.permute.xlu0 %1004
        %1006 = vrot.lane.b32.xlu0 %v700, 127
        %v1007 = vpop.permute.xlu0 %1006
        %1008 = vrot.lane.b32.xlu0 %v701, 127
        %v1009 = vpop.permute.xlu0 %1008
        %1010 = vrot.lane.b32.xlu0 %v702, 127
        %v1011 = vpop.permute.xlu0 %1010
        %1012 = vrot.lane.b32.xlu0 %v703, 127
        %v1013 = vpop.permute.xlu0 %1012
        %1014 = vrot.lane.b32.xlu0 %v704, 127
        %v1015 = vpop.permute.xlu0 %1014
        %1016 = vrot.lane.b32.xlu0 %v705, 127
        %v1017 = vpop.permute.xlu0 %1016
        %1018 = vrot.lane.b32.xlu0 %v706, 127
        %v1019 = vpop.permute.xlu0 %1018
        %v1052 = vmul.f32 %v506, %v957
        %v1053 = vmul.f32 %v507, %v959
        %v1054 = vmul.f32 %v508, %v961
        %v1055 = vmul.f32 %v509, %v963
        %v1056 = vmul.f32 %v510, %v965
        %v1057 = vmul.f32 %v511, %v967
        %v1058 = vmul.f32 %v512, %v969
        %v1059 = vmul.f32 %v513, %v971
        %v1060 = vmul.f32 %v514, %v973
        %v1061 = vmul.f32 %v515, %v975
        %v1062 = vmul.f32 %v516, %v977
        %v1063 = vmul.f32 %v517, %v979
        %v1064 = vmul.f32 %v518, %v981
        %v1065 = vmul.f32 %v519, %v983
        %v1066 = vmul.f32 %v520, %v985
        %v1067 = vmul.f32 %v521, %v987
        %v1068 = vmul.f32 %v522, %v989
        %v1069 = vmul.f32 %v523, %v991
        %v1070 = vmul.f32 %v524, %v993
        %v1071 = vmul.f32 %v525, %v995
        %v1072 = vmul.f32 %v526, %v997
        %v1073 = vmul.f32 %v527, %v999
        %v1074 = vmul.f32 %v528, %v1001
        %v1075 = vmul.f32 %v529, %v1003
        %v1076 = vmul.f32 %v530, %v1005
        %v1077 = vmul.f32 %v531, %v1007
        %v1078 = vmul.f32 %v532, %v1009
        %v1079 = vmul.f32 %v533, %v1011
        %v1080 = vmul.f32 %v534, %v1013
        %v1081 = vmul.f32 %v535, %v1015
        %v1082 = vmul.f32 %v536, %v1017
        %v1083 = vmul.f32 %v537, %v1019
        %v1084 = vsel %vm739, %v1052, 0.0
        %v1085 = vsel %vm739, %v1053, 0.0
        %v1086 = vadd.f32 %v1084, %v1085
        %v1087 = vsel %vm739, %v1054, 0.0
        %v1088 = vadd.f32 %v1086, %v1087
        %v1089 = vsel %vm739, %v1055, 0.0
        %v1090 = vadd.f32 %v1088, %v1089
        %v1091 = vrot.slane %v1090, 4
        %v1092 = vadd.f32 %v1090, %v1091
        %v1093 = vrot.slane %v1092, 2
        %v1094 = vadd.f32 %v1092, %v1093
        %v1095 = vrot.slane %v1094, 1
        %v1096 = vadd.f32 %v1094, %v1095
        %v1097 = vsel %vm739, %v1056, 0.0
        %v1098 = vsel %vm739, %v1057, 0.0
        %v1099 = vadd.f32 %v1097, %v1098
        %v1100 = vsel %vm739, %v1058, 0.0
        %v1101 = vadd.f32 %v1099, %v1100
        %v1102 = vsel %vm739, %v1059, 0.0
        %v1103 = vadd.f32 %v1101, %v1102
        %v1104 = vrot.slane %v1103, 4
        %v1105 = vadd.f32 %v1103, %v1104
        %v1106 = vrot.slane %v1105, 2
        %v1107 = vadd.f32 %v1105, %v1106
        %v1108 = vrot.slane %v1107, 1
        %v1109 = vadd.f32 %v1107, %v1108
        %v1110 = vsel %vm739, %v1060, 0.0
        %v1111 = vsel %vm739, %v1061, 0.0
        %v1112 = vadd.f32 %v1110, %v1111
        %v1113 = vsel %vm739, %v1062, 0.0
        %v1114 = vadd.f32 %v1112, %v1113
        %v1115 = vsel %vm739, %v1063, 0.0
        %v1116 = vadd.f32 %v1114, %v1115
        %v1117 = vrot.slane %v1116, 4
        %v1118 = vadd.f32 %v1116, %v1117
        %v1119 = vrot.slane %v1118, 2
        %v1120 = vadd.f32 %v1118, %v1119
        %v1121 = vrot.slane %v1120, 1
        %v1122 = vadd.f32 %v1120, %v1121
        %v1123 = vsel %vm739, %v1064, 0.0
        %v1124 = vsel %vm739, %v1065, 0.0
        %v1125 = vadd.f32 %v1123, %v1124
        %v1126 = vsel %vm739, %v1066, 0.0
        %v1127 = vadd.f32 %v1125, %v1126
        %v1128 = vsel %vm739, %v1067, 0.0
        %v1129 = vadd.f32 %v1127, %v1128
        %v1130 = vrot.slane %v1129, 4
        %v1131 = vadd.f32 %v1129, %v1130
        %v1132 = vrot.slane %v1131, 2
        %v1133 = vadd.f32 %v1131, %v1132
        %v1134 = vrot.slane %v1133, 1
        %v1135 = vadd.f32 %v1133, %v1134
        %v1136 = vsel %vm739, %v1068, 0.0
        %v1137 = vsel %vm739, %v1069, 0.0
        %v1138 = vadd.f32 %v1136, %v1137
        %v1139 = vsel %vm739, %v1070, 0.0
        %v1140 = vadd.f32 %v1138, %v1139
        %v1141 = vsel %vm739, %v1071, 0.0
        %v1142 = vadd.f32 %v1140, %v1141
        %v1143 = vrot.slane %v1142, 4
        %v1144 = vadd.f32 %v1142, %v1143
        %v1145 = vrot.slane %v1144, 2
        %v1146 = vadd.f32 %v1144, %v1145
        %v1147 = vrot.slane %v1146, 1
        %v1148 = vadd.f32 %v1146, %v1147
        %v1149 = vsel %vm739, %v1072, 0.0
        %v1150 = vsel %vm739, %v1073, 0.0
        %v1151 = vadd.f32 %v1149, %v1150
        %v1152 = vsel %vm739, %v1074, 0.0
        %v1153 = vadd.f32 %v1151, %v1152
        %v1154 = vsel %vm739, %v1075, 0.0
        %v1155 = vadd.f32 %v1153, %v1154
        %v1156 = vrot.slane %v1155, 4
        %v1157 = vadd.f32 %v1155, %v1156
        %v1158 = vrot.slane %v1157, 2
        %v1159 = vadd.f32 %v1157, %v1158
        %v1160 = vrot.slane %v1159, 1
        %v1161 = vadd.f32 %v1159, %v1160
        %v1162 = vsel %vm739, %v1076, 0.0
        %v1163 = vsel %vm739, %v1077, 0.0
        %v1164 = vadd.f32 %v1162, %v1163
        %v1165 = vsel %vm739, %v1078, 0.0
        %v1166 = vadd.f32 %v1164, %v1165
        %v1167 = vsel %vm739, %v1079, 0.0
        %v1168 = vadd.f32 %v1166, %v1167
        %v1169 = vrot.slane %v1168, 4
        %v1170 = vadd.f32 %v1168, %v1169
        %v1171 = vrot.slane %v1170, 2
        %v1172 = vadd.f32 %v1170, %v1171
        %v1173 = vrot.slane %v1172, 1
        %v1174 = vadd.f32 %v1172, %v1173
        %v1175 = vsel %vm739, %v1080, 0.0
        %v1176 = vsel %vm739, %v1081, 0.0
        %v1177 = vadd.f32 %v1175, %v1176
        %v1178 = vsel %vm739, %v1082, 0.0
        %v1179 = vadd.f32 %v1177, %v1178
        %v1180 = vsel %vm739, %v1083, 0.0
        %v1181 = vadd.f32 %v1179, %v1180
        %v1182 = vrot.slane %v1181, 4
        %v1183 = vadd.f32 %v1181, %v1182
        %v1184 = vrot.slane %v1183, 2
        %v1185 = vadd.f32 %v1183, %v1184
        %v1186 = vrot.slane %v1185, 1
        %v1187 = vadd.f32 %v1185, %v1186
        %v1188 = vmax.f32 %v752, %v1096
        %v1189 = vmax.f32 %v765, %v1109
        %v1190 = vmax.f32 %v778, %v1122
        %v1191 = vmax.f32 %v791, %v1135
        %v1192 = vmax.f32 %v804, %v1148
        %v1193 = vmax.f32 %v817, %v1161
        %v1194 = vmax.f32 %v830, %v1174
        %v1195 = vmax.f32 %v843, %v1187
        %v1196 = vsub.f32 %v752, %v1188
        %v1197 = vsub.f32 %v765, %v1189
        %v1198 = vsub.f32 %v778, %v1190
        %v1199 = vsub.f32 %v791, %v1191
        %v1200 = vsub.f32 %v804, %v1192
        %v1201 = vsub.f32 %v817, %v1193
        %v1202 = vsub.f32 %v830, %v1194
        %v1203 = vsub.f32 %v843, %v1195
        %v1204 = vmul.f32 %v1196, 1.442695
        %v1205 = vpow.pop %v1204
        %v1206 = vmul.f32 %v1197, 1.442695
        %v1207 = vpow.pop %v1206
        %v1208 = vmul.f32 %v1198, 1.442695
        %v1209 = vpow.pop %v1208
        %v1210 = vmul.f32 %v1199, 1.442695
        %v1211 = vpow.pop %v1210
        %v1212 = vmul.f32 %v1200, 1.442695
        %v1213 = vpow.pop %v1212
        %v1214 = vmul.f32 %v1201, 1.442695
        %v1215 = vpow.pop %v1214
        %v1216 = vmul.f32 %v1202, 1.442695
        %v1217 = vpow.pop %v1216
        %v1218 = vmul.f32 %v1203, 1.442695
        %v1219 = vpow.pop %v1218
        %v1220 = vsub.f32 %v1096, %v1188
        %v1221 = vsub.f32 %v1109, %v1189
        %v1222 = vsub.f32 %v1122, %v1190
        %v1223 = vsub.f32 %v1135, %v1191
        %v1224 = vsub.f32 %v1148, %v1192
        %v1225 = vsub.f32 %v1161, %v1193
        %v1226 = vsub.f32 %v1174, %v1194
        %v1227 = vsub.f32 %v1187, %v1195
        %v1228 = vmul.f32 %v1220, 1.442695
        %v1229 = vpow.pop %v1228
        %v1230 = vmul.f32 %v1221, 1.442695
        %v1231 = vpow.pop %v1230
        %v1232 = vmul.f32 %v1222, 1.442695
        %v1233 = vpow.pop %v1232
        %v1234 = vmul.f32 %v1223, 1.442695
        %v1235 = vpow.pop %v1234
        %v1236 = vmul.f32 %v1224, 1.442695
        %v1237 = vpow.pop %v1236
        %v1238 = vmul.f32 %v1225, 1.442695
        %v1239 = vpow.pop %v1238
        %v1240 = vmul.f32 %v1226, 1.442695
        %v1241 = vpow.pop %v1240
        %v1242 = vmul.f32 %v1227, 1.442695
        %v1243 = vpow.pop %v1242
        %v1244 = vmul.f32 %v900, %v1205
        %v1245 = vmul.f32 %v901, %v1207
        %v1246 = vmul.f32 %v902, %v1209
        %v1247 = vmul.f32 %v903, %v1211
        %v1248 = vmul.f32 %v904, %v1213
        %v1249 = vmul.f32 %v905, %v1215
        %v1250 = vmul.f32 %v906, %v1217
        %v1251 = vmul.f32 %v907, %v1219
        %v1252 = vadd.f32 %v1244, %v1229
        %v1253 = vadd.f32 %v1245, %v1231
        %v1254 = vadd.f32 %v1246, %v1233
        %v1255 = vadd.f32 %v1247, %v1235
        %v1256 = vadd.f32 %v1248, %v1237
        %v1257 = vadd.f32 %v1249, %v1239
        %v1258 = vadd.f32 %v1250, %v1241
        %v1259 = vadd.f32 %v1251, %v1243
        %v1260 = vmul.f32 %v916, %v1205
        %v1261 = vmul.f32 %v917, %v1207
        %v1262 = vmul.f32 %v918, %v1209
        %v1263 = vmul.f32 %v919, %v1211
        %v1264 = vmul.f32 %v920, %v1213
        %v1265 = vmul.f32 %v921, %v1215
        %v1266 = vmul.f32 %v922, %v1217
        %v1267 = vmul.f32 %v923, %v1219
        %v1268 = vmul.f32 %v1229, -3.0
        %v1269 = vmul.f32 %v1231, -3.0
        %v1270 = vmul.f32 %v1233, -3.0
        %v1271 = vmul.f32 %v1235, -3.0
        %v1272 = vmul.f32 %v1237, -3.0
        %v1273 = vmul.f32 %v1239, -3.0
        %v1274 = vmul.f32 %v1241, -3.0
        %v1275 = vmul.f32 %v1243, -3.0
        %v1276 = vadd.f32 %v1260, %v1268
        %v1277 = vadd.f32 %v1261, %v1269
        %v1278 = vadd.f32 %v1262, %v1270
        %v1279 = vadd.f32 %v1263, %v1271
        %v1280 = vadd.f32 %v1264, %v1272
        %v1281 = vadd.f32 %v1265, %v1273
        %v1282 = vadd.f32 %v1266, %v1274
        %v1283 = vadd.f32 %v1267, %v1275
        %1284 = vrot.lane.b32.xlu0 %v675, 126
        %v1285 = vpop.permute.xlu0 %1284
        %1286 = vrot.lane.b32.xlu0 %v676, 126
        %v1287 = vpop.permute.xlu0 %1286
        %1288 = vrot.lane.b32.xlu0 %v677, 126
        %v1289 = vpop.permute.xlu0 %1288
        %1290 = vrot.lane.b32.xlu0 %v678, 126
        %v1291 = vpop.permute.xlu0 %1290
        %1292 = vrot.lane.b32.xlu0 %v679, 126
        %v1293 = vpop.permute.xlu0 %1292
        %1294 = vrot.lane.b32.xlu0 %v680, 126
        %v1295 = vpop.permute.xlu0 %1294
        %1296 = vrot.lane.b32.xlu0 %v681, 126
        %v1297 = vpop.permute.xlu0 %1296
        %1298 = vrot.lane.b32.xlu0 %v682, 126
        %v1299 = vpop.permute.xlu0 %1298
        %1300 = vrot.lane.b32.xlu0 %v683, 126
        %v1301 = vpop.permute.xlu0 %1300
        %1302 = vrot.lane.b32.xlu0 %v684, 126
        %v1303 = vpop.permute.xlu0 %1302
        %1304 = vrot.lane.b32.xlu0 %v685, 126
        %v1305 = vpop.permute.xlu0 %1304
        %1306 = vrot.lane.b32.xlu0 %v686, 126
        %v1307 = vpop.permute.xlu0 %1306
        %1308 = vrot.lane.b32.xlu0 %v687, 126
        %v1309 = vpop.permute.xlu0 %1308
        %1310 = vrot.lane.b32.xlu0 %v688, 126
        %v1311 = vpop.permute.xlu0 %1310
        %1312 = vrot.lane.b32.xlu0 %v689, 126
        %v1313 = vpop.permute.xlu0 %1312
        %1314 = vrot.lane.b32.xlu0 %v690, 126
        %v1315 = vpop.permute.xlu0 %1314
        %1316 = vrot.lane.b32.xlu0 %v691, 126
        %v1317 = vpop.permute.xlu0 %1316
        %1318 = vrot.lane.b32.xlu0 %v692, 126
        %v1319 = vpop.permute.xlu0 %1318
        %1320 = vrot.lane.b32.xlu0 %v693, 126
        %v1321 = vpop.permute.xlu0 %1320
        %1322 = vrot.lane.b32.xlu0 %v694, 126
        %v1323 = vpop.permute.xlu0 %1322
        %1324 = vrot.lane.b32.xlu0 %v695, 126
        %v1325 = vpop.permute.xlu0 %1324
        %1326 = vrot.lane.b32.xlu0 %v696, 126
        %v1327 = vpop.permute.xlu0 %1326
        %1328 = vrot.lane.b32.xlu0 %v697, 126
        %v1329 = vpop.permute.xlu0 %1328
        %1330 = vrot.lane.b32.xlu0 %v698, 126
        %v1331 = vpop.permute.xlu0 %1330
        %1332 = vrot.lane.b32.xlu0 %v699, 126
        %v1333 = vpop.permute.xlu0 %1332
        %1334 = vrot.lane.b32.xlu0 %v700, 126
        %v1335 = vpop.permute.xlu0 %1334
        %1336 = vrot.lane.b32.xlu0 %v701, 126
        %v1337 = vpop.permute.xlu0 %1336
        %1338 = vrot.lane.b32.xlu0 %v702, 126
        %v1339 = vpop.permute.xlu0 %1338
        %1340 = vrot.lane.b32.xlu0 %v703, 126
        %v1341 = vpop.permute.xlu0 %1340
        %1342 = vrot.lane.b32.xlu0 %v704, 126
        %v1343 = vpop.permute.xlu0 %1342
        %1344 = vrot.lane.b32.xlu0 %v705, 126
        %v1345 = vpop.permute.xlu0 %1344
        %1346 = vrot.lane.b32.xlu0 %v706, 126
        %v1347 = vpop.permute.xlu0 %1346
        %v1380 = vmul.f32 %v506, %v1285
        %v1381 = vmul.f32 %v507, %v1287
        %v1382 = vmul.f32 %v508, %v1289
        %v1383 = vmul.f32 %v509, %v1291
        %v1384 = vmul.f32 %v510, %v1293
        %v1385 = vmul.f32 %v511, %v1295
        %v1386 = vmul.f32 %v512, %v1297
        %v1387 = vmul.f32 %v513, %v1299
        %v1388 = vmul.f32 %v514, %v1301
        %v1389 = vmul.f32 %v515, %v1303
        %v1390 = vmul.f32 %v516, %v1305
        %v1391 = vmul.f32 %v517, %v1307
        %v1392 = vmul.f32 %v518, %v1309
        %v1393 = vmul.f32 %v519, %v1311
        %v1394 = vmul.f32 %v520, %v1313
        %v1395 = vmul.f32 %v521, %v1315
        %v1396 = vmul.f32 %v522, %v1317
        %v1397 = vmul.f32 %v523, %v1319
        %v1398 = vmul.f32 %v524, %v1321
        %v1399 = vmul.f32 %v525, %v1323
        %v1400 = vmul.f32 %v526, %v1325
        %v1401 = vmul.f32 %v527, %v1327
        %v1402 = vmul.f32 %v528, %v1329
        %v1403 = vmul.f32 %v529, %v1331
        %v1404 = vmul.f32 %v530, %v1333
        %v1405 = vmul.f32 %v531, %v1335
        %v1406 = vmul.f32 %v532, %v1337
        %v1407 = vmul.f32 %v533, %v1339
        %v1408 = vmul.f32 %v534, %v1341
        %v1409 = vmul.f32 %v535, %v1343
        %v1410 = vmul.f32 %v536, %v1345
        %v1411 = vmul.f32 %v537, %v1347
        %v1412 = vsel %vm739, %v1380, 0.0
        %v1413 = vsel %vm739, %v1381, 0.0
        %v1414 = vadd.f32 %v1412, %v1413
        %v1415 = vsel %vm739, %v1382, 0.0
        %v1416 = vadd.f32 %v1414, %v1415
        %v1417 = vsel %vm739, %v1383, 0.0
        %v1418 = vadd.f32 %v1416, %v1417
        %v1419 = vrot.slane %v1418, 4
        %v1420 = vadd.f32 %v1418, %v1419
        %v1421 = vrot.slane %v1420, 2
        %v1422 = vadd.f32 %v1420, %v1421
        %v1423 = vrot.slane %v1422, 1
        %v1424 = vadd.f32 %v1422, %v1423
        %v1425 = vsel %vm739, %v1384, 0.0
        %v1426 = vsel %vm739, %v1385, 0.0
        %v1427 = vadd.f32 %v1425, %v1426
        %v1428 = vsel %vm739, %v1386, 0.0
        %v1429 = vadd.f32 %v1427, %v1428
        %v1430 = vsel %vm739, %v1387, 0.0
        %v1431 = vadd.f32 %v1429, %v1430
        %v1432 = vrot.slane %v1431, 4
        %v1433 = vadd.f32 %v1431, %v1432
        %v1434 = vrot.slane %v1433, 2
        %v1435 = vadd.f32 %v1433, %v1434
        %v1436 = vrot.slane %v1435, 1
        %v1437 = vadd.f32 %v1435, %v1436
        %v1438 = vsel %vm739, %v1388, 0.0
        %v1439 = vsel %vm739, %v1389, 0.0
        %v1440 = vadd.f32 %v1438, %v1439
        %v1441 = vsel %vm739, %v1390, 0.0
        %v1442 = vadd.f32 %v1440, %v1441
        %v1443 = vsel %vm739, %v1391, 0.0
        %v1444 = vadd.f32 %v1442, %v1443
        %v1445 = vrot.slane %v1444, 4
        %v1446 = vadd.f32 %v1444, %v1445
        %v1447 = vrot.slane %v1446, 2
        %v1448 = vadd.f32 %v1446, %v1447
        %v1449 = vrot.slane %v1448, 1
        %v1450 = vadd.f32 %v1448, %v1449
        %v1451 = vsel %vm739, %v1392, 0.0
        %v1452 = vsel %vm739, %v1393, 0.0
        %v1453 = vadd.f32 %v1451, %v1452
        %v1454 = vsel %vm739, %v1394, 0.0
        %v1455 = vadd.f32 %v1453, %v1454
        %v1456 = vsel %vm739, %v1395, 0.0
        %v1457 = vadd.f32 %v1455, %v1456
        %v1458 = vrot.slane %v1457, 4
        %v1459 = vadd.f32 %v1457, %v1458
        %v1460 = vrot.slane %v1459, 2
        %v1461 = vadd.f32 %v1459, %v1460
        %v1462 = vrot.slane %v1461, 1
        %v1463 = vadd.f32 %v1461, %v1462
        %v1464 = vsel %vm739, %v1396, 0.0
        %v1465 = vsel %vm739, %v1397, 0.0
        %v1466 = vadd.f32 %v1464, %v1465
        %v1467 = vsel %vm739, %v1398, 0.0
        %v1468 = vadd.f32 %v1466, %v1467
        %v1469 = vsel %vm739, %v1399, 0.0
        %v1470 = vadd.f32 %v1468, %v1469
        %v1471 = vrot.slane %v1470, 4
        %v1472 = vadd.f32 %v1470, %v1471
        %v1473 = vrot.slane %v1472, 2
        %v1474 = vadd.f32 %v1472, %v1473
        %v1475 = vrot.slane %v1474, 1
        %v1476 = vadd.f32 %v1474, %v1475
        %v1477 = vsel %vm739, %v1400, 0.0
        %v1478 = vsel %vm739, %v1401, 0.0
        %v1479 = vadd.f32 %v1477, %v1478
        %v1480 = vsel %vm739, %v1402, 0.0
        %v1481 = vadd.f32 %v1479, %v1480
        %v1482 = vsel %vm739, %v1403, 0.0
        %v1483 = vadd.f32 %v1481, %v1482
        %v1484 = vrot.slane %v1483, 4
        %v1485 = vadd.f32 %v1483, %v1484
        %v1486 = vrot.slane %v1485, 2
        %v1487 = vadd.f32 %v1485, %v1486
        %v1488 = vrot.slane %v1487, 1
        %v1489 = vadd.f32 %v1487, %v1488
        %v1490 = vsel %vm739, %v1404, 0.0
        %v1491 = vsel %vm739, %v1405, 0.0
        %v1492 = vadd.f32 %v1490, %v1491
        %v1493 = vsel %vm739, %v1406, 0.0
        %v1494 = vadd.f32 %v1492, %v1493
        %v1495 = vsel %vm739, %v1407, 0.0
        %v1496 = vadd.f32 %v1494, %v1495
        %v1497 = vrot.slane %v1496, 4
        %v1498 = vadd.f32 %v1496, %v1497
        %v1499 = vrot.slane %v1498, 2
        %v1500 = vadd.f32 %v1498, %v1499
        %v1501 = vrot.slane %v1500, 1
        %v1502 = vadd.f32 %v1500, %v1501
        %v1503 = vsel %vm739, %v1408, 0.0
        %v1504 = vsel %vm739, %v1409, 0.0
        %v1505 = vadd.f32 %v1503, %v1504
        %v1506 = vsel %vm739, %v1410, 0.0
        %v1507 = vadd.f32 %v1505, %v1506
        %v1508 = vsel %vm739, %v1411, 0.0
        %v1509 = vadd.f32 %v1507, %v1508
        %v1510 = vrot.slane %v1509, 4
        %v1511 = vadd.f32 %v1509, %v1510
        %v1512 = vrot.slane %v1511, 2
        %v1513 = vadd.f32 %v1511, %v1512
        %v1514 = vrot.slane %v1513, 1
        %v1515 = vadd.f32 %v1513, %v1514
        %v1516 = vmax.f32 %v1188, %v1424
        %v1517 = vmax.f32 %v1189, %v1437
        %v1518 = vmax.f32 %v1190, %v1450
        %v1519 = vmax.f32 %v1191, %v1463
        %v1520 = vmax.f32 %v1192, %v1476
        %v1521 = vmax.f32 %v1193, %v1489
        %v1522 = vmax.f32 %v1194, %v1502
        %v1523 = vmax.f32 %v1195, %v1515
        %v1524 = vsub.f32 %v1188, %v1516
        %v1525 = vsub.f32 %v1189, %v1517
        %v1526 = vsub.f32 %v1190, %v1518
        %v1527 = vsub.f32 %v1191, %v1519
        %v1528 = vsub.f32 %v1192, %v1520
        %v1529 = vsub.f32 %v1193, %v1521
        %v1530 = vsub.f32 %v1194, %v1522
        %v1531 = vsub.f32 %v1195, %v1523
        %v1532 = vmul.f32 %v1524, 1.442695
        %v1533 = vpow.pop %v1532
        %v1534 = vmul.f32 %v1525, 1.442695
        %v1535 = vpow.pop %v1534
        %v1536 = vmul.f32 %v1526, 1.442695
        %v1537 = vpow.pop %v1536
        %v1538 = vmul.f32 %v1527, 1.442695
        %v1539 = vpow.pop %v1538
        %v1540 = vmul.f32 %v1528, 1.442695
        %v1541 = vpow.pop %v1540
        %v1542 = vmul.f32 %v1529, 1.442695
        %v1543 = vpow.pop %v1542
        %v1544 = vmul.f32 %v1530, 1.442695
        %v1545 = vpow.pop %v1544
        %v1546 = vmul.f32 %v1531, 1.442695
        %v1547 = vpow.pop %v1546
        %v1548 = vsub.f32 %v1424, %v1516
        %v1549 = vsub.f32 %v1437, %v1517
        %v1550 = vsub.f32 %v1450, %v1518
        %v1551 = vsub.f32 %v1463, %v1519
        %v1552 = vsub.f32 %v1476, %v1520
        %v1553 = vsub.f32 %v1489, %v1521
        %v1554 = vsub.f32 %v1502, %v1522
        %v1555 = vsub.f32 %v1515, %v1523
        %v1556 = vmul.f32 %v1548, 1.442695
        %v1557 = vpow.pop %v1556
        %v1558 = vmul.f32 %v1549, 1.442695
        %v1559 = vpow.pop %v1558
        %v1560 = vmul.f32 %v1550, 1.442695
        %v1561 = vpow.pop %v1560
        %v1562 = vmul.f32 %v1551, 1.442695
        %v1563 = vpow.pop %v1562
        %v1564 = vmul.f32 %v1552, 1.442695
        %v1565 = vpow.pop %v1564
        %v1566 = vmul.f32 %v1553, 1.442695
        %v1567 = vpow.pop %v1566
        %v1568 = vmul.f32 %v1554, 1.442695
        %v1569 = vpow.pop %v1568
        %v1570 = vmul.f32 %v1555, 1.442695
        %v1571 = vpow.pop %v1570
        %v1572 = vmul.f32 %v1252, %v1533
        %v1573 = vmul.f32 %v1253, %v1535
        %v1574 = vmul.f32 %v1254, %v1537
        %v1575 = vmul.f32 %v1255, %v1539
        %v1576 = vmul.f32 %v1256, %v1541
        %v1577 = vmul.f32 %v1257, %v1543
        %v1578 = vmul.f32 %v1258, %v1545
        %v1579 = vmul.f32 %v1259, %v1547
        %v1580 = vadd.f32 %v1572, %v1557
        %v1581 = vadd.f32 %v1573, %v1559
        %v1582 = vadd.f32 %v1574, %v1561
        %v1583 = vadd.f32 %v1575, %v1563
        %v1584 = vadd.f32 %v1576, %v1565
        %v1585 = vadd.f32 %v1577, %v1567
        %v1586 = vadd.f32 %v1578, %v1569
        %v1587 = vadd.f32 %v1579, %v1571
        %v1588 = vmul.f32 %v1276, %v1533
        %v1589 = vmul.f32 %v1277, %v1535
        %v1590 = vmul.f32 %v1278, %v1537
        %v1591 = vmul.f32 %v1279, %v1539
        %v1592 = vmul.f32 %v1280, %v1541
        %v1593 = vmul.f32 %v1281, %v1543
        %v1594 = vmul.f32 %v1282, %v1545
        %v1595 = vmul.f32 %v1283, %v1547
        %v1596 = vmul.f32 %v1557, -2.0
        %v1597 = vmul.f32 %v1559, -2.0
        %v1598 = vmul.f32 %v1561, -2.0
        %v1599 = vmul.f32 %v1563, -2.0
        %v1600 = vmul.f32 %v1565, -2.0
        %v1601 = vmul.f32 %v1567, -2.0
        %v1602 = vmul.f32 %v1569, -2.0
        %v1603 = vmul.f32 %v1571, -2.0
        %v1604 = vadd.f32 %v1588, %v1596
        %v1605 = vadd.f32 %v1589, %v1597
        %v1606 = vadd.f32 %v1590, %v1598
        %v1607 = vadd.f32 %v1591, %v1599
        %v1608 = vadd.f32 %v1592, %v1600
        %v1609 = vadd.f32 %v1593, %v1601
        %v1610 = vadd.f32 %v1594, %v1602
        %v1611 = vadd.f32 %v1595, %v1603
        %1612 = vrot.lane.b32.xlu0 %v675, 125
        %v1613 = vpop.permute.xlu0 %1612
        %1614 = vrot.lane.b32.xlu0 %v676, 125
        %v1615 = vpop.permute.xlu0 %1614
        %1616 = vrot.lane.b32.xlu0 %v677, 125
        %v1617 = vpop.permute.xlu0 %1616
        %1618 = vrot.lane.b32.xlu0 %v678, 125
        %v1619 = vpop.permute.xlu0 %1618
        %1620 = vrot.lane.b32.xlu0 %v679, 125
        %v1621 = vpop.permute.xlu0 %1620
        %1622 = vrot.lane.b32.xlu0 %v680, 125
        %v1623 = vpop.permute.xlu0 %1622
        %1624 = vrot.lane.b32.xlu0 %v681, 125
        %v1625 = vpop.permute.xlu0 %1624
        %1626 = vrot.lane.b32.xlu0 %v682, 125
        %v1627 = vpop.permute.xlu0 %1626
        %1628 = vrot.lane.b32.xlu0 %v683, 125
        %v1629 = vpop.permute.xlu0 %1628
        %1630 = vrot.lane.b32.xlu0 %v684, 125
        %v1631 = vpop.permute.xlu0 %1630
        %1632 = vrot.lane.b32.xlu0 %v685, 125
        %v1633 = vpop.permute.xlu0 %1632
        %1634 = vrot.lane.b32.xlu0 %v686, 125
        %v1635 = vpop.permute.xlu0 %1634
        %1636 = vrot.lane.b32.xlu0 %v687, 125
        %v1637 = vpop.permute.xlu0 %1636
        %1638 = vrot.lane.b32.xlu0 %v688, 125
        %v1639 = vpop.permute.xlu0 %1638
        %1640 = vrot.lane.b32.xlu0 %v689, 125
        %v1641 = vpop.permute.xlu0 %1640
        %1642 = vrot.lane.b32.xlu0 %v690, 125
        %v1643 = vpop.permute.xlu0 %1642
        %1644 = vrot.lane.b32.xlu0 %v691, 125
        %v1645 = vpop.permute.xlu0 %1644
        %1646 = vrot.lane.b32.xlu0 %v692, 125
        %v1647 = vpop.permute.xlu0 %1646
        %1648 = vrot.lane.b32.xlu0 %v693, 125
        %v1649 = vpop.permute.xlu0 %1648
        %1650 = vrot.lane.b32.xlu0 %v694, 125
        %v1651 = vpop.permute.xlu0 %1650
        %1652 = vrot.lane.b32.xlu0 %v695, 125
        %v1653 = vpop.permute.xlu0 %1652
        %1654 = vrot.lane.b32.xlu0 %v696, 125
        %v1655 = vpop.permute.xlu0 %1654
        %1656 = vrot.lane.b32.xlu0 %v697, 125
        %v1657 = vpop.permute.xlu0 %1656
        %1658 = vrot.lane.b32.xlu0 %v698, 125
        %v1659 = vpop.permute.xlu0 %1658
        %1660 = vrot.lane.b32.xlu0 %v699, 125
        %v1661 = vpop.permute.xlu0 %1660
        %1662 = vrot.lane.b32.xlu0 %v700, 125
        %v1663 = vpop.permute.xlu0 %1662
        %1664 = vrot.lane.b32.xlu0 %v701, 125
        %v1665 = vpop.permute.xlu0 %1664
        %1666 = vrot.lane.b32.xlu0 %v702, 125
        %v1667 = vpop.permute.xlu0 %1666
        %1668 = vrot.lane.b32.xlu0 %v703, 125
        %v1669 = vpop.permute.xlu0 %1668
        %1670 = vrot.lane.b32.xlu0 %v704, 125
        %v1671 = vpop.permute.xlu0 %1670
        %1672 = vrot.lane.b32.xlu0 %v705, 125
        %v1673 = vpop.permute.xlu0 %1672
        %1674 = vrot.lane.b32.xlu0 %v706, 125
        %v1675 = vpop.permute.xlu0 %1674
        %v1708 = vmul.f32 %v506, %v1613
        %v1709 = vmul.f32 %v507, %v1615
        %v1710 = vmul.f32 %v508, %v1617
        %v1711 = vmul.f32 %v509, %v1619
        %v1712 = vmul.f32 %v510, %v1621
        %v1713 = vmul.f32 %v511, %v1623
        %v1714 = vmul.f32 %v512, %v1625
        %v1715 = vmul.f32 %v513, %v1627
        %v1716 = vmul.f32 %v514, %v1629
        %v1717 = vmul.f32 %v515, %v1631
        %v1718 = vmul.f32 %v516, %v1633
        %v1719 = vmul.f32 %v517, %v1635
        %v1720 = vmul.f32 %v518, %v1637
        %v1721 = vmul.f32 %v519, %v1639
        %v1722 = vmul.f32 %v520, %v1641
        %v1723 = vmul.f32 %v521, %v1643
        %v1724 = vmul.f32 %v522, %v1645
        %v1725 = vmul.f32 %v523, %v1647
        %v1726 = vmul.f32 %v524, %v1649
        %v1727 = vmul.f32 %v525, %v1651
        %v1728 = vmul.f32 %v526, %v1653
        %v1729 = vmul.f32 %v527, %v1655
        %v1730 = vmul.f32 %v528, %v1657
        %v1731 = vmul.f32 %v529, %v1659
        %v1732 = vmul.f32 %v530, %v1661
        %v1733 = vmul.f32 %v531, %v1663
        %v1734 = vmul.f32 %v532, %v1665
        %v1735 = vmul.f32 %v533, %v1667
        %v1736 = vmul.f32 %v534, %v1669
        %v1737 = vmul.f32 %v535, %v1671
        %v1738 = vmul.f32 %v536, %v1673
        %v1739 = vmul.f32 %v537, %v1675
        %v1740 = vsel %vm739, %v1708, 0.0
        %v1741 = vsel %vm739, %v1709, 0.0
        %v1742 = vadd.f32 %v1740, %v1741
        %v1743 = vsel %vm739, %v1710, 0.0
        %v1744 = vadd.f32 %v1742, %v1743
        %v1745 = vsel %vm739, %v1711, 0.0
        %v1746 = vadd.f32 %v1744, %v1745
        %v1747 = vrot.slane %v1746, 4
        %v1748 = vadd.f32 %v1746, %v1747
        %v1749 = vrot.slane %v1748, 2
        %v1750 = vadd.f32 %v1748, %v1749
        %v1751 = vrot.slane %v1750, 1
        %v1752 = vadd.f32 %v1750, %v1751
        %v1753 = vsel %vm739, %v1712, 0.0
        %v1754 = vsel %vm739, %v1713, 0.0
        %v1755 = vadd.f32 %v1753, %v1754
        %v1756 = vsel %vm739, %v1714, 0.0
        %v1757 = vadd.f32 %v1755, %v1756
        %v1758 = vsel %vm739, %v1715, 0.0
        %v1759 = vadd.f32 %v1757, %v1758
        %v1760 = vrot.slane %v1759, 4
        %v1761 = vadd.f32 %v1759, %v1760
        %v1762 = vrot.slane %v1761, 2
        %v1763 = vadd.f32 %v1761, %v1762
        %v1764 = vrot.slane %v1763, 1
        %v1765 = vadd.f32 %v1763, %v1764
        %v1766 = vsel %vm739, %v1716, 0.0
        %v1767 = vsel %vm739, %v1717, 0.0
        %v1768 = vadd.f32 %v1766, %v1767
        %v1769 = vsel %vm739, %v1718, 0.0
        %v1770 = vadd.f32 %v1768, %v1769
        %v1771 = vsel %vm739, %v1719, 0.0
        %v1772 = vadd.f32 %v1770, %v1771
        %v1773 = vrot.slane %v1772, 4
        %v1774 = vadd.f32 %v1772, %v1773
        %v1775 = vrot.slane %v1774, 2
        %v1776 = vadd.f32 %v1774, %v1775
        %v1777 = vrot.slane %v1776, 1
        %v1778 = vadd.f32 %v1776, %v1777
        %v1779 = vsel %vm739, %v1720, 0.0
        %v1780 = vsel %vm739, %v1721, 0.0
        %v1781 = vadd.f32 %v1779, %v1780
        %v1782 = vsel %vm739, %v1722, 0.0
        %v1783 = vadd.f32 %v1781, %v1782
        %v1784 = vsel %vm739, %v1723, 0.0
        %v1785 = vadd.f32 %v1783, %v1784
        %v1786 = vrot.slane %v1785, 4
        %v1787 = vadd.f32 %v1785, %v1786
        %v1788 = vrot.slane %v1787, 2
        %v1789 = vadd.f32 %v1787, %v1788
        %v1790 = vrot.slane %v1789, 1
        %v1791 = vadd.f32 %v1789, %v1790
        %v1792 = vsel %vm739, %v1724, 0.0
        %v1793 = vsel %vm739, %v1725, 0.0
        %v1794 = vadd.f32 %v1792, %v1793
        %v1795 = vsel %vm739, %v1726, 0.0
        %v1796 = vadd.f32 %v1794, %v1795
        %v1797 = vsel %vm739, %v1727, 0.0
        %v1798 = vadd.f32 %v1796, %v1797
        %v1799 = vrot.slane %v1798, 4
        %v1800 = vadd.f32 %v1798, %v1799
        %v1801 = vrot.slane %v1800, 2
        %v1802 = vadd.f32 %v1800, %v1801
        %v1803 = vrot.slane %v1802, 1
        %v1804 = vadd.f32 %v1802, %v1803
        %v1805 = vsel %vm739, %v1728, 0.0
        %v1806 = vsel %vm739, %v1729, 0.0
        %v1807 = vadd.f32 %v1805, %v1806
        %v1808 = vsel %vm739, %v1730, 0.0
        %v1809 = vadd.f32 %v1807, %v1808
        %v1810 = vsel %vm739, %v1731, 0.0
        %v1811 = vadd.f32 %v1809, %v1810
        %v1812 = vrot.slane %v1811, 4
        %v1813 = vadd.f32 %v1811, %v1812
        %v1814 = vrot.slane %v1813, 2
        %v1815 = vadd.f32 %v1813, %v1814
        %v1816 = vrot.slane %v1815, 1
        %v1817 = vadd.f32 %v1815, %v1816
        %v1818 = vsel %vm739, %v1732, 0.0
        %v1819 = vsel %vm739, %v1733, 0.0
        %v1820 = vadd.f32 %v1818, %v1819
        %v1821 = vsel %vm739, %v1734, 0.0
        %v1822 = vadd.f32 %v1820, %v1821
        %v1823 = vsel %vm739, %v1735, 0.0
        %v1824 = vadd.f32 %v1822, %v1823
        %v1825 = vrot.slane %v1824, 4
        %v1826 = vadd.f32 %v1824, %v1825
        %v1827 = vrot.slane %v1826, 2
        %v1828 = vadd.f32 %v1826, %v1827
        %v1829 = vrot.slane %v1828, 1
        %v1830 = vadd.f32 %v1828, %v1829
        %v1831 = vsel %vm739, %v1736, 0.0
        %v1832 = vsel %vm739, %v1737, 0.0
        %v1833 = vadd.f32 %v1831, %v1832
        %v1834 = vsel %vm739, %v1738, 0.0
        %v1835 = vadd.f32 %v1833, %v1834
        %v1836 = vsel %vm739, %v1739, 0.0
        %v1837 = vadd.f32 %v1835, %v1836
        %v1838 = vrot.slane %v1837, 4
        %v1839 = vadd.f32 %v1837, %v1838
        %v1840 = vrot.slane %v1839, 2
        %v1841 = vadd.f32 %v1839, %v1840
        %v1842 = vrot.slane %v1841, 1
        %v1843 = vadd.f32 %v1841, %v1842
        %v1844 = vmax.f32 %v1516, %v1752
        %v1845 = vmax.f32 %v1517, %v1765
        %v1846 = vmax.f32 %v1518, %v1778
        %v1847 = vmax.f32 %v1519, %v1791
        %v1848 = vmax.f32 %v1520, %v1804
        %v1849 = vmax.f32 %v1521, %v1817
        %v1850 = vmax.f32 %v1522, %v1830
        %v1851 = vmax.f32 %v1523, %v1843
        %v1852 = vsub.f32 %v1516, %v1844
        %v1853 = vsub.f32 %v1517, %v1845
        %v1854 = vsub.f32 %v1518, %v1846
        %v1855 = vsub.f32 %v1519, %v1847
        %v1856 = vsub.f32 %v1520, %v1848
        %v1857 = vsub.f32 %v1521, %v1849
        %v1858 = vsub.f32 %v1522, %v1850
        %v1859 = vsub.f32 %v1523, %v1851
        %v1860 = vmul.f32 %v1852, 1.442695
        %v1861 = vpow.pop %v1860
        %v1862 = vmul.f32 %v1853, 1.442695
        %v1863 = vpow.pop %v1862
        %v1864 = vmul.f32 %v1854, 1.442695
        %v1865 = vpow.pop %v1864
        %v1866 = vmul.f32 %v1855, 1.442695
        %v1867 = vpow.pop %v1866
        %v1868 = vmul.f32 %v1856, 1.442695
        %v1869 = vpow.pop %v1868
        %v1870 = vmul.f32 %v1857, 1.442695
        %v1871 = vpow.pop %v1870
        %v1872 = vmul.f32 %v1858, 1.442695
        %v1873 = vpow.pop %v1872
        %v1874 = vmul.f32 %v1859, 1.442695
        %v1875 = vpow.pop %v1874
        %v1876 = vsub.f32 %v1752, %v1844
        %v1877 = vsub.f32 %v1765, %v1845
        %v1878 = vsub.f32 %v1778, %v1846
        %v1879 = vsub.f32 %v1791, %v1847
        %v1880 = vsub.f32 %v1804, %v1848
        %v1881 = vsub.f32 %v1817, %v1849
        %v1882 = vsub.f32 %v1830, %v1850
        %v1883 = vsub.f32 %v1843, %v1851
        %v1884 = vmul.f32 %v1876, 1.442695
        %v1885 = vpow.pop %v1884
        %v1886 = vmul.f32 %v1877, 1.442695
        %v1887 = vpow.pop %v1886
        %v1888 = vmul.f32 %v1878, 1.442695
        %v1889 = vpow.pop %v1888
        %v1890 = vmul.f32 %v1879, 1.442695
        %v1891 = vpow.pop %v1890
        %v1892 = vmul.f32 %v1880, 1.442695
        %v1893 = vpow.pop %v1892
        %v1894 = vmul.f32 %v1881, 1.442695
        %v1895 = vpow.pop %v1894
        %v1896 = vmul.f32 %v1882, 1.442695
        %v1897 = vpow.pop %v1896
        %v1898 = vmul.f32 %v1883, 1.442695
        %v1899 = vpow.pop %v1898
        %v1900 = vmul.f32 %v1580, %v1861
        %v1901 = vmul.f32 %v1581, %v1863
        %v1902 = vmul.f32 %v1582, %v1865
        %v1903 = vmul.f32 %v1583, %v1867
        %v1904 = vmul.f32 %v1584, %v1869
        %v1905 = vmul.f32 %v1585, %v1871
        %v1906 = vmul.f32 %v1586, %v1873
        %v1907 = vmul.f32 %v1587, %v1875
        %v1908 = vadd.f32 %v1900, %v1885
        %v1909 = vadd.f32 %v1901, %v1887
        %v1910 = vadd.f32 %v1902, %v1889
        %v1911 = vadd.f32 %v1903, %v1891
        %v1912 = vadd.f32 %v1904, %v1893
        %v1913 = vadd.f32 %v1905, %v1895
        %v1914 = vadd.f32 %v1906, %v1897
        %v1915 = vadd.f32 %v1907, %v1899
        %v1916 = vmul.f32 %v1604, %v1861
        %v1917 = vmul.f32 %v1605, %v1863
        %v1918 = vmul.f32 %v1606, %v1865
        %v1919 = vmul.f32 %v1607, %v1867
        %v1920 = vmul.f32 %v1608, %v1869
        %v1921 = vmul.f32 %v1609, %v1871
        %v1922 = vmul.f32 %v1610, %v1873
        %v1923 = vmul.f32 %v1611, %v1875
        %v1924 = vmul.f32 %v1885, -1.0
        %v1925 = vmul.f32 %v1887, -1.0
        %v1926 = vmul.f32 %v1889, -1.0
        %v1927 = vmul.f32 %v1891, -1.0
        %v1928 = vmul.f32 %v1893, -1.0
        %v1929 = vmul.f32 %v1895, -1.0
        %v1930 = vmul.f32 %v1897, -1.0
        %v1931 = vmul.f32 %v1899, -1.0
        %v1932 = vadd.f32 %v1916, %v1924
        %v1933 = vadd.f32 %v1917, %v1925
        %v1934 = vadd.f32 %v1918, %v1926
        %v1935 = vadd.f32 %v1919, %v1927
        %v1936 = vadd.f32 %v1920, %v1928
        %v1937 = vadd.f32 %v1921, %v1929
        %v1938 = vadd.f32 %v1922, %v1930
        %v1939 = vadd.f32 %v1923, %v1931
        %1940 = vrot.lane.b32.xlu0 %v675, 124
        %v1941 = vpop.permute.xlu0 %1940
        %1942 = vrot.lane.b32.xlu0 %v676, 124
        %v1943 = vpop.permute.xlu0 %1942
        %1944 = vrot.lane.b32.xlu0 %v677, 124
        %v1945 = vpop.permute.xlu0 %1944
        %1946 = vrot.lane.b32.xlu0 %v678, 124
        %v1947 = vpop.permute.xlu0 %1946
        %1948 = vrot.lane.b32.xlu0 %v679, 124
        %v1949 = vpop.permute.xlu0 %1948
        %1950 = vrot.lane.b32.xlu0 %v680, 124
        %v1951 = vpop.permute.xlu0 %1950
        %1952 = vrot.lane.b32.xlu0 %v681, 124
        %v1953 = vpop.permute.xlu0 %1952
        %1954 = vrot.lane.b32.xlu0 %v682, 124
        %v1955 = vpop.permute.xlu0 %1954
        %1956 = vrot.lane.b32.xlu0 %v683, 124
        %v1957 = vpop.permute.xlu0 %1956
        %1958 = vrot.lane.b32.xlu0 %v684, 124
        %v1959 = vpop.permute.xlu0 %1958
        %1960 = vrot.lane.b32.xlu0 %v685, 124
        %v1961 = vpop.permute.xlu0 %1960
        %1962 = vrot.lane.b32.xlu0 %v686, 124
        %v1963 = vpop.permute.xlu0 %1962
        %1964 = vrot.lane.b32.xlu0 %v687, 124
        %v1965 = vpop.permute.xlu0 %1964
        %1966 = vrot.lane.b32.xlu0 %v688, 124
        %v1967 = vpop.permute.xlu0 %1966
        %1968 = vrot.lane.b32.xlu0 %v689, 124
        %v1969 = vpop.permute.xlu0 %1968
        %1970 = vrot.lane.b32.xlu0 %v690, 124
        %v1971 = vpop.permute.xlu0 %1970
        %1972 = vrot.lane.b32.xlu0 %v691, 124
        %v1973 = vpop.permute.xlu0 %1972
        %1974 = vrot.lane.b32.xlu0 %v692, 124
        %v1975 = vpop.permute.xlu0 %1974
        %1976 = vrot.lane.b32.xlu0 %v693, 124
        %v1977 = vpop.permute.xlu0 %1976
        %1978 = vrot.lane.b32.xlu0 %v694, 124
        %v1979 = vpop.permute.xlu0 %1978
        %1980 = vrot.lane.b32.xlu0 %v695, 124
        %v1981 = vpop.permute.xlu0 %1980
        %1982 = vrot.lane.b32.xlu0 %v696, 124
        %v1983 = vpop.permute.xlu0 %1982
        %1984 = vrot.lane.b32.xlu0 %v697, 124
        %v1985 = vpop.permute.xlu0 %1984
        %1986 = vrot.lane.b32.xlu0 %v698, 124
        %v1987 = vpop.permute.xlu0 %1986
        %1988 = vrot.lane.b32.xlu0 %v699, 124
        %v1989 = vpop.permute.xlu0 %1988
        %1990 = vrot.lane.b32.xlu0 %v700, 124
        %v1991 = vpop.permute.xlu0 %1990
        %1992 = vrot.lane.b32.xlu0 %v701, 124
        %v1993 = vpop.permute.xlu0 %1992
        %1994 = vrot.lane.b32.xlu0 %v702, 124
        %v1995 = vpop.permute.xlu0 %1994
        %1996 = vrot.lane.b32.xlu0 %v703, 124
        %v1997 = vpop.permute.xlu0 %1996
        %1998 = vrot.lane.b32.xlu0 %v704, 124
        %v1999 = vpop.permute.xlu0 %1998
        %2000 = vrot.lane.b32.xlu0 %v705, 124
        %v2001 = vpop.permute.xlu0 %2000
        %2002 = vrot.lane.b32.xlu0 %v706, 124
        %v2003 = vpop.permute.xlu0 %2002
        %v2036 = vmul.f32 %v506, %v1941
        %v2037 = vmul.f32 %v507, %v1943
        %v2038 = vmul.f32 %v508, %v1945
        %v2039 = vmul.f32 %v509, %v1947
        %v2040 = vmul.f32 %v510, %v1949
        %v2041 = vmul.f32 %v511, %v1951
        %v2042 = vmul.f32 %v512, %v1953
        %v2043 = vmul.f32 %v513, %v1955
        %v2044 = vmul.f32 %v514, %v1957
        %v2045 = vmul.f32 %v515, %v1959
        %v2046 = vmul.f32 %v516, %v1961
        %v2047 = vmul.f32 %v517, %v1963
        %v2048 = vmul.f32 %v518, %v1965
        %v2049 = vmul.f32 %v519, %v1967
        %v2050 = vmul.f32 %v520, %v1969
        %v2051 = vmul.f32 %v521, %v1971
        %v2052 = vmul.f32 %v522, %v1973
        %v2053 = vmul.f32 %v523, %v1975
        %v2054 = vmul.f32 %v524, %v1977
        %v2055 = vmul.f32 %v525, %v1979
        %v2056 = vmul.f32 %v526, %v1981
        %v2057 = vmul.f32 %v527, %v1983
        %v2058 = vmul.f32 %v528, %v1985
        %v2059 = vmul.f32 %v529, %v1987
        %v2060 = vmul.f32 %v530, %v1989
        %v2061 = vmul.f32 %v531, %v1991
        %v2062 = vmul.f32 %v532, %v1993
        %v2063 = vmul.f32 %v533, %v1995
        %v2064 = vmul.f32 %v534, %v1997
        %v2065 = vmul.f32 %v535, %v1999
        %v2066 = vmul.f32 %v536, %v2001
        %v2067 = vmul.f32 %v537, %v2003
        %v2068 = vsel %vm739, %v2036, 0.0
        %v2069 = vsel %vm739, %v2037, 0.0
        %v2070 = vadd.f32 %v2068, %v2069
        %v2071 = vsel %vm739, %v2038, 0.0
        %v2072 = vadd.f32 %v2070, %v2071
        %v2073 = vsel %vm739, %v2039, 0.0
        %v2074 = vadd.f32 %v2072, %v2073
        %v2075 = vrot.slane %v2074, 4
        %v2076 = vadd.f32 %v2074, %v2075
        %v2077 = vrot.slane %v2076, 2
        %v2078 = vadd.f32 %v2076, %v2077
        %v2079 = vrot.slane %v2078, 1
        %v2080 = vadd.f32 %v2078, %v2079
        %v2081 = vsel %vm739, %v2040, 0.0
        %v2082 = vsel %vm739, %v2041, 0.0
        %v2083 = vadd.f32 %v2081, %v2082
        %v2084 = vsel %vm739, %v2042, 0.0
        %v2085 = vadd.f32 %v2083, %v2084
        %v2086 = vsel %vm739, %v2043, 0.0
        %v2087 = vadd.f32 %v2085, %v2086
        %v2088 = vrot.slane %v2087, 4
        %v2089 = vadd.f32 %v2087, %v2088
        %v2090 = vrot.slane %v2089, 2
        %v2091 = vadd.f32 %v2089, %v2090
        %v2092 = vrot.slane %v2091, 1
        %v2093 = vadd.f32 %v2091, %v2092
        %v2094 = vsel %vm739, %v2044, 0.0
        %v2095 = vsel %vm739, %v2045, 0.0
        %v2096 = vadd.f32 %v2094, %v2095
        %v2097 = vsel %vm739, %v2046, 0.0
        %v2098 = vadd.f32 %v2096, %v2097
        %v2099 = vsel %vm739, %v2047, 0.0
        %v2100 = vadd.f32 %v2098, %v2099
        %v2101 = vrot.slane %v2100, 4
        %v2102 = vadd.f32 %v2100, %v2101
        %v2103 = vrot.slane %v2102, 2
        %v2104 = vadd.f32 %v2102, %v2103
        %v2105 = vrot.slane %v2104, 1
        %v2106 = vadd.f32 %v2104, %v2105
        %v2107 = vsel %vm739, %v2048, 0.0
        %v2108 = vsel %vm739, %v2049, 0.0
        %v2109 = vadd.f32 %v2107, %v2108
        %v2110 = vsel %vm739, %v2050, 0.0
        %v2111 = vadd.f32 %v2109, %v2110
        %v2112 = vsel %vm739, %v2051, 0.0
        %v2113 = vadd.f32 %v2111, %v2112
        %v2114 = vrot.slane %v2113, 4
        %v2115 = vadd.f32 %v2113, %v2114
        %v2116 = vrot.slane %v2115, 2
        %v2117 = vadd.f32 %v2115, %v2116
        %v2118 = vrot.slane %v2117, 1
        %v2119 = vadd.f32 %v2117, %v2118
        %v2120 = vsel %vm739, %v2052, 0.0
        %v2121 = vsel %vm739, %v2053, 0.0
        %v2122 = vadd.f32 %v2120, %v2121
        %v2123 = vsel %vm739, %v2054, 0.0
        %v2124 = vadd.f32 %v2122, %v2123
        %v2125 = vsel %vm739, %v2055, 0.0
        %v2126 = vadd.f32 %v2124, %v2125
        %v2127 = vrot.slane %v2126, 4
        %v2128 = vadd.f32 %v2126, %v2127
        %v2129 = vrot.slane %v2128, 2
        %v2130 = vadd.f32 %v2128, %v2129
        %v2131 = vrot.slane %v2130, 1
        %v2132 = vadd.f32 %v2130, %v2131
        %v2133 = vsel %vm739, %v2056, 0.0
        %v2134 = vsel %vm739, %v2057, 0.0
        %v2135 = vadd.f32 %v2133, %v2134
        %v2136 = vsel %vm739, %v2058, 0.0
        %v2137 = vadd.f32 %v2135, %v2136
        %v2138 = vsel %vm739, %v2059, 0.0
        %v2139 = vadd.f32 %v2137, %v2138
        %v2140 = vrot.slane %v2139, 4
        %v2141 = vadd.f32 %v2139, %v2140
        %v2142 = vrot.slane %v2141, 2
        %v2143 = vadd.f32 %v2141, %v2142
        %v2144 = vrot.slane %v2143, 1
        %v2145 = vadd.f32 %v2143, %v2144
        %v2146 = vsel %vm739, %v2060, 0.0
        %v2147 = vsel %vm739, %v2061, 0.0
        %v2148 = vadd.f32 %v2146, %v2147
        %v2149 = vsel %vm739, %v2062, 0.0
        %v2150 = vadd.f32 %v2148, %v2149
        %v2151 = vsel %vm739, %v2063, 0.0
        %v2152 = vadd.f32 %v2150, %v2151
        %v2153 = vrot.slane %v2152, 4
        %v2154 = vadd.f32 %v2152, %v2153
        %v2155 = vrot.slane %v2154, 2
        %v2156 = vadd.f32 %v2154, %v2155
        %v2157 = vrot.slane %v2156, 1
        %v2158 = vadd.f32 %v2156, %v2157
        %v2159 = vsel %vm739, %v2064, 0.0
        %v2160 = vsel %vm739, %v2065, 0.0
        %v2161 = vadd.f32 %v2159, %v2160
        %v2162 = vsel %vm739, %v2066, 0.0
        %v2163 = vadd.f32 %v2161, %v2162
        %v2164 = vsel %vm739, %v2067, 0.0
        %v2165 = vadd.f32 %v2163, %v2164
        %v2166 = vrot.slane %v2165, 4
        %v2167 = vadd.f32 %v2165, %v2166
        %v2168 = vrot.slane %v2167, 2
        %v2169 = vadd.f32 %v2167, %v2168
        %v2170 = vrot.slane %v2169, 1
        %v2171 = vadd.f32 %v2169, %v2170
        %v2172 = vmax.f32 %v1844, %v2080
        %v2173 = vmax.f32 %v1845, %v2093
        %v2174 = vmax.f32 %v1846, %v2106
        %v2175 = vmax.f32 %v1847, %v2119
        %v2176 = vmax.f32 %v1848, %v2132
        %v2177 = vmax.f32 %v1849, %v2145
        %v2178 = vmax.f32 %v1850, %v2158
        %v2179 = vmax.f32 %v1851, %v2171
        %v2180 = vsub.f32 %v1844, %v2172
        %v2181 = vsub.f32 %v1845, %v2173
        %v2182 = vsub.f32 %v1846, %v2174
        %v2183 = vsub.f32 %v1847, %v2175
        %v2184 = vsub.f32 %v1848, %v2176
        %v2185 = vsub.f32 %v1849, %v2177
        %v2186 = vsub.f32 %v1850, %v2178
        %v2187 = vsub.f32 %v1851, %v2179
        %v2188 = vmul.f32 %v2180, 1.442695
        %v2189 = vpow.pop %v2188
        %v2190 = vmul.f32 %v2181, 1.442695
        %v2191 = vpow.pop %v2190
        %v2192 = vmul.f32 %v2182, 1.442695
        %v2193 = vpow.pop %v2192
        %v2194 = vmul.f32 %v2183, 1.442695
        %v2195 = vpow.pop %v2194
        %v2196 = vmul.f32 %v2184, 1.442695
        %v2197 = vpow.pop %v2196
        %v2198 = vmul.f32 %v2185, 1.442695
        %v2199 = vpow.pop %v2198
        %v2200 = vmul.f32 %v2186, 1.442695
        %v2201 = vpow.pop %v2200
        %v2202 = vmul.f32 %v2187, 1.442695
        %v2203 = vpow.pop %v2202
        %v2204 = vsub.f32 %v2080, %v2172
        %v2205 = vsub.f32 %v2093, %v2173
        %v2206 = vsub.f32 %v2106, %v2174
        %v2207 = vsub.f32 %v2119, %v2175
        %v2208 = vsub.f32 %v2132, %v2176
        %v2209 = vsub.f32 %v2145, %v2177
        %v2210 = vsub.f32 %v2158, %v2178
        %v2211 = vsub.f32 %v2171, %v2179
        %v2212 = vmul.f32 %v2204, 1.442695
        %v2213 = vpow.pop %v2212
        %v2214 = vmul.f32 %v2205, 1.442695
        %v2215 = vpow.pop %v2214
        %v2216 = vmul.f32 %v2206, 1.442695
        %v2217 = vpow.pop %v2216
        %v2218 = vmul.f32 %v2207, 1.442695
        %v2219 = vpow.pop %v2218
        %v2220 = vmul.f32 %v2208, 1.442695
        %v2221 = vpow.pop %v2220
        %v2222 = vmul.f32 %v2209, 1.442695
        %v2223 = vpow.pop %v2222
        %v2224 = vmul.f32 %v2210, 1.442695
        %v2225 = vpow.pop %v2224
        %v2226 = vmul.f32 %v2211, 1.442695
        %v2227 = vpow.pop %v2226
        %v2228 = vmul.f32 %v1908, %v2189
        %v2229 = vmul.f32 %v1909, %v2191
        %v2230 = vmul.f32 %v1910, %v2193
        %v2231 = vmul.f32 %v1911, %v2195
        %v2232 = vmul.f32 %v1912, %v2197
        %v2233 = vmul.f32 %v1913, %v2199
        %v2234 = vmul.f32 %v1914, %v2201
        %v2235 = vmul.f32 %v1915, %v2203
        %v2236 = vadd.f32 %v2228, %v2213
        %v2237 = vadd.f32 %v2229, %v2215
        %v2238 = vadd.f32 %v2230, %v2217
        %v2239 = vadd.f32 %v2231, %v2219
        %v2240 = vadd.f32 %v2232, %v2221
        %v2241 = vadd.f32 %v2233, %v2223
        %v2242 = vadd.f32 %v2234, %v2225
        %v2243 = vadd.f32 %v2235, %v2227
        %v2244 = vmul.f32 %v1932, %v2189
        %v2245 = vmul.f32 %v1933, %v2191
        %v2246 = vmul.f32 %v1934, %v2193
        %v2247 = vmul.f32 %v1935, %v2195
        %v2248 = vmul.f32 %v1936, %v2197
        %v2249 = vmul.f32 %v1937, %v2199
        %v2250 = vmul.f32 %v1938, %v2201
        %v2251 = vmul.f32 %v1939, %v2203
        %v2252 = vmul.f32 %v2213, 0.0
        %v2253 = vmul.f32 %v2215, 0.0
        %v2254 = vmul.f32 %v2217, 0.0
        %v2255 = vmul.f32 %v2219, 0.0
        %v2256 = vmul.f32 %v2221, 0.0
        %v2257 = vmul.f32 %v2223, 0.0
        %v2258 = vmul.f32 %v2225, 0.0
        %v2259 = vmul.f32 %v2227, 0.0
        %v2260 = vadd.f32 %v2244, %v2252
        %v2261 = vadd.f32 %v2245, %v2253
        %v2262 = vadd.f32 %v2246, %v2254
        %v2263 = vadd.f32 %v2247, %v2255
        %v2264 = vadd.f32 %v2248, %v2256
        %v2265 = vadd.f32 %v2249, %v2257
        %v2266 = vadd.f32 %v2250, %v2258
        %v2267 = vadd.f32 %v2251, %v2259
        %2268 = vrot.lane.b32.xlu0 %v675, 123
        %v2269 = vpop.permute.xlu0 %2268
        %2270 = vrot.lane.b32.xlu0 %v676, 123
        %v2271 = vpop.permute.xlu0 %2270
        %2272 = vrot.lane.b32.xlu0 %v677, 123
        %v2273 = vpop.permute.xlu0 %2272
        %2274 = vrot.lane.b32.xlu0 %v678, 123
        %v2275 = vpop.permute.xlu0 %2274
        %2276 = vrot.lane.b32.xlu0 %v679, 123
        %v2277 = vpop.permute.xlu0 %2276
        %2278 = vrot.lane.b32.xlu0 %v680, 123
        %v2279 = vpop.permute.xlu0 %2278
        %2280 = vrot.lane.b32.xlu0 %v681, 123
        %v2281 = vpop.permute.xlu0 %2280
        %2282 = vrot.lane.b32.xlu0 %v682, 123
        %v2283 = vpop.permute.xlu0 %2282
        %2284 = vrot.lane.b32.xlu0 %v683, 123
        %v2285 = vpop.permute.xlu0 %2284
        %2286 = vrot.lane.b32.xlu0 %v684, 123
        %v2287 = vpop.permute.xlu0 %2286
        %2288 = vrot.lane.b32.xlu0 %v685, 123
        %v2289 = vpop.permute.xlu0 %2288
        %2290 = vrot.lane.b32.xlu0 %v686, 123
        %v2291 = vpop.permute.xlu0 %2290
        %2292 = vrot.lane.b32.xlu0 %v687, 123
        %v2293 = vpop.permute.xlu0 %2292
        %2294 = vrot.lane.b32.xlu0 %v688, 123
        %v2295 = vpop.permute.xlu0 %2294
        %2296 = vrot.lane.b32.xlu0 %v689, 123
        %v2297 = vpop.permute.xlu0 %2296
        %2298 = vrot.lane.b32.xlu0 %v690, 123
        %v2299 = vpop.permute.xlu0 %2298
        %2300 = vrot.lane.b32.xlu0 %v691, 123
        %v2301 = vpop.permute.xlu0 %2300
        %2302 = vrot.lane.b32.xlu0 %v692, 123
        %v2303 = vpop.permute.xlu0 %2302
        %2304 = vrot.lane.b32.xlu0 %v693, 123
        %v2305 = vpop.permute.xlu0 %2304
        %2306 = vrot.lane.b32.xlu0 %v694, 123
        %v2307 = vpop.permute.xlu0 %2306
        %2308 = vrot.lane.b32.xlu0 %v695, 123
        %v2309 = vpop.permute.xlu0 %2308
        %2310 = vrot.lane.b32.xlu0 %v696, 123
        %v2311 = vpop.permute.xlu0 %2310
        %2312 = vrot.lane.b32.xlu0 %v697, 123
        %v2313 = vpop.permute.xlu0 %2312
        %2314 = vrot.lane.b32.xlu0 %v698, 123
        %v2315 = vpop.permute.xlu0 %2314
        %2316 = vrot.lane.b32.xlu0 %v699, 123
        %v2317 = vpop.permute.xlu0 %2316
        %2318 = vrot.lane.b32.xlu0 %v700, 123
        %v2319 = vpop.permute.xlu0 %2318
        %2320 = vrot.lane.b32.xlu0 %v701, 123
        %v2321 = vpop.permute.xlu0 %2320
        %2322 = vrot.lane.b32.xlu0 %v702, 123
        %v2323 = vpop.permute.xlu0 %2322
        %2324 = vrot.lane.b32.xlu0 %v703, 123
        %v2325 = vpop.permute.xlu0 %2324
        %2326 = vrot.lane.b32.xlu0 %v704, 123
        %v2327 = vpop.permute.xlu0 %2326
        %2328 = vrot.lane.b32.xlu0 %v705, 123
        %v2329 = vpop.permute.xlu0 %2328
        %2330 = vrot.lane.b32.xlu0 %v706, 123
        %v2331 = vpop.permute.xlu0 %2330
        %v2364 = vmul.f32 %v506, %v2269
        %v2365 = vmul.f32 %v507, %v2271
        %v2366 = vmul.f32 %v508, %v2273
        %v2367 = vmul.f32 %v509, %v2275
        %v2368 = vmul.f32 %v510, %v2277
        %v2369 = vmul.f32 %v511, %v2279
        %v2370 = vmul.f32 %v512, %v2281
        %v2371 = vmul.f32 %v513, %v2283
        %v2372 = vmul.f32 %v514, %v2285
        %v2373 = vmul.f32 %v515, %v2287
        %v2374 = vmul.f32 %v516, %v2289
        %v2375 = vmul.f32 %v517, %v2291
        %v2376 = vmul.f32 %v518, %v2293
        %v2377 = vmul.f32 %v519, %v2295
        %v2378 = vmul.f32 %v520, %v2297
        %v2379 = vmul.f32 %v521, %v2299
        %v2380 = vmul.f32 %v522, %v2301
        %v2381 = vmul.f32 %v523, %v2303
        %v2382 = vmul.f32 %v524, %v2305
        %v2383 = vmul.f32 %v525, %v2307
        %v2384 = vmul.f32 %v526, %v2309
        %v2385 = vmul.f32 %v527, %v2311
        %v2386 = vmul.f32 %v528, %v2313
        %v2387 = vmul.f32 %v529, %v2315
        %v2388 = vmul.f32 %v530, %v2317
        %v2389 = vmul.f32 %v531, %v2319
        %v2390 = vmul.f32 %v532, %v2321
        %v2391 = vmul.f32 %v533, %v2323
        %v2392 = vmul.f32 %v534, %v2325
        %v2393 = vmul.f32 %v535, %v2327
        %v2394 = vmul.f32 %v536, %v2329
        %v2395 = vmul.f32 %v537, %v2331
        %v2396 = vsel %vm739, %v2364, 0.0
        %v2397 = vsel %vm739, %v2365, 0.0
        %v2398 = vadd.f32 %v2396, %v2397
        %v2399 = vsel %vm739, %v2366, 0.0
        %v2400 = vadd.f32 %v2398, %v2399
        %v2401 = vsel %vm739, %v2367, 0.0
        %v2402 = vadd.f32 %v2400, %v2401
        %v2403 = vrot.slane %v2402, 4
        %v2404 = vadd.f32 %v2402, %v2403
        %v2405 = vrot.slane %v2404, 2
        %v2406 = vadd.f32 %v2404, %v2405
        %v2407 = vrot.slane %v2406, 1
        %v2408 = vadd.f32 %v2406, %v2407
        %v2409 = vsel %vm739, %v2368, 0.0
        %v2410 = vsel %vm739, %v2369, 0.0
        %v2411 = vadd.f32 %v2409, %v2410
        %v2412 = vsel %vm739, %v2370, 0.0
        %v2413 = vadd.f32 %v2411, %v2412
        %v2414 = vsel %vm739, %v2371, 0.0
        %v2415 = vadd.f32 %v2413, %v2414
        %v2416 = vrot.slane %v2415, 4
        %v2417 = vadd.f32 %v2415, %v2416
        %v2418 = vrot.slane %v2417, 2
        %v2419 = vadd.f32 %v2417, %v2418
        %v2420 = vrot.slane %v2419, 1
        %v2421 = vadd.f32 %v2419, %v2420
        %v2422 = vsel %vm739, %v2372, 0.0
        %v2423 = vsel %vm739, %v2373, 0.0
        %v2424 = vadd.f32 %v2422, %v2423
        %v2425 = vsel %vm739, %v2374, 0.0
        %v2426 = vadd.f32 %v2424, %v2425
        %v2427 = vsel %vm739, %v2375, 0.0
        %v2428 = vadd.f32 %v2426, %v2427
        %v2429 = vrot.slane %v2428, 4
        %v2430 = vadd.f32 %v2428, %v2429
        %v2431 = vrot.slane %v2430, 2
        %v2432 = vadd.f32 %v2430, %v2431
        %v2433 = vrot.slane %v2432, 1
        %v2434 = vadd.f32 %v2432, %v2433
        %v2435 = vsel %vm739, %v2376, 0.0
        %v2436 = vsel %vm739, %v2377, 0.0
        %v2437 = vadd.f32 %v2435, %v2436
        %v2438 = vsel %vm739, %v2378, 0.0
        %v2439 = vadd.f32 %v2437, %v2438
        %v2440 = vsel %vm739, %v2379, 0.0
        %v2441 = vadd.f32 %v2439, %v2440
        %v2442 = vrot.slane %v2441, 4
        %v2443 = vadd.f32 %v2441, %v2442
        %v2444 = vrot.slane %v2443, 2
        %v2445 = vadd.f32 %v2443, %v2444
        %v2446 = vrot.slane %v2445, 1
        %v2447 = vadd.f32 %v2445, %v2446
        %v2448 = vsel %vm739, %v2380, 0.0
        %v2449 = vsel %vm739, %v2381, 0.0
        %v2450 = vadd.f32 %v2448, %v2449
        %v2451 = vsel %vm739, %v2382, 0.0
        %v2452 = vadd.f32 %v2450, %v2451
        %v2453 = vsel %vm739, %v2383, 0.0
        %v2454 = vadd.f32 %v2452, %v2453
        %v2455 = vrot.slane %v2454, 4
        %v2456 = vadd.f32 %v2454, %v2455
        %v2457 = vrot.slane %v2456, 2
        %v2458 = vadd.f32 %v2456, %v2457
        %v2459 = vrot.slane %v2458, 1
        %v2460 = vadd.f32 %v2458, %v2459
        %v2461 = vsel %vm739, %v2384, 0.0
        %v2462 = vsel %vm739, %v2385, 0.0
        %v2463 = vadd.f32 %v2461, %v2462
        %v2464 = vsel %vm739, %v2386, 0.0
        %v2465 = vadd.f32 %v2463, %v2464
        %v2466 = vsel %vm739, %v2387, 0.0
        %v2467 = vadd.f32 %v2465, %v2466
        %v2468 = vrot.slane %v2467, 4
        %v2469 = vadd.f32 %v2467, %v2468
        %v2470 = vrot.slane %v2469, 2
        %v2471 = vadd.f32 %v2469, %v2470
        %v2472 = vrot.slane %v2471, 1
        %v2473 = vadd.f32 %v2471, %v2472
        %v2474 = vsel %vm739, %v2388, 0.0
        %v2475 = vsel %vm739, %v2389, 0.0
        %v2476 = vadd.f32 %v2474, %v2475
        %v2477 = vsel %vm739, %v2390, 0.0
        %v2478 = vadd.f32 %v2476, %v2477
        %v2479 = vsel %vm739, %v2391, 0.0
        %v2480 = vadd.f32 %v2478, %v2479
        %v2481 = vrot.slane %v2480, 4
        %v2482 = vadd.f32 %v2480, %v2481
        %v2483 = vrot.slane %v2482, 2
        %v2484 = vadd.f32 %v2482, %v2483
        %v2485 = vrot.slane %v2484, 1
        %v2486 = vadd.f32 %v2484, %v2485
        %v2487 = vsel %vm739, %v2392, 0.0
        %v2488 = vsel %vm739, %v2393, 0.0
        %v2489 = vadd.f32 %v2487, %v2488
        %v2490 = vsel %vm739, %v2394, 0.0
        %v2491 = vadd.f32 %v2489, %v2490
        %v2492 = vsel %vm739, %v2395, 0.0
        %v2493 = vadd.f32 %v2491, %v2492
        %v2494 = vrot.slane %v2493, 4
        %v2495 = vadd.f32 %v2493, %v2494
        %v2496 = vrot.slane %v2495, 2
        %v2497 = vadd.f32 %v2495, %v2496
        %v2498 = vrot.slane %v2497, 1
        %v2499 = vadd.f32 %v2497, %v2498
        %v2500 = vmax.f32 %v2172, %v2408
        %v2501 = vmax.f32 %v2173, %v2421
        %v2502 = vmax.f32 %v2174, %v2434
        %v2503 = vmax.f32 %v2175, %v2447
        %v2504 = vmax.f32 %v2176, %v2460
        %v2505 = vmax.f32 %v2177, %v2473
        %v2506 = vmax.f32 %v2178, %v2486
        %v2507 = vmax.f32 %v2179, %v2499
        %v2508 = vsub.f32 %v2172, %v2500
        %v2509 = vsub.f32 %v2173, %v2501
        %v2510 = vsub.f32 %v2174, %v2502
        %v2511 = vsub.f32 %v2175, %v2503
        %v2512 = vsub.f32 %v2176, %v2504
        %v2513 = vsub.f32 %v2177, %v2505
        %v2514 = vsub.f32 %v2178, %v2506
        %v2515 = vsub.f32 %v2179, %v2507
        %v2516 = vmul.f32 %v2508, 1.442695
        %v2517 = vpow.pop %v2516
        %v2518 = vmul.f32 %v2509, 1.442695
        %v2519 = vpow.pop %v2518
        %v2520 = vmul.f32 %v2510, 1.442695
        %v2521 = vpow.pop %v2520
        %v2522 = vmul.f32 %v2511, 1.442695
        %v2523 = vpow.pop %v2522
        %v2524 = vmul.f32 %v2512, 1.442695
        %v2525 = vpow.pop %v2524
        %v2526 = vmul.f32 %v2513, 1.442695
        %v2527 = vpow.pop %v2526
        %v2528 = vmul.f32 %v2514, 1.442695
        %v2529 = vpow.pop %v2528
        %v2530 = vmul.f32 %v2515, 1.442695
        %v2531 = vpow.pop %v2530
        %v2532 = vsub.f32 %v2408, %v2500
        %v2533 = vsub.f32 %v2421, %v2501
        %v2534 = vsub.f32 %v2434, %v2502
        %v2535 = vsub.f32 %v2447, %v2503
        %v2536 = vsub.f32 %v2460, %v2504
        %v2537 = vsub.f32 %v2473, %v2505
        %v2538 = vsub.f32 %v2486, %v2506
        %v2539 = vsub.f32 %v2499, %v2507
        %v2540 = vmul.f32 %v2532, 1.442695
        %v2541 = vpow.pop %v2540
        %v2542 = vmul.f32 %v2533, 1.442695
        %v2543 = vpow.pop %v2542
        %v2544 = vmul.f32 %v2534, 1.442695
        %v2545 = vpow.pop %v2544
        %v2546 = vmul.f32 %v2535, 1.442695
        %v2547 = vpow.pop %v2546
        %v2548 = vmul.f32 %v2536, 1.442695
        %v2549 = vpow.pop %v2548
        %v2550 = vmul.f32 %v2537, 1.442695
        %v2551 = vpow.pop %v2550
        %v2552 = vmul.f32 %v2538, 1.442695
        %v2553 = vpow.pop %v2552
        %v2554 = vmul.f32 %v2539, 1.442695
        %v2555 = vpow.pop %v2554
        %v2556 = vmul.f32 %v2236, %v2517
        %v2557 = vmul.f32 %v2237, %v2519
        %v2558 = vmul.f32 %v2238, %v2521
        %v2559 = vmul.f32 %v2239, %v2523
        %v2560 = vmul.f32 %v2240, %v2525
        %v2561 = vmul.f32 %v2241, %v2527
        %v2562 = vmul.f32 %v2242, %v2529
        %v2563 = vmul.f32 %v2243, %v2531
        %v2564 = vadd.f32 %v2556, %v2541
        %v2565 = vadd.f32 %v2557, %v2543
        %v2566 = vadd.f32 %v2558, %v2545
        %v2567 = vadd.f32 %v2559, %v2547
        %v2568 = vadd.f32 %v2560, %v2549
        %v2569 = vadd.f32 %v2561, %v2551
        %v2570 = vadd.f32 %v2562, %v2553
        %v2571 = vadd.f32 %v2563, %v2555
        %v2572 = vmul.f32 %v2260, %v2517
        %v2573 = vmul.f32 %v2261, %v2519
        %v2574 = vmul.f32 %v2262, %v2521
        %v2575 = vmul.f32 %v2263, %v2523
        %v2576 = vmul.f32 %v2264, %v2525
        %v2577 = vmul.f32 %v2265, %v2527
        %v2578 = vmul.f32 %v2266, %v2529
        %v2579 = vmul.f32 %v2267, %v2531
        %v2580 = vadd.f32 %v2572, %v2541
        %v2581 = vadd.f32 %v2573, %v2543
        %v2582 = vadd.f32 %v2574, %v2545
        %v2583 = vadd.f32 %v2575, %v2547
        %v2584 = vadd.f32 %v2576, %v2549
        %v2585 = vadd.f32 %v2577, %v2551
        %v2586 = vadd.f32 %v2578, %v2553
        %v2587 = vadd.f32 %v2579, %v2555
        %2588 = vrot.lane.b32.xlu0 %v675, 122
        %v2589 = vpop.permute.xlu0 %2588
        %2590 = vrot.lane.b32.xlu0 %v676, 122
        %v2591 = vpop.permute.xlu0 %2590
        %2592 = vrot.lane.b32.xlu0 %v677, 122
        %v2593 = vpop.permute.xlu0 %2592
        %2594 = vrot.lane.b32.xlu0 %v678, 122
        %v2595 = vpop.permute.xlu0 %2594
        %2596 = vrot.lane.b32.xlu0 %v679, 122
        %v2597 = vpop.permute.xlu0 %2596
        %2598 = vrot.lane.b32.xlu0 %v680, 122
        %v2599 = vpop.permute.xlu0 %2598
        %2600 = vrot.lane.b32.xlu0 %v681, 122
        %v2601 = vpop.permute.xlu0 %2600
        %2602 = vrot.lane.b32.xlu0 %v682, 122
        %v2603 = vpop.permute.xlu0 %2602
        %2604 = vrot.lane.b32.xlu0 %v683, 122
        %v2605 = vpop.permute.xlu0 %2604
        %2606 = vrot.lane.b32.xlu0 %v684, 122
        %v2607 = vpop.permute.xlu0 %2606
        %2608 = vrot.lane.b32.xlu0 %v685, 122
        %v2609 = vpop.permute.xlu0 %2608
        %2610 = vrot.lane.b32.xlu0 %v686, 122
        %v2611 = vpop.permute.xlu0 %2610
        %2612 = vrot.lane.b32.xlu0 %v687, 122
        %v2613 = vpop.permute.xlu0 %2612
        %2614 = vrot.lane.b32.xlu0 %v688, 122
        %v2615 = vpop.permute.xlu0 %2614
        %2616 = vrot.lane.b32.xlu0 %v689, 122
        %v2617 = vpop.permute.xlu0 %2616
        %2618 = vrot.lane.b32.xlu0 %v690, 122
        %v2619 = vpop.permute.xlu0 %2618
        %2620 = vrot.lane.b32.xlu0 %v691, 122
        %v2621 = vpop.permute.xlu0 %2620
        %2622 = vrot.lane.b32.xlu0 %v692, 122
        %v2623 = vpop.permute.xlu0 %2622
        %2624 = vrot.lane.b32.xlu0 %v693, 122
        %v2625 = vpop.permute.xlu0 %2624
        %2626 = vrot.lane.b32.xlu0 %v694, 122
        %v2627 = vpop.permute.xlu0 %2626
        %2628 = vrot.lane.b32.xlu0 %v695, 122
        %v2629 = vpop.permute.xlu0 %2628
        %2630 = vrot.lane.b32.xlu0 %v696, 122
        %v2631 = vpop.permute.xlu0 %2630
        %2632 = vrot.lane.b32.xlu0 %v697, 122
        %v2633 = vpop.permute.xlu0 %2632
        %2634 = vrot.lane.b32.xlu0 %v698, 122
        %v2635 = vpop.permute.xlu0 %2634
        %2636 = vrot.lane.b32.xlu0 %v699, 122
        %v2637 = vpop.permute.xlu0 %2636
        %2638 = vrot.lane.b32.xlu0 %v700, 122
        %v2639 = vpop.permute.xlu0 %2638
        %2640 = vrot.lane.b32.xlu0 %v701, 122
        %v2641 = vpop.permute.xlu0 %2640
        %2642 = vrot.lane.b32.xlu0 %v702, 122
        %v2643 = vpop.permute.xlu0 %2642
        %2644 = vrot.lane.b32.xlu0 %v703, 122
        %v2645 = vpop.permute.xlu0 %2644
        %2646 = vrot.lane.b32.xlu0 %v704, 122
        %v2647 = vpop.permute.xlu0 %2646
        %2648 = vrot.lane.b32.xlu0 %v705, 122
        %v2649 = vpop.permute.xlu0 %2648
        %2650 = vrot.lane.b32.xlu0 %v706, 122
        %v2651 = vpop.permute.xlu0 %2650
        %v2684 = vmul.f32 %v506, %v2589
        %v2685 = vmul.f32 %v507, %v2591
        %v2686 = vmul.f32 %v508, %v2593
        %v2687 = vmul.f32 %v509, %v2595
        %v2688 = vmul.f32 %v510, %v2597
        %v2689 = vmul.f32 %v511, %v2599
        %v2690 = vmul.f32 %v512, %v2601
        %v2691 = vmul.f32 %v513, %v2603
        %v2692 = vmul.f32 %v514, %v2605
        %v2693 = vmul.f32 %v515, %v2607
        %v2694 = vmul.f32 %v516, %v2609
        %v2695 = vmul.f32 %v517, %v2611
        %v2696 = vmul.f32 %v518, %v2613
        %v2697 = vmul.f32 %v519, %v2615
        %v2698 = vmul.f32 %v520, %v2617
        %v2699 = vmul.f32 %v521, %v2619
        %v2700 = vmul.f32 %v522, %v2621
        %v2701 = vmul.f32 %v523, %v2623
        %v2702 = vmul.f32 %v524, %v2625
        %v2703 = vmul.f32 %v525, %v2627
        %v2704 = vmul.f32 %v526, %v2629
        %v2705 = vmul.f32 %v527, %v2631
        %v2706 = vmul.f32 %v528, %v2633
        %v2707 = vmul.f32 %v529, %v2635
        %v2708 = vmul.f32 %v530, %v2637
        %v2709 = vmul.f32 %v531, %v2639
        %v2710 = vmul.f32 %v532, %v2641
        %v2711 = vmul.f32 %v533, %v2643
        %v2712 = vmul.f32 %v534, %v2645
        %v2713 = vmul.f32 %v535, %v2647
        %v2714 = vmul.f32 %v536, %v2649
        %v2715 = vmul.f32 %v537, %v2651
        %v2716 = vsel %vm739, %v2684, 0.0
        %v2717 = vsel %vm739, %v2685, 0.0
        %v2718 = vadd.f32 %v2716, %v2717
        %v2719 = vsel %vm739, %v2686, 0.0
        %v2720 = vadd.f32 %v2718, %v2719
        %v2721 = vsel %vm739, %v2687, 0.0
        %v2722 = vadd.f32 %v2720, %v2721
        %v2723 = vrot.slane %v2722, 4
        %v2724 = vadd.f32 %v2722, %v2723
        %v2725 = vrot.slane %v2724, 2
        %v2726 = vadd.f32 %v2724, %v2725
        %v2727 = vrot.slane %v2726, 1
        %v2728 = vadd.f32 %v2726, %v2727
        %v2729 = vsel %vm739, %v2688, 0.0
        %v2730 = vsel %vm739, %v2689, 0.0
        %v2731 = vadd.f32 %v2729, %v2730
        %v2732 = vsel %vm739, %v2690, 0.0
        %v2733 = vadd.f32 %v2731, %v2732
        %v2734 = vsel %vm739, %v2691, 0.0
        %v2735 = vadd.f32 %v2733, %v2734
        %v2736 = vrot.slane %v2735, 4
        %v2737 = vadd.f32 %v2735, %v2736
        %v2738 = vrot.slane %v2737, 2
        %v2739 = vadd.f32 %v2737, %v2738
        %v2740 = vrot.slane %v2739, 1
        %v2741 = vadd.f32 %v2739, %v2740
        %v2742 = vsel %vm739, %v2692, 0.0
        %v2743 = vsel %vm739, %v2693, 0.0
        %v2744 = vadd.f32 %v2742, %v2743
        %v2745 = vsel %vm739, %v2694, 0.0
        %v2746 = vadd.f32 %v2744, %v2745
        %v2747 = vsel %vm739, %v2695, 0.0
        %v2748 = vadd.f32 %v2746, %v2747
        %v2749 = vrot.slane %v2748, 4
        %v2750 = vadd.f32 %v2748, %v2749
        %v2751 = vrot.slane %v2750, 2
        %v2752 = vadd.f32 %v2750, %v2751
        %v2753 = vrot.slane %v2752, 1
        %v2754 = vadd.f32 %v2752, %v2753
        %v2755 = vsel %vm739, %v2696, 0.0
        %v2756 = vsel %vm739, %v2697, 0.0
        %v2757 = vadd.f32 %v2755, %v2756
        %v2758 = vsel %vm739, %v2698, 0.0
        %v2759 = vadd.f32 %v2757, %v2758
        %v2760 = vsel %vm739, %v2699, 0.0
        %v2761 = vadd.f32 %v2759, %v2760
        %v2762 = vrot.slane %v2761, 4
        %v2763 = vadd.f32 %v2761, %v2762
        %v2764 = vrot.slane %v2763, 2
        %v2765 = vadd.f32 %v2763, %v2764
        %v2766 = vrot.slane %v2765, 1
        %v2767 = vadd.f32 %v2765, %v2766
        %v2768 = vsel %vm739, %v2700, 0.0
        %v2769 = vsel %vm739, %v2701, 0.0
        %v2770 = vadd.f32 %v2768, %v2769
        %v2771 = vsel %vm739, %v2702, 0.0
        %v2772 = vadd.f32 %v2770, %v2771
        %v2773 = vsel %vm739, %v2703, 0.0
        %v2774 = vadd.f32 %v2772, %v2773
        %v2775 = vrot.slane %v2774, 4
        %v2776 = vadd.f32 %v2774, %v2775
        %v2777 = vrot.slane %v2776, 2
        %v2778 = vadd.f32 %v2776, %v2777
        %v2779 = vrot.slane %v2778, 1
        %v2780 = vadd.f32 %v2778, %v2779
        %v2781 = vsel %vm739, %v2704, 0.0
        %v2782 = vsel %vm739, %v2705, 0.0
        %v2783 = vadd.f32 %v2781, %v2782
        %v2784 = vsel %vm739, %v2706, 0.0
        %v2785 = vadd.f32 %v2783, %v2784
        %v2786 = vsel %vm739, %v2707, 0.0
        %v2787 = vadd.f32 %v2785, %v2786
        %v2788 = vrot.slane %v2787, 4
        %v2789 = vadd.f32 %v2787, %v2788
        %v2790 = vrot.slane %v2789, 2
        %v2791 = vadd.f32 %v2789, %v2790
        %v2792 = vrot.slane %v2791, 1
        %v2793 = vadd.f32 %v2791, %v2792
        %v2794 = vsel %vm739, %v2708, 0.0
        %v2795 = vsel %vm739, %v2709, 0.0
        %v2796 = vadd.f32 %v2794, %v2795
        %v2797 = vsel %vm739, %v2710, 0.0
        %v2798 = vadd.f32 %v2796, %v2797
        %v2799 = vsel %vm739, %v2711, 0.0
        %v2800 = vadd.f32 %v2798, %v2799
        %v2801 = vrot.slane %v2800, 4
        %v2802 = vadd.f32 %v2800, %v2801
        %v2803 = vrot.slane %v2802, 2
        %v2804 = vadd.f32 %v2802, %v2803
        %v2805 = vrot.slane %v2804, 1
        %v2806 = vadd.f32 %v2804, %v2805
        %v2807 = vsel %vm739, %v2712, 0.0
        %v2808 = vsel %vm739, %v2713, 0.0
        %v2809 = vadd.f32 %v2807, %v2808
        %v2810 = vsel %vm739, %v2714, 0.0
        %v2811 = vadd.f32 %v2809, %v2810
        %v2812 = vsel %vm739, %v2715, 0.0
        %v2813 = vadd.f32 %v2811, %v2812
        %v2814 = vrot.slane %v2813, 4
        %v2815 = vadd.f32 %v2813, %v2814
        %v2816 = vrot.slane %v2815, 2
        %v2817 = vadd.f32 %v2815, %v2816
        %v2818 = vrot.slane %v2817, 1
        %v2819 = vadd.f32 %v2817, %v2818
        %v2820 = vmax.f32 %v2500, %v2728
        %v2821 = vmax.f32 %v2501, %v2741
        %v2822 = vmax.f32 %v2502, %v2754
        %v2823 = vmax.f32 %v2503, %v2767
        %v2824 = vmax.f32 %v2504, %v2780
        %v2825 = vmax.f32 %v2505, %v2793
        %v2826 = vmax.f32 %v2506, %v2806
        %v2827 = vmax.f32 %v2507, %v2819
        %v2828 = vsub.f32 %v2500, %v2820
        %v2829 = vsub.f32 %v2501, %v2821
        %v2830 = vsub.f32 %v2502, %v2822
        %v2831 = vsub.f32 %v2503, %v2823
        %v2832 = vsub.f32 %v2504, %v2824
        %v2833 = vsub.f32 %v2505, %v2825
        %v2834 = vsub.f32 %v2506, %v2826
        %v2835 = vsub.f32 %v2507, %v2827
        %v2836 = vmul.f32 %v2828, 1.442695
        %v2837 = vpow.pop %v2836
        %v2838 = vmul.f32 %v2829, 1.442695
        %v2839 = vpow.pop %v2838
        %v2840 = vmul.f32 %v2830, 1.442695
        %v2841 = vpow.pop %v2840
        %v2842 = vmul.f32 %v2831, 1.442695
        %v2843 = vpow.pop %v2842
        %v2844 = vmul.f32 %v2832, 1.442695
        %v2845 = vpow.pop %v2844
        %v2846 = vmul.f32 %v2833, 1.442695
        %v2847 = vpow.pop %v2846
        %v2848 = vmul.f32 %v2834, 1.442695
        %v2849 = vpow.pop %v2848
        %v2850 = vmul.f32 %v2835, 1.442695
        %v2851 = vpow.pop %v2850
        %v2852 = vsub.f32 %v2728, %v2820
        %v2853 = vsub.f32 %v2741, %v2821
        %v2854 = vsub.f32 %v2754, %v2822
        %v2855 = vsub.f32 %v2767, %v2823
        %v2856 = vsub.f32 %v2780, %v2824
        %v2857 = vsub.f32 %v2793, %v2825
        %v2858 = vsub.f32 %v2806, %v2826
        %v2859 = vsub.f32 %v2819, %v2827
        %v2860 = vmul.f32 %v2852, 1.442695
        %v2861 = vpow.pop %v2860
        %v2862 = vmul.f32 %v2853, 1.442695
        %v2863 = vpow.pop %v2862
        %v2864 = vmul.f32 %v2854, 1.442695
        %v2865 = vpow.pop %v2864
        %v2866 = vmul.f32 %v2855, 1.442695
        %v2867 = vpow.pop %v2866
        %v2868 = vmul.f32 %v2856, 1.442695
        %v2869 = vpow.pop %v2868
        %v2870 = vmul.f32 %v2857, 1.442695
        %v2871 = vpow.pop %v2870
        %v2872 = vmul.f32 %v2858, 1.442695
        %v2873 = vpow.pop %v2872
        %v2874 = vmul.f32 %v2859, 1.442695
        %v2875 = vpow.pop %v2874
        %v2876 = vmul.f32 %v2564, %v2837
        %v2877 = vmul.f32 %v2565, %v2839
        %v2878 = vmul.f32 %v2566, %v2841
        %v2879 = vmul.f32 %v2567, %v2843
        %v2880 = vmul.f32 %v2568, %v2845
        %v2881 = vmul.f32 %v2569, %v2847
        %v2882 = vmul.f32 %v2570, %v2849
        %v2883 = vmul.f32 %v2571, %v2851
        %v2884 = vadd.f32 %v2876, %v2861
        %v2885 = vadd.f32 %v2877, %v2863
        %v2886 = vadd.f32 %v2878, %v2865
        %v2887 = vadd.f32 %v2879, %v2867
        %v2888 = vadd.f32 %v2880, %v2869
        %v2889 = vadd.f32 %v2881, %v2871
        %v2890 = vadd.f32 %v2882, %v2873
        %v2891 = vadd.f32 %v2883, %v2875
        %v2892 = vmul.f32 %v2580, %v2837
        %v2893 = vmul.f32 %v2581, %v2839
        %v2894 = vmul.f32 %v2582, %v2841
        %v2895 = vmul.f32 %v2583, %v2843
        %v2896 = vmul.f32 %v2584, %v2845
        %v2897 = vmul.f32 %v2585, %v2847
        %v2898 = vmul.f32 %v2586, %v2849
        %v2899 = vmul.f32 %v2587, %v2851
        %v2900 = vmul.f32 %v2861, 2.0
        %v2901 = vmul.f32 %v2863, 2.0
        %v2902 = vmul.f32 %v2865, 2.0
        %v2903 = vmul.f32 %v2867, 2.0
        %v2904 = vmul.f32 %v2869, 2.0
        %v2905 = vmul.f32 %v2871, 2.0
        %v2906 = vmul.f32 %v2873, 2.0
        %v2907 = vmul.f32 %v2875, 2.0
        %v2908 = vadd.f32 %v2892, %v2900
        %v2909 = vadd.f32 %v2893, %v2901
        %v2910 = vadd.f32 %v2894, %v2902
        %v2911 = vadd.f32 %v2895, %v2903
        %v2912 = vadd.f32 %v2896, %v2904
        %v2913 = vadd.f32 %v2897, %v2905
        %v2914 = vadd.f32 %v2898, %v2906
        %v2915 = vadd.f32 %v2899, %v2907
        %2916 = vrot.lane.b32.xlu0 %v675, 121
        %v2917 = vpop.permute.xlu0 %2916
        %2918 = vrot.lane.b32.xlu0 %v676, 121
        %v2919 = vpop.permute.xlu0 %2918
        %2920 = vrot.lane.b32.xlu0 %v677, 121
        %v2921 = vpop.permute.xlu0 %2920
        %2922 = vrot.lane.b32.xlu0 %v678, 121
        %v2923 = vpop.permute.xlu0 %2922
        %2924 = vrot.lane.b32.xlu0 %v679, 121
        %v2925 = vpop.permute.xlu0 %2924
        %2926 = vrot.lane.b32.xlu0 %v680, 121
        %v2927 = vpop.permute.xlu0 %2926
        %2928 = vrot.lane.b32.xlu0 %v681, 121
        %v2929 = vpop.permute.xlu0 %2928
        %2930 = vrot.lane.b32.xlu0 %v682, 121
        %v2931 = vpop.permute.xlu0 %2930
        %2932 = vrot.lane.b32.xlu0 %v683, 121
        %v2933 = vpop.permute.xlu0 %2932
        %2934 = vrot.lane.b32.xlu0 %v684, 121
        %v2935 = vpop.permute.xlu0 %2934
        %2936 = vrot.lane.b32.xlu0 %v685, 121
        %v2937 = vpop.permute.xlu0 %2936
        %2938 = vrot.lane.b32.xlu0 %v686, 121
        %v2939 = vpop.permute.xlu0 %2938
        %2940 = vrot.lane.b32.xlu0 %v687, 121
        %v2941 = vpop.permute.xlu0 %2940
        %2942 = vrot.lane.b32.xlu0 %v688, 121
        %v2943 = vpop.permute.xlu0 %2942
        %2944 = vrot.lane.b32.xlu0 %v689, 121
        %v2945 = vpop.permute.xlu0 %2944
        %2946 = vrot.lane.b32.xlu0 %v690, 121
        %v2947 = vpop.permute.xlu0 %2946
        %2948 = vrot.lane.b32.xlu0 %v691, 121
        %v2949 = vpop.permute.xlu0 %2948
        %2950 = vrot.lane.b32.xlu0 %v692, 121
        %v2951 = vpop.permute.xlu0 %2950
        %2952 = vrot.lane.b32.xlu0 %v693, 121
        %v2953 = vpop.permute.xlu0 %2952
        %2954 = vrot.lane.b32.xlu0 %v694, 121
        %v2955 = vpop.permute.xlu0 %2954
        %2956 = vrot.lane.b32.xlu0 %v695, 121
        %v2957 = vpop.permute.xlu0 %2956
        %2958 = vrot.lane.b32.xlu0 %v696, 121
        %v2959 = vpop.permute.xlu0 %2958
        %2960 = vrot.lane.b32.xlu0 %v697, 121
        %v2961 = vpop.permute.xlu0 %2960
        %2962 = vrot.lane.b32.xlu0 %v698, 121
        %v2963 = vpop.permute.xlu0 %2962
        %2964 = vrot.lane.b32.xlu0 %v699, 121
        %v2965 = vpop.permute.xlu0 %2964
        %2966 = vrot.lane.b32.xlu0 %v700, 121
        %v2967 = vpop.permute.xlu0 %2966
        %2968 = vrot.lane.b32.xlu0 %v701, 121
        %v2969 = vpop.permute.xlu0 %2968
        %2970 = vrot.lane.b32.xlu0 %v702, 121
        %v2971 = vpop.permute.xlu0 %2970
        %2972 = vrot.lane.b32.xlu0 %v703, 121
        %v2973 = vpop.permute.xlu0 %2972
        %2974 = vrot.lane.b32.xlu0 %v704, 121
        %v2975 = vpop.permute.xlu0 %2974
        %2976 = vrot.lane.b32.xlu0 %v705, 121
        %v2977 = vpop.permute.xlu0 %2976
        %2978 = vrot.lane.b32.xlu0 %v706, 121
        %v2979 = vpop.permute.xlu0 %2978
        %v3012 = vmul.f32 %v506, %v2917
        %v3013 = vmul.f32 %v507, %v2919
        %v3014 = vmul.f32 %v508, %v2921
        %v3015 = vmul.f32 %v509, %v2923
        %v3016 = vmul.f32 %v510, %v2925
        %v3017 = vmul.f32 %v511, %v2927
        %v3018 = vmul.f32 %v512, %v2929
        %v3019 = vmul.f32 %v513, %v2931
        %v3020 = vmul.f32 %v514, %v2933
        %v3021 = vmul.f32 %v515, %v2935
        %v3022 = vmul.f32 %v516, %v2937
        %v3023 = vmul.f32 %v517, %v2939
        %v3024 = vmul.f32 %v518, %v2941
        %v3025 = vmul.f32 %v519, %v2943
        %v3026 = vmul.f32 %v520, %v2945
        %v3027 = vmul.f32 %v521, %v2947
        %v3028 = vmul.f32 %v522, %v2949
        %v3029 = vmul.f32 %v523, %v2951
        %v3030 = vmul.f32 %v524, %v2953
        %v3031 = vmul.f32 %v525, %v2955
        %v3032 = vmul.f32 %v526, %v2957
        %v3033 = vmul.f32 %v527, %v2959
        %v3034 = vmul.f32 %v528, %v2961
        %v3035 = vmul.f32 %v529, %v2963
        %v3036 = vmul.f32 %v530, %v2965
        %v3037 = vmul.f32 %v531, %v2967
        %v3038 = vmul.f32 %v532, %v2969
        %v3039 = vmul.f32 %v533, %v2971
        %v3040 = vmul.f32 %v534, %v2973
        %v3041 = vmul.f32 %v535, %v2975
        %v3042 = vmul.f32 %v536, %v2977
        %v3043 = vmul.f32 %v537, %v2979
        %v3044 = vsel %vm739, %v3012, 0.0
        %v3045 = vsel %vm739, %v3013, 0.0
        %v3046 = vadd.f32 %v3044, %v3045
        %v3047 = vsel %vm739, %v3014, 0.0
        %v3048 = vadd.f32 %v3046, %v3047
        %v3049 = vsel %vm739, %v3015, 0.0
        %v3050 = vadd.f32 %v3048, %v3049
        %v3051 = vrot.slane %v3050, 4
        %v3052 = vadd.f32 %v3050, %v3051
        %v3053 = vrot.slane %v3052, 2
        %v3054 = vadd.f32 %v3052, %v3053
        %v3055 = vrot.slane %v3054, 1
        %v3056 = vadd.f32 %v3054, %v3055
        %v3057 = vsel %vm739, %v3016, 0.0
        %v3058 = vsel %vm739, %v3017, 0.0
        %v3059 = vadd.f32 %v3057, %v3058
        %v3060 = vsel %vm739, %v3018, 0.0
        %v3061 = vadd.f32 %v3059, %v3060
        %v3062 = vsel %vm739, %v3019, 0.0
        %v3063 = vadd.f32 %v3061, %v3062
        %v3064 = vrot.slane %v3063, 4
        %v3065 = vadd.f32 %v3063, %v3064
        %v3066 = vrot.slane %v3065, 2
        %v3067 = vadd.f32 %v3065, %v3066
        %v3068 = vrot.slane %v3067, 1
        %v3069 = vadd.f32 %v3067, %v3068
        %v3070 = vsel %vm739, %v3020, 0.0
        %v3071 = vsel %vm739, %v3021, 0.0
        %v3072 = vadd.f32 %v3070, %v3071
        %v3073 = vsel %vm739, %v3022, 0.0
        %v3074 = vadd.f32 %v3072, %v3073
        %v3075 = vsel %vm739, %v3023, 0.0
        %v3076 = vadd.f32 %v3074, %v3075
        %v3077 = vrot.slane %v3076, 4
        %v3078 = vadd.f32 %v3076, %v3077
        %v3079 = vrot.slane %v3078, 2
        %v3080 = vadd.f32 %v3078, %v3079
        %v3081 = vrot.slane %v3080, 1
        %v3082 = vadd.f32 %v3080, %v3081
        %v3083 = vsel %vm739, %v3024, 0.0
        %v3084 = vsel %vm739, %v3025, 0.0
        %v3085 = vadd.f32 %v3083, %v3084
        %v3086 = vsel %vm739, %v3026, 0.0
        %v3087 = vadd.f32 %v3085, %v3086
        %v3088 = vsel %vm739, %v3027, 0.0
        %v3089 = vadd.f32 %v3087, %v3088
        %v3090 = vrot.slane %v3089, 4
        %v3091 = vadd.f32 %v3089, %v3090
        %v3092 = vrot.slane %v3091, 2
        %v3093 = vadd.f32 %v3091, %v3092
        %v3094 = vrot.slane %v3093, 1
        %v3095 = vadd.f32 %v3093, %v3094
        %v3096 = vsel %vm739, %v3028, 0.0
        %v3097 = vsel %vm739, %v3029, 0.0
        %v3098 = vadd.f32 %v3096, %v3097
        %v3099 = vsel %vm739, %v3030, 0.0
        %v3100 = vadd.f32 %v3098, %v3099
        %v3101 = vsel %vm739, %v3031, 0.0
        %v3102 = vadd.f32 %v3100, %v3101
        %v3103 = vrot.slane %v3102, 4
        %v3104 = vadd.f32 %v3102, %v3103
        %v3105 = vrot.slane %v3104, 2
        %v3106 = vadd.f32 %v3104, %v3105
        %v3107 = vrot.slane %v3106, 1
        %v3108 = vadd.f32 %v3106, %v3107
        %v3109 = vsel %vm739, %v3032, 0.0
        %v3110 = vsel %vm739, %v3033, 0.0
        %v3111 = vadd.f32 %v3109, %v3110
        %v3112 = vsel %vm739, %v3034, 0.0
        %v3113 = vadd.f32 %v3111, %v3112
        %v3114 = vsel %vm739, %v3035, 0.0
        %v3115 = vadd.f32 %v3113, %v3114
        %v3116 = vrot.slane %v3115, 4
        %v3117 = vadd.f32 %v3115, %v3116
        %v3118 = vrot.slane %v3117, 2
        %v3119 = vadd.f32 %v3117, %v3118
        %v3120 = vrot.slane %v3119, 1
        %v3121 = vadd.f32 %v3119, %v3120
        %v3122 = vsel %vm739, %v3036, 0.0
        %v3123 = vsel %vm739, %v3037, 0.0
        %v3124 = vadd.f32 %v3122, %v3123
        %v3125 = vsel %vm739, %v3038, 0.0
        %v3126 = vadd.f32 %v3124, %v3125
        %v3127 = vsel %vm739, %v3039, 0.0
        %v3128 = vadd.f32 %v3126, %v3127
        %v3129 = vrot.slane %v3128, 4
        %v3130 = vadd.f32 %v3128, %v3129
        %v3131 = vrot.slane %v3130, 2
        %v3132 = vadd.f32 %v3130, %v3131
        %v3133 = vrot.slane %v3132, 1
        %v3134 = vadd.f32 %v3132, %v3133
        %v3135 = vsel %vm739, %v3040, 0.0
        %v3136 = vsel %vm739, %v3041, 0.0
        %v3137 = vadd.f32 %v3135, %v3136
        %v3138 = vsel %vm739, %v3042, 0.0
        %v3139 = vadd.f32 %v3137, %v3138
        %v3140 = vsel %vm739, %v3043, 0.0
        %v3141 = vadd.f32 %v3139, %v3140
        %v3142 = vrot.slane %v3141, 4
        %v3143 = vadd.f32 %v3141, %v3142
        %v3144 = vrot.slane %v3143, 2
        %v3145 = vadd.f32 %v3143, %v3144
        %v3146 = vrot.slane %v3145, 1
        %v3147 = vadd.f32 %v3145, %v3146
        %v3148 = vmax.f32 %v2820, %v3056
        %v3149 = vmax.f32 %v2821, %v3069
        %v3150 = vmax.f32 %v2822, %v3082
        %v3151 = vmax.f32 %v2823, %v3095
        %v3152 = vmax.f32 %v2824, %v3108
        %v3153 = vmax.f32 %v2825, %v3121
        %v3154 = vmax.f32 %v2826, %v3134
        %v3155 = vmax.f32 %v2827, %v3147
        %v3156 = vsub.f32 %v2820, %v3148
        %v3157 = vsub.f32 %v2821, %v3149
        %v3158 = vsub.f32 %v2822, %v3150
        %v3159 = vsub.f32 %v2823, %v3151
        %v3160 = vsub.f32 %v2824, %v3152
        %v3161 = vsub.f32 %v2825, %v3153
        %v3162 = vsub.f32 %v2826, %v3154
        %v3163 = vsub.f32 %v2827, %v3155
        %v3164 = vmul.f32 %v3156, 1.442695
        %v3165 = vpow.pop %v3164
        %v3166 = vmul.f32 %v3157, 1.442695
        %v3167 = vpow.pop %v3166
        %v3168 = vmul.f32 %v3158, 1.442695
        %v3169 = vpow.pop %v3168
        %v3170 = vmul.f32 %v3159, 1.442695
        %v3171 = vpow.pop %v3170
        %v3172 = vmul.f32 %v3160, 1.442695
        %v3173 = vpow.pop %v3172
        %v3174 = vmul.f32 %v3161, 1.442695
        %v3175 = vpow.pop %v3174
        %v3176 = vmul.f32 %v3162, 1.442695
        %v3177 = vpow.pop %v3176
        %v3178 = vmul.f32 %v3163, 1.442695
        %v3179 = vpow.pop %v3178
        %v3180 = vsub.f32 %v3056, %v3148
        %v3181 = vsub.f32 %v3069, %v3149
        %v3182 = vsub.f32 %v3082, %v3150
        %v3183 = vsub.f32 %v3095, %v3151
        %v3184 = vsub.f32 %v3108, %v3152
        %v3185 = vsub.f32 %v3121, %v3153
        %v3186 = vsub.f32 %v3134, %v3154
        %v3187 = vsub.f32 %v3147, %v3155
        %v3188 = vmul.f32 %v3180, 1.442695
        %v3189 = vpow.pop %v3188
        %v3190 = vmul.f32 %v3181, 1.442695
        %v3191 = vpow.pop %v3190
        %v3192 = vmul.f32 %v3182, 1.442695
        %v3193 = vpow.pop %v3192
        %v3194 = vmul.f32 %v3183, 1.442695
        %v3195 = vpow.pop %v3194
        %v3196 = vmul.f32 %v3184, 1.442695
        %v3197 = vpow.pop %v3196
        %v3198 = vmul.f32 %v3185, 1.442695
        %v3199 = vpow.pop %v3198
        %v3200 = vmul.f32 %v3186, 1.442695
        %v3201 = vpow.pop %v3200
        %v3202 = vmul.f32 %v3187, 1.442695
        %v3203 = vpow.pop %v3202
        %v3204 = vmul.f32 %v2884, %v3165
        %v3205 = vmul.f32 %v2885, %v3167
        %v3206 = vmul.f32 %v2886, %v3169
        %v3207 = vmul.f32 %v2887, %v3171
        %v3208 = vmul.f32 %v2888, %v3173
        %v3209 = vmul.f32 %v2889, %v3175
        %v3210 = vmul.f32 %v2890, %v3177
        %v3211 = vmul.f32 %v2891, %v3179
        %v3212 = vadd.f32 %v3204, %v3189
        %v3213 = vadd.f32 %v3205, %v3191
        %v3214 = vadd.f32 %v3206, %v3193
        %v3215 = vadd.f32 %v3207, %v3195
        %v3216 = vadd.f32 %v3208, %v3197
        %v3217 = vadd.f32 %v3209, %v3199
        %v3218 = vadd.f32 %v3210, %v3201
        %v3219 = vadd.f32 %v3211, %v3203
        %v3220 = vmul.f32 %v2908, %v3165
        %v3221 = vmul.f32 %v2909, %v3167
        %v3222 = vmul.f32 %v2910, %v3169
        %v3223 = vmul.f32 %v2911, %v3171
        %v3224 = vmul.f32 %v2912, %v3173
        %v3225 = vmul.f32 %v2913, %v3175
        %v3226 = vmul.f32 %v2914, %v3177
        %v3227 = vmul.f32 %v2915, %v3179
        %v3228 = vmul.f32 %v3189, 3.0
        %v3229 = vmul.f32 %v3191, 3.0
        %v3230 = vmul.f32 %v3193, 3.0
        %v3231 = vmul.f32 %v3195, 3.0
        %v3232 = vmul.f32 %v3197, 3.0
        %v3233 = vmul.f32 %v3199, 3.0
        %v3234 = vmul.f32 %v3201, 3.0
        %v3235 = vmul.f32 %v3203, 3.0
        %v3236 = vadd.f32 %v3220, %v3228
        %v3237 = vadd.f32 %v3221, %v3229
        %v3238 = vadd.f32 %v3222, %v3230
        %v3239 = vadd.f32 %v3223, %v3231
        %v3240 = vadd.f32 %v3224, %v3232
        %v3241 = vadd.f32 %v3225, %v3233
        %v3242 = vadd.f32 %v3226, %v3234
        %v3243 = vadd.f32 %v3227, %v3235
        %v3244 = vrcp.pop %v3212
        %v3245 = vrcp.pop %v3213
        %v3246 = vrcp.pop %v3214
        %v3247 = vrcp.pop %v3215
        %v3248 = vrcp.pop %v3216
        %v3249 = vrcp.pop %v3217
        %v3250 = vrcp.pop %v3218
        %v3251 = vrcp.pop %v3219
        %v3252 = vmul.f32 %v3236, %v3244
        %v3253 = vmul.f32 %v3237, %v3245
        %v3254 = vmul.f32 %v3238, %v3246
        %v3255 = vmul.f32 %v3239, %v3247
        %v3256 = vmul.f32 %v3240, %v3248
        %v3257 = vmul.f32 %v3241, %v3249
        %v3258 = vmul.f32 %v3242, %v3250
        %v3259 = vmul.f32 %v3243, %v3251
        %v3260 = vld [vmem:[%s269] sm:$0xff]
        %3262 = vset.pattern.permute.xlu0 0
        %3263 = vperm.xlu0 %3262, %v3260
        %v3264 = vpop.permute.xlu0 %3263
        %v3265 = vrot.slane %v3264, 1
        %v3266 = vrot.slane %v3264, 2
        %v3267 = vrot.slane %v3264, 3
        %v3268 = vrot.slane %v3264, 4
        %v3269 = vrot.slane %v3264, 5
        %v3270 = vrot.slane %v3264, 6
        %v3271 = vrot.slane %v3264, 7
        %v3280 = vmul.f32 %v3252, %v3264
        %v3281 = vmul.f32 %v3253, %v3265
        %v3282 = vmul.f32 %v3254, %v3266
        %v3283 = vmul.f32 %v3255, %v3267
        %v3284 = vmul.f32 %v3256, %v3268
        %v3285 = vmul.f32 %v3257, %v3269
        %v3286 = vmul.f32 %v3258, %v3270
        %v3287 = vmul.f32 %v3259, %v3271
        %v3296 = vrot.slane %v3281, 7
        %vm3297 = vcmask 1041409
        %v3298 = vsel %vm3297, %v3296, %v3280
        %v3299 = vrot.slane %v3282, 6
        %vm3300 = vcmask 1042434
        %v3301 = vsel %vm3300, %v3299, %v3298
        %v3302 = vrot.slane %v3283, 5
        %vm3303 = vcmask 1043459
        %v3304 = vsel %vm3303, %v3302, %v3301
        %v3305 = vrot.slane %v3284, 4
        %vm3306 = vcmask 1044484
        %v3307 = vsel %vm3306, %v3305, %v3304
        %v3308 = vrot.slane %v3285, 3
        %vm3309 = vcmask 1045509
        %v3310 = vsel %vm3309, %v3308, %v3307
        %v3311 = vrot.slane %v3286, 2
        %vm3312 = vcmask 1046534
        %v3313 = vsel %vm3312, %v3311, %v3310
        %v3314 = vrot.slane %v3287, 1
        %vm3315 = vcmask 1047559
        %v3316 = vsel %vm3315, %v3314, %v3313
        %3318 = vst.msk [vmem:[%s251] sm:$0xff] %vm739, %v3316
        %s3319 = sand.u32 %s147, 1
        %s3320 = scalar_lea.sflag [#allocation3], %s3319
        %s3321 = sand.u32 %s147, 1
        %s3322 = smul.addr %s3321, 8
        %s3323 = scalar_lea.vmem [#allocation2], %s3322
        // Predicated region
        $region41: #{bnn_forward.5} parent=39 // pred_check
          %p3324 = pneg %p157
        $region42: #{bnn_forward.5} parent=39 // pred_check_branch
          %3326 = sbr.rel (%p3324) target = $region44
        $region43: #{bnn_forward.5} parent=39 // pred_region
          %s3328 = ssub.s32 128, 128
          %3329 = vsyncadd %s3320, %s3328
          %s3330 = smul.addr %s19, 128
          %s3331 = scalar_lea.hbm %s5, %s3330
          %s3333 = sshll.u32 %s3323, 4
          %s3334 = int_to_ptr.vmem [resolvable:$true] %s3333
          %3336 = dma.vmem_to_hbm [thread:$0]  %s3334, 128, %s3331, %s3320
        $region44: #{bnn_forward.5} parent=39 // pred_fallthru
          _
      $region40: #{bnn_forward.5} parent=5 // pred_fallthru
        _
      %p3337 = scmp.le.s32.totalorder 2, %s14
      // Predicated region
      $region45: #{bnn_forward.5} parent=5 // pred_check
        %p3338 = pneg %p3337
      $region46: #{bnn_forward.5} parent=5 // pred_check_branch
        %3340 = sbr.rel (%p3338) target = $region48
      $region47: #{bnn_forward.5} parent=5 // pred_region
        %s3341 = ssub.s32 %s14, 2
        // Predicated region
        $region49: #{bnn_forward.5} parent=47 // pred_check
          %p3342 = pneg %p163
        $region50: #{bnn_forward.5} parent=47 // pred_check_branch
          %3344 = sbr.rel (%p3342) target = $region52
        $region51: #{bnn_forward.5} parent=47 // pred_region
          %s3345 = sand.u32 %s148, 1
          %s3346 = scalar_lea.sflag [#allocation3], %s3345
          %s3347 = sand.u32 %s148, 1
          %s3348 = smul.addr %s3347, 8
          %s3349 = scalar_lea.vmem [#allocation2], %s3348
          %3350 = dma.done %s3346, 128
        $region52: #{bnn_forward.5} parent=47 // pred_fallthru
          _
      $region48: #{bnn_forward.5} parent=5 // pred_fallthru
        _
    $region6: #{bnn_forward.5} parent=1 // loop_footer
      %s18 = sadd.s32 1, %s14
    $region7: #{bnn_forward.5} parent=1 // loop_footer_branch
      %13 = sbr.rel target = $region3
    $region8: #{bnn_forward.5} parent=1 // loop_exit
      _
    %3351 = vsyncpa [#allocation3], 1
    %s3352 = scalar_lea.sflag [#allocation3], 1
    %3353 = vsyncpa %s3352, 1

</llo_original>
